<compile_context>
chip_gen: v6e
topology: v6e:2x2x1
jax: 0.10.0
libtpu: 0.0.40
codegen_flags: <defaults>
</compile_context>

<pallas_src>
import numpy as np

import jax
import jax.numpy as jnp
from jax import lax
from jax.experimental import pallas as pl
from jax.experimental.pallas import tpu as pltpu


LANES = 128


# ----------------------- host-side parameter building -----------------------

def _fold_bn(w, gamma, beta, mean, var, eps=1e-5):
    """Fold eval-mode BatchNorm into a bias-free conv. w: (Cout,Cin,kh,kw)."""
    s = gamma / np.sqrt(var + eps)
    return w * s[:, None, None, None], beta - mean * s


def _conv_mcat(w_f, b_f, hin, win, stride, pad):
    """Lower a folded conv on a (hin, win, Cin) NHWC activation (kept flat as
    rows of length win*Cin) to a single matmul:

        out_row = concat_kh(input_row[stride*o + kh - pad]) @ M_cat + bias

    M_cat folds the horizontal offsets / stride / padding together with the
    conv weights; shape (k*win*Cin, wo*Cout).
    """
    cout, cin, k, _ = w_f.shape
    ho = (hin + 2 * pad - k) // stride + 1
    wo = (win + 2 * pad - k) // stride + 1
    m = np.zeros((k, win * cin, wo * cout), np.float32)
    for kh in range(k):
        for o in range(wo):
            for kw in range(k):
                wi = stride * o + kw - pad
                if 0 <= wi < win:
                    m[kh, wi * cin:(wi + 1) * cin,
                      o * cout:(o + 1) * cout] = w_f[:, :, kh, kw].T
    m_cat = m.reshape(k * win * cin, wo * cout)
    bias = np.tile(b_f.reshape(1, cout), (1, wo))          # (1, wo*cout)
    return m_cat, bias, ho, wo


def _init_conv_bn(key, cin, cout, k):
    kw_, kg, kb, km, kv = jax.random.split(key, 5)
    fan_in = cin * k * k
    w = np.asarray(jax.random.normal(kw_, (cout, cin, k, k), jnp.float32)) / np.sqrt(fan_in)
    gamma = np.asarray(jax.random.uniform(kg, (cout,), jnp.float32, 0.5, 1.5))
    beta = np.asarray(jax.random.normal(kb, (cout,), jnp.float32)) * 0.1
    mean = np.asarray(jax.random.normal(km, (cout,), jnp.float32)) * 0.1
    var = np.asarray(jax.random.uniform(kv, (cout,), jnp.float32, 0.5, 1.5))
    return _fold_bn(w, gamma, beta, mean, var)


def init_cresnet7(key, in_planes=8, num_classes=10, tb=8):
    """Random CResNet7 parameters, pre-lowered to the packed-slab kernel form.
    Assumes 3x32x32 inputs (so the final feature map is 4x4 for AvgPool2d(4))."""
    planes = in_planes * 2
    ks = jax.random.split(key, 13)
    ki = 0
    weights, biases, dims, ref = {}, {}, {}, {}

    def add_conv(name, cin, cout, hin, win, stride, pad, k):
        nonlocal ki
        w_f, b_f = _init_conv_bn(ks[ki], cin, cout, k)
        ki += 1
        m_cat, brow, ho, wo = _conv_mcat(w_f, b_f, hin, win, stride, pad)
        weights[name], biases[name], dims[name] = m_cat, brow, m_cat.shape
        ref[name] = (w_f, b_f)
        return ho, wo

    # conv1 + bn1 (+ relu):  3 -> in_planes, k3 s2 p1,  32x32 -> 16x16
    add_conv('conv1', 3, in_planes, 32, 32, 2, 1, 3)
    # layer1 BasicBlock 1 (stride 2, conv+bn shortcut): 16x16 -> 8x8
    add_conv('b1c1', in_planes, planes, 16, 16, 2, 1, 3)
    add_conv('b1sc', in_planes, planes, 16, 16, 2, 0, 1)
    add_conv('b1c2', planes, planes, 8, 8, 1, 1, 3)
    # layer1 BasicBlock 2 (stride 1, identity shortcut)
    add_conv('b2c1', planes, planes, 8, 8, 1, 1, 3)
    add_conv('b2c2', planes, planes, 8, 8, 1, 1, 3)
    # layer2 BasicBlock 1 (stride 2, conv+bn shortcut): 8x8 -> 4x4
    add_conv('b3c1', planes, planes, 8, 8, 2, 1, 3)
    add_conv('b3sc', planes, planes, 8, 8, 2, 0, 1)
    add_conv('b3c2', planes, planes, 4, 4, 1, 1, 3)
    # layer2 BasicBlock 2 (stride 1, identity shortcut)
    add_conv('b4c1', planes, planes, 4, 4, 1, 1, 3)
    add_conv('b4c2', planes, planes, 4, 4, 1, 1, 3)

    # AvgPool2d(4) + Linear head (final map is 4x4); pool scale folded into W.
    wl = np.asarray(jax.random.normal(ks[ki], (num_classes, planes), jnp.float32)) / np.sqrt(planes)
    ki += 1
    bl = np.asarray(jax.random.normal(ks[ki], (num_classes,), jnp.float32)) * 0.1
    ki += 1
    head_w = np.tile(wl.T, (4, 1)) / 16.0                  # (4*planes, num_classes)
    weights['head'], biases['head'], dims['head'] = head_w, bl.reshape(1, -1), head_w.shape
    ref['head_w'], ref['head_b'] = wl, bl

    # 0/1 helper matrices (left matmul operands):
    #   perm: reorders the (tb*8)-row block-2 output into [even rows; odd rows]
    #         (sample-major) so layer2's stride-2 convs see contiguous slices.
    #   ssum: per-sample sum of the 4 feature rows (vertical half of the avg pool).
    perm = np.zeros((tb * 8, tb * 8), np.float32)
    for b in range(tb):
        for j in range(4):
            perm[b * 4 + j, b * 8 + 2 * j] = 1.0
            perm[tb * 4 + b * 4 + j, b * 8 + 2 * j + 1] = 1.0
    ssum = np.zeros((tb, tb * 4), np.float32)
    for b in range(tb):
        ssum[b, b * 4:(b + 1) * 4] = 1.0
    weights['perm'], dims['perm'] = perm, perm.shape
    weights['ssum'], dims['ssum'] = ssum, ssum.shape

    # ---- pack everything into one bf16 weight slab + one f32 bias slab ------
    order = ['conv1', 'b1c1', 'b1sc', 'b1c2', 'b2c1', 'b2c2', 'perm',
             'b3c1', 'b3sc', 'b3c2', 'b4c1', 'b4c2', 'ssum', 'head']
    slab_w = LANES * int(np.ceil(max(weights[n].shape[1] for n in order) / LANES))
    woff, rows, blocks = {}, 0, []
    for name in order:
        a = weights[name]
        assert a.shape[1] <= slab_w
        woff[name] = rows
        rows += a.shape[0]
        blocks.append(np.pad(a, ((0, 0), (0, slab_w - a.shape[1]))))
    if rows % 8:
        blocks.append(np.zeros((8 - rows % 8, slab_w), np.float32))
    wslab = np.concatenate(blocks, axis=0)

    bnames = ['conv1', 'b1c1', 'b1sc', 'b1c2', 'b2c1', 'b2c2',
              'b3c1', 'b3sc', 'b3c2', 'b4c1', 'b4c2', 'head']
    bidx = {n_: i for i, n_ in enumerate(bnames)}
    bslab = np.zeros((max(8, ((len(bnames) + 7) // 8) * 8), slab_w), np.float32)
    for n_, i in bidx.items():
        brow = biases[n_]
        bslab[i, :brow.shape[1]] = brow[0]

    # advisory FLOPs for one grid step (one tile of `tb` samples)
    mm = [(tb * 16,) + dims['conv1'],
          (tb * 8,) + dims['b1c1'], (tb * 8,) + dims['b1sc'], (tb * 8,) + dims['b1c2'],
          (tb * 8,) + dims['b2c1'], (tb * 8,) + dims['b2c2'],
          (tb * 8, tb * 8, 8 * planes),
          (tb * 4,) + dims['b3c1'], (tb * 4,) + dims['b3sc'], (tb * 4,) + dims['b3c2'],
          (tb * 4,) + dims['b4c1'], (tb * 4,) + dims['b4c2'],
          (tb, tb * 4, 4 * planes), (tb, 4 * planes, slab_w)]
    flops_per_step = int(sum(2 * m_ * k_ * n_ for m_, k_, n_ in mm))

    plan = {'tb': int(tb), 'num_classes': int(num_classes), 'planes': int(planes),
            'slab_w': int(slab_w),
            'woff': {k: int(v) for k, v in woff.items()},
            'wdim': {k: tuple(int(x) for x in v) for k, v in dims.items()},
            'bidx': {k: int(v) for k, v in bidx.items()},
            'flops_per_step': flops_per_step}

    return {'wslab': jnp.asarray(wslab, jnp.bfloat16),
            'bslab': jnp.asarray(bslab, jnp.float32),
            'plan': plan, 'ref': ref}


# ------------------------------ fused kernel --------------------------------

def _make_kernel(plan):
    tb = plan['tb']
    woff, wdim, bidx, slab_w = plan['woff'], plan['wdim'], plan['bidx'], plan['slab_w']

    def kernel(x_ref, w_ref, b_ref, o_ref):
        f32, bf16 = jnp.float32, jnp.bfloat16

        def wmat(name, n=None):
            k, nat_n = wdim[name]
            n = nat_n if n is None else n
            off = woff[name]
            return w_ref[off:off + k, :n]

        def epilogue(acc, name, relu, residual=None):
            n = acc.shape[1]
            acc = acc + b_ref[bidx[name]:bidx[name] + 1, :n]
            if residual is not None:
                acc = acc + residual
            return jnp.maximum(acc, 0.0) if relu else acc

        def shift_down(z, hper):
            # row r <- z[r-1]; zeroed on each sample's first row (vertical pad).
            rws, wc = z.shape
            d = jnp.concatenate([jnp.zeros((1, wc), z.dtype), z[:rws - 1, :]], axis=0)
            r = lax.broadcasted_iota(jnp.int32, (rws, 1), 0)
            keep = (jnp.bitwise_and(r, hper - 1) != 0).astype(z.dtype)
            return d * keep

        def shift_up(z, hper):
            # row r <- z[r+1]; zeroed on each sample's last row (vertical pad).
            rws, wc = z.shape
            u = jnp.concatenate([z[1:, :], jnp.zeros((1, wc), z.dtype)], axis=0)
            r = lax.broadcasted_iota(jnp.int32, (rws, 1), 0)
            keep = (jnp.bitwise_and(r, hper - 1) != hper - 1).astype(z.dtype)
            return u * keep

        def conv3_s1(z_bf, hper, name, relu, residual=None):
            # stride-1 3x3 conv: kh taps are +/-1 row shifts, folded into one matmul.
            xcat = jnp.concatenate(
                [shift_down(z_bf, hper), z_bf, shift_up(z_bf, hper)], axis=1)
            acc = jnp.dot(xcat, wmat(name), preferred_element_type=f32)
            return epilogue(acc, name, relu, residual)

        def conv3_s2(evens_bf, odds_bf, hout, name, relu):
            # stride-2 3x3 conv from pre-split even/odd input rows (sample-major).
            xcat = jnp.concatenate(
                [shift_down(odds_bf, hout), evens_bf, odds_bf], axis=1)
            acc = jnp.dot(xcat, wmat(name), preferred_element_type=f32)
            return epilogue(acc, name, relu)

        def conv1x1_s2(evens_bf, name):
            # 1x1 stride-2 shortcut conv (+bn): even rows only, no relu.
            acc = jnp.dot(evens_bf, wmat(name), preferred_element_type=f32)
            return epilogue(acc, name, relu=False)

        # ---- conv1 + bn1 + relu -------------------------------------------
        # x_ref rows are host-built kh-concatenated input rows, grouped so rows
        # [0, tb*8) are the even conv1-output rows (sample-major) and rows
        # [tb*8, tb*16) are the odd ones.
        x0 = x_ref[...].astype(bf16)                        # (tb*16, 3*Win*Cin)
        z1 = epilogue(jnp.dot(x0, wmat('conv1'), preferred_element_type=f32),
                      'conv1', relu=True).astype(bf16)      # (tb*16, 128)
        ev1, od1 = z1[:tb * 8, :], z1[tb * 8:, :]

        # ---- layer1 block 1 (stride 2, conv shortcut) ----------------------
        h = conv3_s2(ev1, od1, 8, 'b1c1', relu=True).astype(bf16)
        sc = conv1x1_s2(ev1, 'b1sc')
        z = conv3_s1(h, 8, 'b1c2', relu=True, residual=sc)  # (tb*8, 128) f32

        # ---- layer1 block 2 (stride 1, identity shortcut) -------------------
        zres = z
        h = conv3_s1(z.astype(bf16), 8, 'b2c1', relu=True).astype(bf16)
        z = conv3_s1(h, 8, 'b2c2', relu=True, residual=zres)

        # ---- layer2 block 1 (stride 2, conv shortcut) -----------------------
        # Tiny 0/1 permutation matmul splits the input into [even; odd] rows.
        perm = w_ref[woff['perm']:woff['perm'] + tb * 8, :tb * 8]
        zp = jnp.dot(perm, z.astype(bf16), preferred_element_type=f32).astype(bf16)
        ev3, od3 = zp[:tb * 4, :], zp[tb * 4:, :]
        h = conv3_s2(ev3, od3, 4, 'b3c1', relu=True).astype(bf16)
        sc = conv1x1_s2(ev3, 'b3sc')
        z = conv3_s1(h, 4, 'b3c2', relu=True, residual=sc)  # (tb*4, 64) f32

        # ---- layer2 block 2 (stride 1, identity shortcut) -------------------
        zres = z
        h = conv3_s1(z.astype(bf16), 4, 'b4c1', relu=True).astype(bf16)
        z = conv3_s1(h, 4, 'b4c2', relu=True, residual=zres)

        # ---- AvgPool2d(4) + Linear head -------------------------------------
        feat = z.astype(bf16)                               # (tb*4, 4*planes)
        srows = jnp.dot(w_ref[woff['ssum']:woff['ssum'] + tb, :tb * 4], feat,
                        preferred_element_type=f32)         # (tb, 4*planes)
        logits = jnp.dot(srows.astype(bf16), wmat('head', n=slab_w),
                         preferred_element_type=f32)
        logits = logits + b_ref[bidx['head']:bidx['head'] + 1, :]
        o_ref[...] = logits.astype(jnp.float32)             # (tb, 128) lane-dense

    return kernel


# ------------------------------- wrapper -------------------------------------

def cresnet7_forward(x_nchw, params):
    plan = params['plan']
    tb, ncls, slab_w = plan['tb'], plan['num_classes'], plan['slab_w']
    n, c, h, w = x_nchw.shape
    assert c == 3 and h == 32 and w == 32, "CResNet7 'avg' head assumes 3x32x32 inputs"

    g = -(-n // tb)
    n_pad = g * tb - n
    if n_pad:
        x_nchw = jnp.concatenate(
            [x_nchw, jnp.zeros((n_pad, c, h, w), x_nchw.dtype)], axis=0)

    # NCHW -> per-sample flat rows (H, W*C); zero-pad H by 1; H-axis gather for
    # conv1 (k=3, stride 2):  row o = [x_pad[2o], x_pad[2o+1], x_pad[2o+2]].
    d = 3 * w * c
    xf = jnp.transpose(x_nchw, (0, 2, 3, 1)).reshape(g * tb, h, w * c)
    xp = jnp.pad(xf, ((0, 0), (1, 1), (0, 0)))
    x_im = jnp.concatenate(
        [xp[:, 0:h:2, :], xp[:, 1:h + 1:2, :], xp[:, 2:h + 2:2, :]], axis=-1)
    # Group rows per grid block as [even conv1-output rows; odd rows], sample-major,
    # so layer1's stride-2 convs read contiguous slices in-kernel.
    xe = x_im[:, 0::2, :].reshape(g, tb * 8, d)
    xo = x_im[:, 1::2, :].reshape(g, tb * 8, d)
    xg = jnp.concatenate([xe, xo], axis=1).reshape(g * tb * 16, d)

    out = pl.pallas_call(
        _make_kernel(plan),
        grid=(g,),
        in_specs=[
            pl.BlockSpec((tb * 16, d), lambda i: (i, 0)),
            pl.BlockSpec(params['wslab'].shape, lambda i: (0, 0)),
            pl.BlockSpec(params['bslab'].shape, lambda i: (0, 0)),
        ],
        out_specs=pl.BlockSpec((tb, slab_w), lambda i: (i, 0)),
        out_shape=jax.ShapeDtypeStruct((g * tb, slab_w), jnp.float32),
        compiler_params=pltpu.CompilerParams(dimension_semantics=("parallel",)),
        cost_estimate=pl.CostEstimate(
            flops=plan['flops_per_step'] * g,
            transcendentals=0,
            bytes_accessed=int(xg.size * 4 + params['wslab'].size * 2
                               + params['bslab'].size * 4 + g * tb * slab_w * 4)),
    )(xg, params['wslab'], params['bslab'])
    return out[:n, :ncls]


# --------------------------- pure-JAX f32 reference --------------------------

def _ref_forward(x_nchw, ref):
    def conv(x, wb, stride, pad):
        w_, b_ = wb
        y = lax.conv_general_dilated(
            x, jnp.asarray(w_), (stride, stride), [(pad, pad), (pad, pad)],
            dimension_numbers=('NHWC', 'OIHW', 'NHWC'))
        return y + jnp.asarray(b_).reshape(1, 1, 1, -1)

    z = jnp.transpose(x_nchw, (0, 2, 3, 1))
    z = jax.nn.relu(conv(z, ref['conv1'], 2, 1))

    def block(z, c1, c2, sc, stride):
        h = jax.nn.relu(conv(z, c1, stride, 1))
        out = conv(h, c2, 1, 1)
        short = conv(z, sc, stride, 0) if sc is not None else z
        return jax.nn.relu(out + short)

    z = block(z, ref['b1c1'], ref['b1c2'], ref['b1sc'], 2)
    z = block(z, ref['b2c1'], ref['b2c2'], None, 1)
    z = block(z, ref['b3c1'], ref['b3c2'], ref['b3sc'], 2)
    z = block(z, ref['b4c1'], ref['b4c2'], None, 1)
    feat = jnp.mean(z, axis=(1, 2))
    return feat @ jnp.asarray(ref['head_w']).T + jnp.asarray(ref['head_b'])


# --------------------------------- main --------------------------------------

if __name__ == "__main__":
    key = jax.random.PRNGKey(0)
    kx, kp = jax.random.split(key)

    # 32x32 input so the three stride-2 stages give 4x4 before AvgPool2d(4).
    # batch=16 with TB=8 -> grid=(2,): even grid for v7x's two TensorCores.
    batch, in_planes, num_classes, tb = 16, 8, 10, 8
    x = jax.random.normal(kx, (batch, 3, 32, 32), jnp.float32)   # NCHW, as in PyTorch

    params = init_cresnet7(kp, in_planes=in_planes, num_classes=num_classes, tb=tb)

    logits = jax.block_until_ready(cresnet7_forward(x, params))
    assert logits.shape == (batch, num_classes), logits.shape
    assert bool(jnp.all(jnp.isfinite(logits)))

    # Correctness check against a pure-f32 JAX reference built from the same
    # BN-folded weights (tolerance covers bf16 weight/activation quantization).
    ref_logits = _ref_forward(x, params['ref'])
    err = float(jnp.max(jnp.abs(logits - ref_logits)))
    scale = float(jnp.max(jnp.abs(ref_logits)))
    assert err <= 0.05 * scale + 0.25, (err, scale)

    print("KERNEL_OK")
</pallas_src>

<mosaic_0001>
module attributes {stable_mosaic.version = 11 : i64} {
  func.func @kernel(%arg0: i32, %arg1: memref<128x288xf32, #tpu.memory_space<vmem>>, %arg2: memref<3176x128xbf16, #tpu.memory_space<vmem>>, %arg3: memref<16x128xf32, #tpu.memory_space<vmem>>, %arg4: memref<8x128xf32, #tpu.memory_space<vmem>>) attributes {dimension_semantics = [#tpu.dimension_semantics<parallel>], iteration_bounds = array<i64: 2>, scalar_prefetch = 0 : i64, scratch_operands = 0 : i64, tpu.core_type = #tpu.core_type<tc>, window_params = [{transform_indices = @transform_0, window_bounds = array<i64: 128, 288>}, {pipeline_mode = #tpu.pipeline_mode<synchronous>, transform_indices = @transform_1, window_bounds = array<i64: 3176, 128>}, {pipeline_mode = #tpu.pipeline_mode<synchronous>, transform_indices = @transform_2, window_bounds = array<i64: 16, 128>}, {transform_indices = @transform_3, window_bounds = array<i64: 8, 128>}]} {
    %c0 = arith.constant 0 : index
    %c0_0 = arith.constant 0 : index
    %0 = vector.load %arg1[%c0, %c0_0] : memref<128x288xf32, #tpu.memory_space<vmem>>, vector<128x288xf32>
    %1 = arith.truncf %0 : vector<128x288xf32> to vector<128x288xbf16>
    %c0_1 = arith.constant 0 : index
    %c0_2 = arith.constant 0 : index
    %2 = vector.load %arg2[%c0_1, %c0_2] : memref<3176x128xbf16, #tpu.memory_space<vmem>>, vector<288x128xbf16>
    %cst = arith.constant dense<0.000000e+00> : vector<128x128xf32>
    %3 = tpu.matmul %1, %2, %cst {dimension_numbers = #tpu.dot_dimension_numbers<[1], [0], [0], [1], [0, 0, 1, 1], [], []>} : vector<128x288xbf16>, vector<288x128xbf16>, vector<128x128xf32> -> vector<128x128xf32>
    %c0_3 = arith.constant 0 : index
    %c0_4 = arith.constant 0 : index
    %4 = vector.load %arg3[%c0_3, %c0_4] : memref<16x128xf32, #tpu.memory_space<vmem>>, vector<1x128xf32>
    %5 = vector.broadcast %4 : vector<1x128xf32> to vector<128x128xf32>
    %6 = arith.addf %3, %5 : vector<128x128xf32>
    %cst_5 = arith.constant 0.000000e+00 : f32
    %7 = vector.broadcast %cst_5 : f32 to vector<128x128xf32>
    %8 = arith.maximumf %6, %7 : vector<128x128xf32>
    %9 = arith.truncf %8 : vector<128x128xf32> to vector<128x128xbf16>
    %10 = vector.extract_strided_slice %9 {offsets = [0, 0], sizes = [64, 128], strides = [1, 1]} : vector<128x128xbf16> to vector<64x128xbf16>
    %11 = vector.extract_strided_slice %9 {offsets = [64, 0], sizes = [64, 128], strides = [1, 1]} : vector<128x128xbf16> to vector<64x128xbf16>
    %cst_6 = arith.constant 0.000000e+00 : bf16
    %12 = vector.broadcast %cst_6 : bf16 to vector<1x128xbf16>
    %13 = vector.extract_strided_slice %11 {offsets = [0, 0], sizes = [63, 128], strides = [1, 1]} : vector<64x128xbf16> to vector<63x128xbf16>
    %14 = tpu.concatenate %12, %13 in 0 : vector<1x128xbf16>, vector<63x128xbf16> -> vector<64x128xbf16>
    %15 = tpu.iota {dimensions = array<i32: 0>} : vector<64x1xi32>
    %c7_i32 = arith.constant 7 : i32
    %16 = vector.broadcast %c7_i32 : i32 to vector<64x1xi32>
    %17 = arith.andi %15, %16 : vector<64x1xi32>
    %c0_i32 = arith.constant 0 : i32
    %18 = vector.broadcast %c0_i32 : i32 to vector<64x1xi32>
    %19 = arith.cmpi ne, %17, %18 : vector<64x1xi32>
    %20 = arith.extui %19 : vector<64x1xi1> to vector<64x1xi32>
    %21 = arith.sitofp %20 : vector<64x1xi32> to vector<64x1xf32>
    %22 = arith.truncf %21 : vector<64x1xf32> to vector<64x1xbf16>
    %23 = vector.broadcast %22 : vector<64x1xbf16> to vector<64x128xbf16>
    %24 = arith.mulf %14, %23 : vector<64x128xbf16>
    %25 = tpu.concatenate %24, %10, %11 in 1 : vector<64x128xbf16>, vector<64x128xbf16>, vector<64x128xbf16> -> vector<64x384xbf16>
    %c288 = arith.constant 288 : index
    %c0_7 = arith.constant 0 : index
    %26 = vector.load %arg2[%c288, %c0_7] : memref<3176x128xbf16, #tpu.memory_space<vmem>>, vector<384x128xbf16>
    %cst_8 = arith.constant dense<0.000000e+00> : vector<64x128xf32>
    %27 = tpu.matmul %25, %26, %cst_8 {dimension_numbers = #tpu.dot_dimension_numbers<[1], [0], [0], [1], [0, 0, 1, 1], [], []>} : vector<64x384xbf16>, vector<384x128xbf16>, vector<64x128xf32> -> vector<64x128xf32>
    %c1 = arith.constant 1 : index
    %c0_9 = arith.constant 0 : index
    %28 = vector.load %arg3[%c1, %c0_9] : memref<16x128xf32, #tpu.memory_space<vmem>>, vector<1x128xf32>
    %29 = vector.broadcast %28 : vector<1x128xf32> to vector<64x128xf32>
    %30 = arith.addf %27, %29 : vector<64x128xf32>
    %cst_10 = arith.constant 0.000000e+00 : f32
    %31 = vector.broadcast %cst_10 : f32 to vector<64x128xf32>
    %32 = arith.maximumf %30, %31 : vector<64x128xf32>
    %33 = arith.truncf %32 : vector<64x128xf32> to vector<64x128xbf16>
    %c672 = arith.constant 672 : index
    %c0_11 = arith.constant 0 : index
    %34 = vector.load %arg2[%c672, %c0_11] : memref<3176x128xbf16, #tpu.memory_space<vmem>>, vector<128x128xbf16>
    %cst_12 = arith.constant dense<0.000000e+00> : vector<64x128xf32>
    %35 = tpu.matmul %10, %34, %cst_12 {dimension_numbers = #tpu.dot_dimension_numbers<[1], [0], [0], [1], [0, 0, 1, 1], [], []>} : vector<64x128xbf16>, vector<128x128xbf16>, vector<64x128xf32> -> vector<64x128xf32>
    %c2 = arith.constant 2 : index
    %c0_13 = arith.constant 0 : index
    %36 = vector.load %arg3[%c2, %c0_13] : memref<16x128xf32, #tpu.memory_space<vmem>>, vector<1x128xf32>
    %37 = vector.broadcast %36 : vector<1x128xf32> to vector<64x128xf32>
    %38 = arith.addf %35, %37 : vector<64x128xf32>
    %cst_14 = arith.constant 0.000000e+00 : bf16
    %39 = vector.broadcast %cst_14 : bf16 to vector<1x128xbf16>
    %40 = vector.extract_strided_slice %33 {offsets = [0, 0], sizes = [63, 128], strides = [1, 1]} : vector<64x128xbf16> to vector<63x128xbf16>
    %41 = tpu.concatenate %39, %40 in 0 : vector<1x128xbf16>, vector<63x128xbf16> -> vector<64x128xbf16>
    %42 = tpu.iota {dimensions = array<i32: 0>} : vector<64x1xi32>
    %c7_i32_15 = arith.constant 7 : i32
    %43 = vector.broadcast %c7_i32_15 : i32 to vector<64x1xi32>
    %44 = arith.andi %42, %43 : vector<64x1xi32>
    %c0_i32_16 = arith.constant 0 : i32
    %45 = vector.broadcast %c0_i32_16 : i32 to vector<64x1xi32>
    %46 = arith.cmpi ne, %44, %45 : vector<64x1xi32>
    %47 = arith.extui %46 : vector<64x1xi1> to vector<64x1xi32>
    %48 = arith.sitofp %47 : vector<64x1xi32> to vector<64x1xf32>
    %49 = arith.truncf %48 : vector<64x1xf32> to vector<64x1xbf16>
    %50 = vector.broadcast %49 : vector<64x1xbf16> to vector<64x128xbf16>
    %51 = arith.mulf %41, %50 : vector<64x128xbf16>
    %52 = vector.extract_strided_slice %33 {offsets = [1, 0], sizes = [63, 128], strides = [1, 1]} : vector<64x128xbf16> to vector<63x128xbf16>
    %cst_17 = arith.constant 0.000000e+00 : bf16
    %53 = vector.broadcast %cst_17 : bf16 to vector<1x128xbf16>
    %54 = tpu.concatenate %52, %53 in 0 : vector<63x128xbf16>, vector<1x128xbf16> -> vector<64x128xbf16>
    %55 = tpu.iota {dimensions = array<i32: 0>} : vector<64x1xi32>
    %c7_i32_18 = arith.constant 7 : i32
    %56 = vector.broadcast %c7_i32_18 : i32 to vector<64x1xi32>
    %57 = arith.andi %55, %56 : vector<64x1xi32>
    %c7_i32_19 = arith.constant 7 : i32
    %58 = vector.broadcast %c7_i32_19 : i32 to vector<64x1xi32>
    %59 = arith.cmpi ne, %57, %58 : vector<64x1xi32>
    %60 = arith.extui %59 : vector<64x1xi1> to vector<64x1xi32>
    %61 = arith.sitofp %60 : vector<64x1xi32> to vector<64x1xf32>
    %62 = arith.truncf %61 : vector<64x1xf32> to vector<64x1xbf16>
    %63 = vector.broadcast %62 : vector<64x1xbf16> to vector<64x128xbf16>
    %64 = arith.mulf %54, %63 : vector<64x128xbf16>
    %65 = tpu.concatenate %51, %33, %64 in 1 : vector<64x128xbf16>, vector<64x128xbf16>, vector<64x128xbf16> -> vector<64x384xbf16>
    %c800 = arith.constant 800 : index
    %c0_20 = arith.constant 0 : index
    %66 = vector.load %arg2[%c800, %c0_20] : memref<3176x128xbf16, #tpu.memory_space<vmem>>, vector<384x128xbf16>
    %cst_21 = arith.constant dense<0.000000e+00> : vector<64x128xf32>
    %67 = tpu.matmul %65, %66, %cst_21 {dimension_numbers = #tpu.dot_dimension_numbers<[1], [0], [0], [1], [0, 0, 1, 1], [], []>} : vector<64x384xbf16>, vector<384x128xbf16>, vector<64x128xf32> -> vector<64x128xf32>
    %c3 = arith.constant 3 : index
    %c0_22 = arith.constant 0 : index
    %68 = vector.load %arg3[%c3, %c0_22] : memref<16x128xf32, #tpu.memory_space<vmem>>, vector<1x128xf32>
    %69 = vector.broadcast %68 : vector<1x128xf32> to vector<64x128xf32>
    %70 = arith.addf %67, %69 : vector<64x128xf32>
    %71 = arith.addf %70, %38 : vector<64x128xf32>
    %cst_23 = arith.constant 0.000000e+00 : f32
    %72 = vector.broadcast %cst_23 : f32 to vector<64x128xf32>
    %73 = arith.maximumf %71, %72 : vector<64x128xf32>
    %74 = arith.truncf %73 : vector<64x128xf32> to vector<64x128xbf16>
    %cst_24 = arith.constant 0.000000e+00 : bf16
    %75 = vector.broadcast %cst_24 : bf16 to vector<1x128xbf16>
    %76 = vector.extract_strided_slice %74 {offsets = [0, 0], sizes = [63, 128], strides = [1, 1]} : vector<64x128xbf16> to vector<63x128xbf16>
    %77 = tpu.concatenate %75, %76 in 0 : vector<1x128xbf16>, vector<63x128xbf16> -> vector<64x128xbf16>
    %78 = tpu.iota {dimensions = array<i32: 0>} : vector<64x1xi32>
    %c7_i32_25 = arith.constant 7 : i32
    %79 = vector.broadcast %c7_i32_25 : i32 to vector<64x1xi32>
    %80 = arith.andi %78, %79 : vector<64x1xi32>
    %c0_i32_26 = arith.constant 0 : i32
    %81 = vector.broadcast %c0_i32_26 : i32 to vector<64x1xi32>
    %82 = arith.cmpi ne, %80, %81 : vector<64x1xi32>
    %83 = arith.extui %82 : vector<64x1xi1> to vector<64x1xi32>
    %84 = arith.sitofp %83 : vector<64x1xi32> to vector<64x1xf32>
    %85 = arith.truncf %84 : vector<64x1xf32> to vector<64x1xbf16>
    %86 = vector.broadcast %85 : vector<64x1xbf16> to vector<64x128xbf16>
    %87 = arith.mulf %77, %86 : vector<64x128xbf16>
    %88 = vector.extract_strided_slice %74 {offsets = [1, 0], sizes = [63, 128], strides = [1, 1]} : vector<64x128xbf16> to vector<63x128xbf16>
    %cst_27 = arith.constant 0.000000e+00 : bf16
    %89 = vector.broadcast %cst_27 : bf16 to vector<1x128xbf16>
    %90 = tpu.concatenate %88, %89 in 0 : vector<63x128xbf16>, vector<1x128xbf16> -> vector<64x128xbf16>
    %91 = tpu.iota {dimensions = array<i32: 0>} : vector<64x1xi32>
    %c7_i32_28 = arith.constant 7 : i32
    %92 = vector.broadcast %c7_i32_28 : i32 to vector<64x1xi32>
    %93 = arith.andi %91, %92 : vector<64x1xi32>
    %c7_i32_29 = arith.constant 7 : i32
    %94 = vector.broadcast %c7_i32_29 : i32 to vector<64x1xi32>
    %95 = arith.cmpi ne, %93, %94 : vector<64x1xi32>
    %96 = arith.extui %95 : vector<64x1xi1> to vector<64x1xi32>
    %97 = arith.sitofp %96 : vector<64x1xi32> to vector<64x1xf32>
    %98 = arith.truncf %97 : vector<64x1xf32> to vector<64x1xbf16>
    %99 = vector.broadcast %98 : vector<64x1xbf16> to vector<64x128xbf16>
    %100 = arith.mulf %90, %99 : vector<64x128xbf16>
    %101 = tpu.concatenate %87, %74, %100 in 1 : vector<64x128xbf16>, vector<64x128xbf16>, vector<64x128xbf16> -> vector<64x384xbf16>
    %c1184 = arith.constant 1184 : index
    %c0_30 = arith.constant 0 : index
    %102 = vector.load %arg2[%c1184, %c0_30] : memref<3176x128xbf16, #tpu.memory_space<vmem>>, vector<384x128xbf16>
    %cst_31 = arith.constant dense<0.000000e+00> : vector<64x128xf32>
    %103 = tpu.matmul %101, %102, %cst_31 {dimension_numbers = #tpu.dot_dimension_numbers<[1], [0], [0], [1], [0, 0, 1, 1], [], []>} : vector<64x384xbf16>, vector<384x128xbf16>, vector<64x128xf32> -> vector<64x128xf32>
    %c4 = arith.constant 4 : index
    %c0_32 = arith.constant 0 : index
    %104 = vector.load %arg3[%c4, %c0_32] : memref<16x128xf32, #tpu.memory_space<vmem>>, vector<1x128xf32>
    %105 = vector.broadcast %104 : vector<1x128xf32> to vector<64x128xf32>
    %106 = arith.addf %103, %105 : vector<64x128xf32>
    %cst_33 = arith.constant 0.000000e+00 : f32
    %107 = vector.broadcast %cst_33 : f32 to vector<64x128xf32>
    %108 = arith.maximumf %106, %107 : vector<64x128xf32>
    %109 = arith.truncf %108 : vector<64x128xf32> to vector<64x128xbf16>
    %cst_34 = arith.constant 0.000000e+00 : bf16
    %110 = vector.broadcast %cst_34 : bf16 to vector<1x128xbf16>
    %111 = vector.extract_strided_slice %109 {offsets = [0, 0], sizes = [63, 128], strides = [1, 1]} : vector<64x128xbf16> to vector<63x128xbf16>
    %112 = tpu.concatenate %110, %111 in 0 : vector<1x128xbf16>, vector<63x128xbf16> -> vector<64x128xbf16>
    %113 = tpu.iota {dimensions = array<i32: 0>} : vector<64x1xi32>
    %c7_i32_35 = arith.constant 7 : i32
    %114 = vector.broadcast %c7_i32_35 : i32 to vector<64x1xi32>
    %115 = arith.andi %113, %114 : vector<64x1xi32>
    %c0_i32_36 = arith.constant 0 : i32
    %116 = vector.broadcast %c0_i32_36 : i32 to vector<64x1xi32>
    %117 = arith.cmpi ne, %115, %116 : vector<64x1xi32>
    %118 = arith.extui %117 : vector<64x1xi1> to vector<64x1xi32>
    %119 = arith.sitofp %118 : vector<64x1xi32> to vector<64x1xf32>
    %120 = arith.truncf %119 : vector<64x1xf32> to vector<64x1xbf16>
    %121 = vector.broadcast %120 : vector<64x1xbf16> to vector<64x128xbf16>
    %122 = arith.mulf %112, %121 : vector<64x128xbf16>
    %123 = vector.extract_strided_slice %109 {offsets = [1, 0], sizes = [63, 128], strides = [1, 1]} : vector<64x128xbf16> to vector<63x128xbf16>
    %cst_37 = arith.constant 0.000000e+00 : bf16
    %124 = vector.broadcast %cst_37 : bf16 to vector<1x128xbf16>
    %125 = tpu.concatenate %123, %124 in 0 : vector<63x128xbf16>, vector<1x128xbf16> -> vector<64x128xbf16>
    %126 = tpu.iota {dimensions = array<i32: 0>} : vector<64x1xi32>
    %c7_i32_38 = arith.constant 7 : i32
    %127 = vector.broadcast %c7_i32_38 : i32 to vector<64x1xi32>
    %128 = arith.andi %126, %127 : vector<64x1xi32>
    %c7_i32_39 = arith.constant 7 : i32
    %129 = vector.broadcast %c7_i32_39 : i32 to vector<64x1xi32>
    %130 = arith.cmpi ne, %128, %129 : vector<64x1xi32>
    %131 = arith.extui %130 : vector<64x1xi1> to vector<64x1xi32>
    %132 = arith.sitofp %131 : vector<64x1xi32> to vector<64x1xf32>
    %133 = arith.truncf %132 : vector<64x1xf32> to vector<64x1xbf16>
    %134 = vector.broadcast %133 : vector<64x1xbf16> to vector<64x128xbf16>
    %135 = arith.mulf %125, %134 : vector<64x128xbf16>
    %136 = tpu.concatenate %122, %109, %135 in 1 : vector<64x128xbf16>, vector<64x128xbf16>, vector<64x128xbf16> -> vector<64x384xbf16>
    %c1568 = arith.constant 1568 : index
    %c0_40 = arith.constant 0 : index
    %137 = vector.load %arg2[%c1568, %c0_40] : memref<3176x128xbf16, #tpu.memory_space<vmem>>, vector<384x128xbf16>
    %cst_41 = arith.constant dense<0.000000e+00> : vector<64x128xf32>
    %138 = tpu.matmul %136, %137, %cst_41 {dimension_numbers = #tpu.dot_dimension_numbers<[1], [0], [0], [1], [0, 0, 1, 1], [], []>} : vector<64x384xbf16>, vector<384x128xbf16>, vector<64x128xf32> -> vector<64x128xf32>
    %c5 = arith.constant 5 : index
    %c0_42 = arith.constant 0 : index
    %139 = vector.load %arg3[%c5, %c0_42] : memref<16x128xf32, #tpu.memory_space<vmem>>, vector<1x128xf32>
    %140 = vector.broadcast %139 : vector<1x128xf32> to vector<64x128xf32>
    %141 = arith.addf %138, %140 : vector<64x128xf32>
    %142 = arith.addf %141, %73 : vector<64x128xf32>
    %cst_43 = arith.constant 0.000000e+00 : f32
    %143 = vector.broadcast %cst_43 : f32 to vector<64x128xf32>
    %144 = arith.maximumf %142, %143 : vector<64x128xf32>
    %c1952 = arith.constant 1952 : index
    %c0_44 = arith.constant 0 : index
    %145 = vector.load %arg2[%c1952, %c0_44] : memref<3176x128xbf16, #tpu.memory_space<vmem>>, vector<64x64xbf16>
    %146 = arith.truncf %144 : vector<64x128xf32> to vector<64x128xbf16>
    %cst_45 = arith.constant dense<0.000000e+00> : vector<64x128xf32>
    %147 = tpu.matmul %145, %146, %cst_45 {dimension_numbers = #tpu.dot_dimension_numbers<[1], [0], [0], [1], [0, 0, 1, 1], [], []>} : vector<64x64xbf16>, vector<64x128xbf16>, vector<64x128xf32> -> vector<64x128xf32>
    %148 = arith.truncf %147 : vector<64x128xf32> to vector<64x128xbf16>
    %149 = vector.extract_strided_slice %148 {offsets = [0, 0], sizes = [32, 128], strides = [1, 1]} : vector<64x128xbf16> to vector<32x128xbf16>
    %150 = vector.extract_strided_slice %148 {offsets = [32, 0], sizes = [32, 128], strides = [1, 1]} : vector<64x128xbf16> to vector<32x128xbf16>
    %cst_46 = arith.constant 0.000000e+00 : bf16
    %151 = vector.broadcast %cst_46 : bf16 to vector<1x128xbf16>
    %152 = vector.extract_strided_slice %150 {offsets = [0, 0], sizes = [31, 128], strides = [1, 1]} : vector<32x128xbf16> to vector<31x128xbf16>
    %153 = tpu.concatenate %151, %152 in 0 : vector<1x128xbf16>, vector<31x128xbf16> -> vector<32x128xbf16>
    %154 = tpu.iota {dimensions = array<i32: 0>} : vector<32x1xi32>
    %c3_i32 = arith.constant 3 : i32
    %155 = vector.broadcast %c3_i32 : i32 to vector<32x1xi32>
    %156 = arith.andi %154, %155 : vector<32x1xi32>
    %c0_i32_47 = arith.constant 0 : i32
    %157 = vector.broadcast %c0_i32_47 : i32 to vector<32x1xi32>
    %158 = arith.cmpi ne, %156, %157 : vector<32x1xi32>
    %159 = arith.extui %158 : vector<32x1xi1> to vector<32x1xi32>
    %160 = arith.sitofp %159 : vector<32x1xi32> to vector<32x1xf32>
    %161 = arith.truncf %160 : vector<32x1xf32> to vector<32x1xbf16>
    %162 = vector.broadcast %161 : vector<32x1xbf16> to vector<32x128xbf16>
    %163 = arith.mulf %153, %162 : vector<32x128xbf16>
    %164 = tpu.concatenate %163, %149, %150 in 1 : vector<32x128xbf16>, vector<32x128xbf16>, vector<32x128xbf16> -> vector<32x384xbf16>
    %c2016 = arith.constant 2016 : index
    %c0_48 = arith.constant 0 : index
    %165 = vector.load %arg2[%c2016, %c0_48] : memref<3176x128xbf16, #tpu.memory_space<vmem>>, vector<384x64xbf16>
    %cst_49 = arith.constant dense<0.000000e+00> : vector<32x64xf32>
    %166 = tpu.matmul %164, %165, %cst_49 {dimension_numbers = #tpu.dot_dimension_numbers<[1], [0], [0], [1], [0, 0, 1, 1], [], []>} : vector<32x384xbf16>, vector<384x64xbf16>, vector<32x64xf32> -> vector<32x64xf32>
    %c6 = arith.constant 6 : index
    %c0_50 = arith.constant 0 : index
    %167 = vector.load %arg3[%c6, %c0_50] : memref<16x128xf32, #tpu.memory_space<vmem>>, vector<1x64xf32>
    %168 = vector.broadcast %167 : vector<1x64xf32> to vector<32x64xf32>
    %169 = arith.addf %166, %168 : vector<32x64xf32>
    %cst_51 = arith.constant 0.000000e+00 : f32
    %170 = vector.broadcast %cst_51 : f32 to vector<32x64xf32>
    %171 = arith.maximumf %169, %170 : vector<32x64xf32>
    %172 = arith.truncf %171 : vector<32x64xf32> to vector<32x64xbf16>
    %c2400 = arith.constant 2400 : index
    %c0_52 = arith.constant 0 : index
    %173 = vector.load %arg2[%c2400, %c0_52] : memref<3176x128xbf16, #tpu.memory_space<vmem>>, vector<128x64xbf16>
    %cst_53 = arith.constant dense<0.000000e+00> : vector<32x64xf32>
    %174 = tpu.matmul %149, %173, %cst_53 {dimension_numbers = #tpu.dot_dimension_numbers<[1], [0], [0], [1], [0, 0, 1, 1], [], []>} : vector<32x128xbf16>, vector<128x64xbf16>, vector<32x64xf32> -> vector<32x64xf32>
    %c7 = arith.constant 7 : index
    %c0_54 = arith.constant 0 : index
    %175 = vector.load %arg3[%c7, %c0_54] : memref<16x128xf32, #tpu.memory_space<vmem>>, vector<1x64xf32>
    %176 = vector.broadcast %175 : vector<1x64xf32> to vector<32x64xf32>
    %177 = arith.addf %174, %176 : vector<32x64xf32>
    %cst_55 = arith.constant 0.000000e+00 : bf16
    %178 = vector.broadcast %cst_55 : bf16 to vector<1x64xbf16>
    %179 = vector.extract_strided_slice %172 {offsets = [0, 0], sizes = [31, 64], strides = [1, 1]} : vector<32x64xbf16> to vector<31x64xbf16>
    %180 = tpu.concatenate %178, %179 in 0 : vector<1x64xbf16>, vector<31x64xbf16> -> vector<32x64xbf16>
    %181 = tpu.iota {dimensions = array<i32: 0>} : vector<32x1xi32>
    %c3_i32_56 = arith.constant 3 : i32
    %182 = vector.broadcast %c3_i32_56 : i32 to vector<32x1xi32>
    %183 = arith.andi %181, %182 : vector<32x1xi32>
    %c0_i32_57 = arith.constant 0 : i32
    %184 = vector.broadcast %c0_i32_57 : i32 to vector<32x1xi32>
    %185 = arith.cmpi ne, %183, %184 : vector<32x1xi32>
    %186 = arith.extui %185 : vector<32x1xi1> to vector<32x1xi32>
    %187 = arith.sitofp %186 : vector<32x1xi32> to vector<32x1xf32>
    %188 = arith.truncf %187 : vector<32x1xf32> to vector<32x1xbf16>
    %189 = vector.broadcast %188 : vector<32x1xbf16> to vector<32x64xbf16>
    %190 = arith.mulf %180, %189 : vector<32x64xbf16>
    %191 = vector.extract_strided_slice %172 {offsets = [1, 0], sizes = [31, 64], strides = [1, 1]} : vector<32x64xbf16> to vector<31x64xbf16>
    %cst_58 = arith.constant 0.000000e+00 : bf16
    %192 = vector.broadcast %cst_58 : bf16 to vector<1x64xbf16>
    %193 = tpu.concatenate %191, %192 in 0 : vector<31x64xbf16>, vector<1x64xbf16> -> vector<32x64xbf16>
    %194 = tpu.iota {dimensions = array<i32: 0>} : vector<32x1xi32>
    %c3_i32_59 = arith.constant 3 : i32
    %195 = vector.broadcast %c3_i32_59 : i32 to vector<32x1xi32>
    %196 = arith.andi %194, %195 : vector<32x1xi32>
    %c3_i32_60 = arith.constant 3 : i32
    %197 = vector.broadcast %c3_i32_60 : i32 to vector<32x1xi32>
    %198 = arith.cmpi ne, %196, %197 : vector<32x1xi32>
    %199 = arith.extui %198 : vector<32x1xi1> to vector<32x1xi32>
    %200 = arith.sitofp %199 : vector<32x1xi32> to vector<32x1xf32>
    %201 = arith.truncf %200 : vector<32x1xf32> to vector<32x1xbf16>
    %202 = vector.broadcast %201 : vector<32x1xbf16> to vector<32x64xbf16>
    %203 = arith.mulf %193, %202 : vector<32x64xbf16>
    %204 = tpu.concatenate %190, %172, %203 in 1 : vector<32x64xbf16>, vector<32x64xbf16>, vector<32x64xbf16> -> vector<32x192xbf16>
    %c2528 = arith.constant 2528 : index
    %c0_61 = arith.constant 0 : index
    %205 = vector.load %arg2[%c2528, %c0_61] : memref<3176x128xbf16, #tpu.memory_space<vmem>>, vector<192x64xbf16>
    %cst_62 = arith.constant dense<0.000000e+00> : vector<32x64xf32>
    %206 = tpu.matmul %204, %205, %cst_62 {dimension_numbers = #tpu.dot_dimension_numbers<[1], [0], [0], [1], [0, 0, 1, 1], [], []>} : vector<32x192xbf16>, vector<192x64xbf16>, vector<32x64xf32> -> vector<32x64xf32>
    %c8 = arith.constant 8 : index
    %c0_63 = arith.constant 0 : index
    %207 = vector.load %arg3[%c8, %c0_63] : memref<16x128xf32, #tpu.memory_space<vmem>>, vector<1x64xf32>
    %208 = vector.broadcast %207 : vector<1x64xf32> to vector<32x64xf32>
    %209 = arith.addf %206, %208 : vector<32x64xf32>
    %210 = arith.addf %209, %177 : vector<32x64xf32>
    %cst_64 = arith.constant 0.000000e+00 : f32
    %211 = vector.broadcast %cst_64 : f32 to vector<32x64xf32>
    %212 = arith.maximumf %210, %211 : vector<32x64xf32>
    %213 = arith.truncf %212 : vector<32x64xf32> to vector<32x64xbf16>
    %cst_65 = arith.constant 0.000000e+00 : bf16
    %214 = vector.broadcast %cst_65 : bf16 to vector<1x64xbf16>
    %215 = vector.extract_strided_slice %213 {offsets = [0, 0], sizes = [31, 64], strides = [1, 1]} : vector<32x64xbf16> to vector<31x64xbf16>
    %216 = tpu.concatenate %214, %215 in 0 : vector<1x64xbf16>, vector<31x64xbf16> -> vector<32x64xbf16>
    %217 = tpu.iota {dimensions = array<i32: 0>} : vector<32x1xi32>
    %c3_i32_66 = arith.constant 3 : i32
    %218 = vector.broadcast %c3_i32_66 : i32 to vector<32x1xi32>
    %219 = arith.andi %217, %218 : vector<32x1xi32>
    %c0_i32_67 = arith.constant 0 : i32
    %220 = vector.broadcast %c0_i32_67 : i32 to vector<32x1xi32>
    %221 = arith.cmpi ne, %219, %220 : vector<32x1xi32>
    %222 = arith.extui %221 : vector<32x1xi1> to vector<32x1xi32>
    %223 = arith.sitofp %222 : vector<32x1xi32> to vector<32x1xf32>
    %224 = arith.truncf %223 : vector<32x1xf32> to vector<32x1xbf16>
    %225 = vector.broadcast %224 : vector<32x1xbf16> to vector<32x64xbf16>
    %226 = arith.mulf %216, %225 : vector<32x64xbf16>
    %227 = vector.extract_strided_slice %213 {offsets = [1, 0], sizes = [31, 64], strides = [1, 1]} : vector<32x64xbf16> to vector<31x64xbf16>
    %cst_68 = arith.constant 0.000000e+00 : bf16
    %228 = vector.broadcast %cst_68 : bf16 to vector<1x64xbf16>
    %229 = tpu.concatenate %227, %228 in 0 : vector<31x64xbf16>, vector<1x64xbf16> -> vector<32x64xbf16>
    %230 = tpu.iota {dimensions = array<i32: 0>} : vector<32x1xi32>
    %c3_i32_69 = arith.constant 3 : i32
    %231 = vector.broadcast %c3_i32_69 : i32 to vector<32x1xi32>
    %232 = arith.andi %230, %231 : vector<32x1xi32>
    %c3_i32_70 = arith.constant 3 : i32
    %233 = vector.broadcast %c3_i32_70 : i32 to vector<32x1xi32>
    %234 = arith.cmpi ne, %232, %233 : vector<32x1xi32>
    %235 = arith.extui %234 : vector<32x1xi1> to vector<32x1xi32>
    %236 = arith.sitofp %235 : vector<32x1xi32> to vector<32x1xf32>
    %237 = arith.truncf %236 : vector<32x1xf32> to vector<32x1xbf16>
    %238 = vector.broadcast %237 : vector<32x1xbf16> to vector<32x64xbf16>
    %239 = arith.mulf %229, %238 : vector<32x64xbf16>
    %240 = tpu.concatenate %226, %213, %239 in 1 : vector<32x64xbf16>, vector<32x64xbf16>, vector<32x64xbf16> -> vector<32x192xbf16>
    %c2720 = arith.constant 2720 : index
    %c0_71 = arith.constant 0 : index
    %241 = vector.load %arg2[%c2720, %c0_71] : memref<3176x128xbf16, #tpu.memory_space<vmem>>, vector<192x64xbf16>
    %cst_72 = arith.constant dense<0.000000e+00> : vector<32x64xf32>
    %242 = tpu.matmul %240, %241, %cst_72 {dimension_numbers = #tpu.dot_dimension_numbers<[1], [0], [0], [1], [0, 0, 1, 1], [], []>} : vector<32x192xbf16>, vector<192x64xbf16>, vector<32x64xf32> -> vector<32x64xf32>
    %c9 = arith.constant 9 : index
    %c0_73 = arith.constant 0 : index
    %243 = vector.load %arg3[%c9, %c0_73] : memref<16x128xf32, #tpu.memory_space<vmem>>, vector<1x64xf32>
    %244 = vector.broadcast %243 : vector<1x64xf32> to vector<32x64xf32>
    %245 = arith.addf %242, %244 : vector<32x64xf32>
    %cst_74 = arith.constant 0.000000e+00 : f32
    %246 = vector.broadcast %cst_74 : f32 to vector<32x64xf32>
    %247 = arith.maximumf %245, %246 : vector<32x64xf32>
    %248 = arith.truncf %247 : vector<32x64xf32> to vector<32x64xbf16>
    %cst_75 = arith.constant 0.000000e+00 : bf16
    %249 = vector.broadcast %cst_75 : bf16 to vector<1x64xbf16>
    %250 = vector.extract_strided_slice %248 {offsets = [0, 0], sizes = [31, 64], strides = [1, 1]} : vector<32x64xbf16> to vector<31x64xbf16>
    %251 = tpu.concatenate %249, %250 in 0 : vector<1x64xbf16>, vector<31x64xbf16> -> vector<32x64xbf16>
    %252 = tpu.iota {dimensions = array<i32: 0>} : vector<32x1xi32>
    %c3_i32_76 = arith.constant 3 : i32
    %253 = vector.broadcast %c3_i32_76 : i32 to vector<32x1xi32>
    %254 = arith.andi %252, %253 : vector<32x1xi32>
    %c0_i32_77 = arith.constant 0 : i32
    %255 = vector.broadcast %c0_i32_77 : i32 to vector<32x1xi32>
    %256 = arith.cmpi ne, %254, %255 : vector<32x1xi32>
    %257 = arith.extui %256 : vector<32x1xi1> to vector<32x1xi32>
    %258 = arith.sitofp %257 : vector<32x1xi32> to vector<32x1xf32>
    %259 = arith.truncf %258 : vector<32x1xf32> to vector<32x1xbf16>
    %260 = vector.broadcast %259 : vector<32x1xbf16> to vector<32x64xbf16>
    %261 = arith.mulf %251, %260 : vector<32x64xbf16>
    %262 = vector.extract_strided_slice %248 {offsets = [1, 0], sizes = [31, 64], strides = [1, 1]} : vector<32x64xbf16> to vector<31x64xbf16>
    %cst_78 = arith.constant 0.000000e+00 : bf16
    %263 = vector.broadcast %cst_78 : bf16 to vector<1x64xbf16>
    %264 = tpu.concatenate %262, %263 in 0 : vector<31x64xbf16>, vector<1x64xbf16> -> vector<32x64xbf16>
    %265 = tpu.iota {dimensions = array<i32: 0>} : vector<32x1xi32>
    %c3_i32_79 = arith.constant 3 : i32
    %266 = vector.broadcast %c3_i32_79 : i32 to vector<32x1xi32>
    %267 = arith.andi %265, %266 : vector<32x1xi32>
    %c3_i32_80 = arith.constant 3 : i32
    %268 = vector.broadcast %c3_i32_80 : i32 to vector<32x1xi32>
    %269 = arith.cmpi ne, %267, %268 : vector<32x1xi32>
    %270 = arith.extui %269 : vector<32x1xi1> to vector<32x1xi32>
    %271 = arith.sitofp %270 : vector<32x1xi32> to vector<32x1xf32>
    %272 = arith.truncf %271 : vector<32x1xf32> to vector<32x1xbf16>
    %273 = vector.broadcast %272 : vector<32x1xbf16> to vector<32x64xbf16>
    %274 = arith.mulf %264, %273 : vector<32x64xbf16>
    %275 = tpu.concatenate %261, %248, %274 in 1 : vector<32x64xbf16>, vector<32x64xbf16>, vector<32x64xbf16> -> vector<32x192xbf16>
    %c2912 = arith.constant 2912 : index
    %c0_81 = arith.constant 0 : index
    %276 = vector.load %arg2[%c2912, %c0_81] : memref<3176x128xbf16, #tpu.memory_space<vmem>>, vector<192x64xbf16>
    %cst_82 = arith.constant dense<0.000000e+00> : vector<32x64xf32>
    %277 = tpu.matmul %275, %276, %cst_82 {dimension_numbers = #tpu.dot_dimension_numbers<[1], [0], [0], [1], [0, 0, 1, 1], [], []>} : vector<32x192xbf16>, vector<192x64xbf16>, vector<32x64xf32> -> vector<32x64xf32>
    %c10 = arith.constant 10 : index
    %c0_83 = arith.constant 0 : index
    %278 = vector.load %arg3[%c10, %c0_83] : memref<16x128xf32, #tpu.memory_space<vmem>>, vector<1x64xf32>
    %279 = vector.broadcast %278 : vector<1x64xf32> to vector<32x64xf32>
    %280 = arith.addf %277, %279 : vector<32x64xf32>
    %281 = arith.addf %280, %212 : vector<32x64xf32>
    %cst_84 = arith.constant 0.000000e+00 : f32
    %282 = vector.broadcast %cst_84 : f32 to vector<32x64xf32>
    %283 = arith.maximumf %281, %282 : vector<32x64xf32>
    %284 = arith.truncf %283 : vector<32x64xf32> to vector<32x64xbf16>
    %c3104 = arith.constant 3104 : index
    %c0_85 = arith.constant 0 : index
    %285 = vector.load %arg2[%c3104, %c0_85] : memref<3176x128xbf16, #tpu.memory_space<vmem>>, vector<8x32xbf16>
    %cst_86 = arith.constant dense<0.000000e+00> : vector<8x64xf32>
    %286 = tpu.matmul %285, %284, %cst_86 {dimension_numbers = #tpu.dot_dimension_numbers<[1], [0], [0], [1], [0, 0, 1, 1], [], []>} : vector<8x32xbf16>, vector<32x64xbf16>, vector<8x64xf32> -> vector<8x64xf32>
    %287 = arith.truncf %286 : vector<8x64xf32> to vector<8x64xbf16>
    %c3112 = arith.constant 3112 : index
    %c0_87 = arith.constant 0 : index
    %288 = vector.load %arg2[%c3112, %c0_87] : memref<3176x128xbf16, #tpu.memory_space<vmem>>, vector<64x128xbf16>
    %cst_88 = arith.constant dense<0.000000e+00> : vector<8x128xf32>
    %289 = tpu.matmul %287, %288, %cst_88 {dimension_numbers = #tpu.dot_dimension_numbers<[1], [0], [0], [1], [0, 0, 1, 1], [], []>} : vector<8x64xbf16>, vector<64x128xbf16>, vector<8x128xf32> -> vector<8x128xf32>
    %c11 = arith.constant 11 : index
    %c0_89 = arith.constant 0 : index
    %290 = vector.load %arg3[%c11, %c0_89] : memref<16x128xf32, #tpu.memory_space<vmem>>, vector<1x128xf32>
    %291 = vector.broadcast %290 : vector<1x128xf32> to vector<8x128xf32>
    %292 = arith.addf %289, %291 : vector<8x128xf32>
    %c0_90 = arith.constant 0 : index
    %c0_91 = arith.constant 0 : index
    %293 = vector.load %arg4[%c0_90, %c0_91] : memref<8x128xf32, #tpu.memory_space<vmem>>, vector<8x128xf32>
    tpu.vector_store %arg4[%c0_90, %c0_91], %292 {strides = array<i32>} : memref<8x128xf32, #tpu.memory_space<vmem>>, vector<8x128xf32>,
    return
  }
  func.func @transform_0(%arg0: i32) -> (i32, i32) {
    %c0_i32 = arith.constant 0 : i32
    %c0_i32_0 = arith.constant 0 : i32
    return %arg0, %c0_i32 : i32, i32
  }
  func.func @transform_1(%arg0: i32) -> (i32, i32) {
    %c0_i32 = arith.constant 0 : i32
    %c0_i32_0 = arith.constant 0 : i32
    %c0_i32_1 = arith.constant 0 : i32
    return %c0_i32, %c0_i32_0 : i32, i32
  }
  func.func @transform_2(%arg0: i32) -> (i32, i32) {
    %c0_i32 = arith.constant 0 : i32
    %c0_i32_0 = arith.constant 0 : i32
    %c0_i32_1 = arith.constant 0 : i32
    return %c0_i32, %c0_i32_0 : i32, i32
  }
  func.func @transform_3(%arg0: i32) -> (i32, i32) {
    %c0_i32 = arith.constant 0 : i32
    %c0_i32_0 = arith.constant 0 : i32
    return %arg0, %c0_i32 : i32, i32
  }
}

</mosaic_0001>

<llo_original>
// kernel: tpu_custom_call.1
$region0: #{tpu_custom_call.1}
  #allocation0 [shape = 'u32[]', space=smem, size = 0x4, offset = 0x4, fixed_abs, tag = 'smem constant byte address 0x4 - core index']
  #allocation1 [shape = 'u32[144,128]{1,0:T(1,128)}', space=vmem, size = 0x12000, scoped, tag = 'internal scratch']
  %s0 = inlined_call_operand.vmem [shape: f32[256,288], index: 0, kind: input, shape index: {}]
  %s1 = inlined_call_operand.hbm [shape: bf16[3176,128], index: 1, kind: input, shape index: {}]
  %s2 = inlined_call_operand.vmem [shape: f32[16,128], index: 2, kind: input, shape index: {}]
  %s3 = inlined_call_operand.hbm [shape: f32[16,128], index: 3, kind: output, shape index: {}]
  %s4 = sld [smem:[#allocation0]]
  $region49: #{tpu_custom_call.1} parent=0
    _
  %s6 = ssub.s32 1, %s4
  %s7 = scalar_select 0, %s6, %s4
  $region1: #{tpu_custom_call.1} parent=0
    #allocation2 [shape = 'u8[813056]{0}', space=vmem, size = 0xc6800, scoped, tag = 'input window, operand 1, single buffered']
    #allocation3 [shape = 's32[2]{0}', space=sflag, size = 0x8, scoped, tag = 'scoped memory for tpu_custom_call.1']
    #allocation4 [shape = 's32[2]{0}', space=sflag, size = 0x8, scoped, tag = 'scoped memory for tpu_custom_call.1']
    #allocation5 [shape = 'u8[8192]{0}', space=vmem, size = 0x2000, scoped, tag = 'output window, operand 0']
    %8 = vsyncpa [#allocation3], 0
    %9 = vsyncpa [#allocation4], 0
    %s10 = scalar_lea.sflag [#allocation4], 1
    %11 = vsyncpa %s10, 0
    loop: start=0, step=1, limit=4
    $region2: #{tpu_custom_call.1} parent=1 // loop_pre_header
      _
    $region3: #{tpu_custom_call.1} parent=1 // loop_header
      %s13 = sphi 0, %s17
      %p14 = scmp.ge.s32.totalorder %s13, 4
      %s23 = sphi 0, %s25
      %s26 = sphi 0, %s23
      %s27 = sphi 0, %s26
      %s43 = sphi 0, %s27
      %s47 = sphi 0, %s47
      %s49 = sphi 0, %s47
      %s50 = sphi 0, %s49
      %s64 = sphi 0, %s50
      %s68 = sphi 0, %s68
      %s70 = sphi 0, %s68
      %s71 = sphi 0, %s70
      %s85 = sphi 0, %s71
      %s91 = sphi 0, %s93
      %s94 = sphi 0, %s91
      %s95 = sphi 0, %s94
      %s111 = sphi 0, %s95
    $region4: #{tpu_custom_call.1} parent=1 // loop_header_branch
      %16 = sbr.rel (%p14) target = $region8
    $region5: #{tpu_custom_call.1} parent=1 // loop_body
      %s18 = ssub.s32 %s13, 1
      %s19 = ssub.s32 %s13, 2
      %s20 = sadd.s32 %s13, 1
      %s21 = ssub.s32 %s13, %s20
      %p22 = scmp.eq.s32.totalorder %s21, 0
      %s24 = sadd.s32 %s23, 1
      %s25 = scalar_select %p22, %s23, %s24
      %p28 = pneg %p22
      %p29 = scmp.eq.s32.totalorder %s13, 1
      %p30 = por %p28, %p29
      %p31 = scmp.ne.s32.totalorder %s23, %s26
      %p32 = scmp.eq.s32.totalorder %s13, 0
      %p33 = por %p31, %p32
      %p34 = scmp.ne.s32.totalorder %s23, %s26
      %p35 = scmp.eq.s32.totalorder %s18, 1
      %p36 = por %p34, %p35
      %p37 = scmp.ne.s32.totalorder %s26, %s27
      %p38 = scmp.eq.s32.totalorder %s18, 0
      %p39 = por %p37, %p38
      %p40 = scmp.ne.s32.totalorder %s26, %s27
      %p41 = scmp.eq.s32.totalorder %s19, 1
      %p42 = por %p40, %p41
      %p44 = scmp.ne.s32.totalorder %s27, %s43
      %p45 = scmp.eq.s32.totalorder %s19, 0
      %p46 = por %p44, %p45
      %s48 = sadd.s32 %s47, 1
      %p51 = scmp.eq.s32.totalorder %s13, 1
      %p52 = scmp.ne.s32.totalorder %s47, %s49
      %p53 = scmp.eq.s32.totalorder %s13, 0
      %p54 = por %p52, %p53
      %p55 = scmp.ne.s32.totalorder %s47, %s49
      %p56 = scmp.eq.s32.totalorder %s18, 1
      %p57 = por %p55, %p56
      %p58 = scmp.ne.s32.totalorder %s49, %s50
      %p59 = scmp.eq.s32.totalorder %s18, 0
      %p60 = por %p58, %p59
      %p61 = scmp.ne.s32.totalorder %s49, %s50
      %p62 = scmp.eq.s32.totalorder %s19, 1
      %p63 = por %p61, %p62
      %p65 = scmp.ne.s32.totalorder %s50, %s64
      %p66 = scmp.eq.s32.totalorder %s19, 0
      %p67 = por %p65, %p66
      %s69 = sadd.s32 %s68, 1
      %p72 = scmp.eq.s32.totalorder %s13, 1
      %p73 = scmp.ne.s32.totalorder %s68, %s70
      %p74 = scmp.eq.s32.totalorder %s13, 0
      %p75 = por %p73, %p74
      %p76 = scmp.ne.s32.totalorder %s68, %s70
      %p77 = scmp.eq.s32.totalorder %s18, 1
      %p78 = por %p76, %p77
      %p79 = scmp.ne.s32.totalorder %s70, %s71
      %p80 = scmp.eq.s32.totalorder %s18, 0
      %p81 = por %p79, %p80
      %p82 = scmp.ne.s32.totalorder %s70, %s71
      %p83 = scmp.eq.s32.totalorder %s19, 1
      %p84 = por %p82, %p83
      %p86 = scmp.ne.s32.totalorder %s71, %s85
      %p87 = scmp.eq.s32.totalorder %s19, 0
      %p88 = por %p86, %p87
      %s89 = ssub.s32 %s13, %s20
      %p90 = scmp.eq.s32.totalorder %s89, 0
      %s92 = sadd.s32 %s91, 1
      %s93 = scalar_select %p90, %s91, %s92
      %p96 = pneg %p90
      %p97 = scmp.eq.s32.totalorder %s13, 1
      %p98 = por %p96, %p97
      %p99 = scmp.ne.s32.totalorder %s91, %s94
      %p100 = scmp.eq.s32.totalorder %s13, 0
      %p101 = por %p99, %p100
      %p102 = scmp.ne.s32.totalorder %s91, %s94
      %p103 = scmp.eq.s32.totalorder %s18, 1
      %p104 = por %p102, %p103
      %p105 = scmp.ne.s32.totalorder %s94, %s95
      %p106 = scmp.eq.s32.totalorder %s18, 0
      %p107 = por %p105, %p106
      %p108 = scmp.ne.s32.totalorder %s94, %s95
      %p109 = scmp.eq.s32.totalorder %s19, 1
      %p110 = por %p108, %p109
      %p112 = scmp.ne.s32.totalorder %s95, %s111
      %p113 = scmp.eq.s32.totalorder %s19, 0
      %p114 = por %p112, %p113
      %p115 = scmp.le.s32.totalorder 1, %s13
      %p116 = scmp.lt.s32.totalorder %s13, 3
      %p117 = pnand %p115, %p116
      %p118 = pneg %p117
      // Predicated region
      $region9: #{tpu_custom_call.1} parent=5 // pred_check
        _
      $region10: #{tpu_custom_call.1} parent=5 // pred_check_branch
        %120 = sbr.rel (%p117) target = $region12
      $region11: #{tpu_custom_call.1} parent=5 // pred_region
        %s121 = ssub.s32 %s13, 1
        // Predicated region
        $region13: #{tpu_custom_call.1} parent=11 // pred_check
          %p122 = pneg %p60
        $region14: #{tpu_custom_call.1} parent=11 // pred_check_branch
          %124 = sbr.rel (%p122) target = $region16
        $region15: #{tpu_custom_call.1} parent=11 // pred_region
          %s126 = ssub.s32 25408, 25408
          %127 = vsyncadd [#allocation3], %s126
          %s128 = sshll.u32 [#allocation2], 4
          %s129 = int_to_ptr.vmem [resolvable:$true] %s128
          %134 = dma.hbm_to_vmem [thread:$0]  %s1, 25408, %s129, [#allocation3], 64, 64, 4
        $region16: #{tpu_custom_call.1} parent=11 // pred_fallthru
          _
        // Predicated region
        $region17: #{tpu_custom_call.1} parent=11 // pred_check
          %p135 = pneg %p81
        $region18: #{tpu_custom_call.1} parent=11 // pred_check_branch
          %137 = sbr.rel (%p135) target = $region20
        $region19: #{tpu_custom_call.1} parent=11 // pred_region
          _
        $region20: #{tpu_custom_call.1} parent=11 // pred_fallthru
          _
      $region12: #{tpu_custom_call.1} parent=5 // pred_fallthru
        _
      %p138 = scmp.lt.s32.totalorder %s13, 2
      // Predicated region
      $region21: #{tpu_custom_call.1} parent=5 // pred_check
        %p139 = pneg %p138
      $region22: #{tpu_custom_call.1} parent=5 // pred_check_branch
        %141 = sbr.rel (%p139) target = $region24
      $region23: #{tpu_custom_call.1} parent=5 // pred_region
        // Predicated region
        $region25: #{tpu_custom_call.1} parent=23 // pred_check
          %p142 = pneg %p33
        $region26: #{tpu_custom_call.1} parent=23 // pred_check_branch
          %144 = sbr.rel (%p142) target = $region28
        $region27: #{tpu_custom_call.1} parent=23 // pred_region
          %s145 = smul.u32 16, %s13
          %p146 = scmp.lt.s32.totalorder %s145, 31
          %s147 = scalar_select %p146, %s145, 31
          %s148 = smul.addr %s147, 3
          %s149 = smul.addr %s148, 8
          %s150 = scalar_lea.vmem %s0, %s149
          %s151 = smul.u32 16, %s13
        $region28: #{tpu_custom_call.1} parent=23 // pred_fallthru
          _
      $region24: #{tpu_custom_call.1} parent=5 // pred_fallthru
        _
      %p152 = scmp.le.s32.totalorder 1, %s13
      %p153 = scmp.lt.s32.totalorder %s13, 3
      %p154 = pnand %p152, %p153
      %p155 = pneg %p154
      // Predicated region
      $region29: #{tpu_custom_call.1} parent=5 // pred_check
        _
      $region30: #{tpu_custom_call.1} parent=5 // pred_check_branch
        %157 = sbr.rel (%p154) target = $region32
      $region31: #{tpu_custom_call.1} parent=5 // pred_region
        %s158 = ssub.s32 %s13, 1
        // Predicated region
        $region33: #{tpu_custom_call.1} parent=31 // pred_check
          %p159 = pneg %p60
        $region34: #{tpu_custom_call.1} parent=31 // pred_check_branch
          %161 = sbr.rel (%p159) target = $region36
        $region35: #{tpu_custom_call.1} parent=31 // pred_region
          %162 = dma.done [#allocation3], 25408
        $region36: #{tpu_custom_call.1} parent=31 // pred_fallthru
          _
        %s163 = smul.u32 16, %s18
        %p164 = scmp.lt.s32.totalorder %s163, 31
        %s165 = scalar_select %p164, %s163, 31
        %s166 = smul.addr %s165, 3
        %s167 = smul.addr %s166, 8
        %s168 = scalar_lea.vmem %s0, %s167
        %p169 = pneg %p39
        %p170 = pneg %p36
        %p171 = pneg %p60
        %p172 = pneg %p57
        %p173 = pneg %p81
        %p174 = pneg %p78
        %p175 = pneg %p107
        %p176 = pneg %p104
        %s177 = sand.u32 %s94, 1
        %s178 = scalar_lea.sflag [#allocation4], %s177
        %s179 = sand.u32 %s94, 1
        %s180 = smul.addr %s179, 8
        %s181 = scalar_lea.vmem [#allocation5], %s180
        %s182 = smul.u32 16, %s18
        %p183 = scmp.lt.s32.totalorder %s182, 31
        %s184 = scalar_select %p183, %s182, 31
        %s185 = smul.addr %s184, 3
        %s186 = smul.addr %s185, 8
        %s187 = scalar_lea.vmem %s0, %s186
        %s188 = smul.u32 16, %s18
        %v190 = vld [vmem:[%s187] sm:$0xff]
        %v191 = vld [vmem:[%s187 + $0x8] sm:$0xff]
        %v192 = vld [vmem:[%s187 + $0x10] sm:$0xff]
        %v193 = vld [vmem:[%s187 + $0x18] sm:$0xff]
        %v194 = vld [vmem:[%s187 + $0x20] sm:$0xff]
        %v195 = vld [vmem:[%s187 + $0x28] sm:$0xff]
        %v196 = vld [vmem:[%s187 + $0x30] sm:$0xff]
        %v197 = vld [vmem:[%s187 + $0x38] sm:$0xff]
        %v198 = vld [vmem:[%s187 + $0x40] sm:$0xff]
        %v199 = vld [vmem:[%s187 + $0x48] sm:$0xff]
        %v200 = vld [vmem:[%s187 + $0x50] sm:$0xff]
        %v201 = vld [vmem:[%s187 + $0x58] sm:$0xff]
        %v202 = vld [vmem:[%s187 + $0x60] sm:$0xff]
        %v203 = vld [vmem:[%s187 + $0x68] sm:$0xff]
        %v204 = vld [vmem:[%s187 + $0x70] sm:$0xff]
        %v205 = vld [vmem:[%s187 + $0x78] sm:$0xff]
        %v206 = vld [vmem:[%s187 + $0x80] sm:$0xff]
        %v207 = vld [vmem:[%s187 + $0x88] sm:$0xff]
        %v208 = vld [vmem:[%s187 + $0x90] sm:$0xff]
        %v209 = vld [vmem:[%s187 + $0x98] sm:$0xff]
        %v210 = vld [vmem:[%s187 + $0xa0] sm:$0xff]
        %v211 = vld [vmem:[%s187 + $0xa8] sm:$0xff]
        %v212 = vld [vmem:[%s187 + $0xb0] sm:$0xff]
        %v213 = vld [vmem:[%s187 + $0xb8] sm:$0xff]
        %v214 = vld [vmem:[%s187 + $0xc0] sm:$0xff]
        %v215 = vld [vmem:[%s187 + $0xc8] sm:$0xff]
        %v216 = vld [vmem:[%s187 + $0xd0] sm:$0xff]
        %v217 = vld [vmem:[%s187 + $0xd8] sm:$0xff]
        %v218 = vld [vmem:[%s187 + $0xe0] sm:$0xff]
        %v219 = vld [vmem:[%s187 + $0xe8] sm:$0xff]
        %v220 = vld [vmem:[%s187 + $0xf0] sm:$0xff]
        %v221 = vld [vmem:[%s187 + $0xf8] sm:$0xff]
        %v222 = vld [vmem:[%s187 + $0x100] sm:$0xff]
        %v223 = vld [vmem:[%s187 + $0x108] sm:$0xff]
        %v224 = vld [vmem:[%s187 + $0x110] sm:$0xff]
        %v225 = vld [vmem:[%s187 + $0x118] sm:$0xff]
        %v226 = vld [vmem:[%s187 + $0x120] sm:$0xff]
        %v227 = vld [vmem:[%s187 + $0x128] sm:$0xff]
        %v228 = vld [vmem:[%s187 + $0x130] sm:$0xff]
        %v229 = vld [vmem:[%s187 + $0x138] sm:$0xff]
        %v230 = vld [vmem:[%s187 + $0x140] sm:$0xff]
        %v231 = vld [vmem:[%s187 + $0x148] sm:$0xff]
        %v232 = vld [vmem:[%s187 + $0x150] sm:$0xff]
        %v233 = vld [vmem:[%s187 + $0x158] sm:$0xff]
        %v234 = vld [vmem:[%s187 + $0x160] sm:$0xff]
        %v235 = vld [vmem:[%s187 + $0x168] sm:$0xff]
        %v236 = vld [vmem:[%s187 + $0x170] sm:$0xff]
        %v237 = vld [vmem:[%s187 + $0x178] sm:$0xff]
        %v238 = vpack.c.bf16 %v193, %v190
        %v239 = vpack.c.bf16 %v194, %v191
        %v240 = vpack.c.bf16 %v195, %v192
        %v241 = vpack.c.bf16 %v199, %v196
        %v242 = vpack.c.bf16 %v200, %v197
        %v243 = vpack.c.bf16 %v201, %v198
        %v244 = vpack.c.bf16 %v205, %v202
        %v245 = vpack.c.bf16 %v206, %v203
        %v246 = vpack.c.bf16 %v207, %v204
        %v247 = vpack.c.bf16 %v211, %v208
        %v248 = vpack.c.bf16 %v212, %v209
        %v249 = vpack.c.bf16 %v213, %v210
        %v250 = vpack.c.bf16 %v217, %v214
        %v251 = vpack.c.bf16 %v218, %v215
        %v252 = vpack.c.bf16 %v219, %v216
        %v253 = vpack.c.bf16 %v223, %v220
        %v254 = vpack.c.bf16 %v224, %v221
        %v255 = vpack.c.bf16 %v225, %v222
        %v256 = vpack.c.bf16 %v229, %v226
        %v257 = vpack.c.bf16 %v230, %v227
        %v258 = vpack.c.bf16 %v231, %v228
        %v259 = vpack.c.bf16 %v235, %v232
        %v260 = vpack.c.bf16 %v236, %v233
        %v261 = vpack.c.bf16 %v237, %v234
        %v262 = vld [vmem:[#allocation2] sm:$0xf]
        %v263 = vld [vmem:[#allocation2 + $0x4] sm:$0xf]
        %v264 = vld [vmem:[#allocation2 + $0x8] sm:$0xf]
        %v265 = vld [vmem:[#allocation2 + $0xc] sm:$0xf]
        %v266 = vld [vmem:[#allocation2 + $0x10] sm:$0xf]
        %v267 = vld [vmem:[#allocation2 + $0x14] sm:$0xf]
        %v268 = vld [vmem:[#allocation2 + $0x18] sm:$0xf]
        %v269 = vld [vmem:[#allocation2 + $0x1c] sm:$0xf]
        %v270 = vld [vmem:[#allocation2 + $0x20] sm:$0xf]
        %v271 = vld [vmem:[#allocation2 + $0x24] sm:$0xf]
        %v272 = vld [vmem:[#allocation2 + $0x28] sm:$0xf]
        %v273 = vld [vmem:[#allocation2 + $0x2c] sm:$0xf]
        %v274 = vld [vmem:[#allocation2 + $0x30] sm:$0xf]
        %v275 = vld [vmem:[#allocation2 + $0x34] sm:$0xf]
        %v276 = vld [vmem:[#allocation2 + $0x38] sm:$0xf]
        %v277 = vld [vmem:[#allocation2 + $0x3c] sm:$0xf]
        %v278 = vld [vmem:[#allocation2 + $0x40] sm:$0xf]
        %v279 = vld [vmem:[#allocation2 + $0x44] sm:$0xf]
        %v280 = vld [vmem:[#allocation2 + $0x48] sm:$0xf]
        %v281 = vld [vmem:[#allocation2 + $0x4c] sm:$0xf]
        %v282 = vld [vmem:[#allocation2 + $0x50] sm:$0xf]
        %v283 = vld [vmem:[#allocation2 + $0x54] sm:$0xf]
        %v284 = vld [vmem:[#allocation2 + $0x58] sm:$0xf]
        %v285 = vld [vmem:[#allocation2 + $0x5c] sm:$0xf]
        %v286 = vld [vmem:[#allocation2 + $0x60] sm:$0xf]
        %v287 = vld [vmem:[#allocation2 + $0x64] sm:$0xf]
        %v288 = vld [vmem:[#allocation2 + $0x68] sm:$0xf]
        %v289 = vld [vmem:[#allocation2 + $0x6c] sm:$0xf]
        %v290 = vld [vmem:[#allocation2 + $0x70] sm:$0xf]
        %v291 = vld [vmem:[#allocation2 + $0x74] sm:$0xf]
        %v292 = vld [vmem:[#allocation2 + $0x78] sm:$0xf]
        %v293 = vld [vmem:[#allocation2 + $0x7c] sm:$0xf]
        %v294 = vld [vmem:[#allocation2 + $0x80] sm:$0xf]
        %v295 = vld [vmem:[#allocation2 + $0x84] sm:$0xf]
        %v296 = vld [vmem:[#allocation2 + $0x88] sm:$0xf]
        %v297 = vld [vmem:[#allocation2 + $0x8c] sm:$0xf]
        %v298 = vld [vmem:[%s2] sm:$0x1]
        %v299 = vlaneseq
        %v300 = vshrl.u32 %v299, 7
        %v301 = vsub.s32 0, %v300
        %v302 = vrot.slane %v298, %v301
        %v339 = vunpack.c.l.b16 %v262
        %v340 = vunpack.c.l.b16 %v263
        %v341 = vunpack.c.l.b16 %v264
        %v342 = vunpack.c.l.b16 %v265
        %v343 = vunpack.c.l.b16 %v266
        %v344 = vunpack.c.l.b16 %v267
        %v345 = vunpack.c.l.b16 %v268
        %v346 = vunpack.c.l.b16 %v269
        %v347 = vunpack.c.l.b16 %v270
        %v348 = vunpack.c.l.b16 %v271
        %v349 = vunpack.c.l.b16 %v272
        %v350 = vunpack.c.l.b16 %v273
        %v351 = vunpack.c.l.b16 %v274
        %v352 = vunpack.c.l.b16 %v275
        %v353 = vunpack.c.l.b16 %v276
        %v354 = vunpack.c.l.b16 %v277
        %v355 = vunpack.c.l.b16 %v278
        %v356 = vunpack.c.l.b16 %v279
        %v357 = vunpack.c.l.b16 %v280
        %v358 = vunpack.c.l.b16 %v281
        %v359 = vunpack.c.l.b16 %v282
        %v360 = vunpack.c.l.b16 %v283
        %v361 = vunpack.c.l.b16 %v284
        %v362 = vunpack.c.l.b16 %v285
        %v363 = vunpack.c.l.b16 %v286
        %v364 = vunpack.c.l.b16 %v287
        %v365 = vunpack.c.l.b16 %v288
        %v366 = vunpack.c.l.b16 %v289
        %v367 = vunpack.c.l.b16 %v290
        %v368 = vunpack.c.l.b16 %v291
        %v369 = vunpack.c.l.b16 %v292
        %v370 = vunpack.c.l.b16 %v293
        %v371 = vunpack.c.l.b16 %v294
        %v372 = vunpack.c.l.b16 %v295
        %v373 = vunpack.c.l.b16 %v296
        %v374 = vunpack.c.l.b16 %v297
        %v375 = vpack.c.b16 %v340, %v339
        %v376 = vpack.c.b16 %v342, %v341
        %v377 = vpack.c.b16 %v344, %v343
        %v378 = vpack.c.b16 %v346, %v345
        %v379 = vpack.c.b16 %v348, %v347
        %v380 = vpack.c.b16 %v350, %v349
        %v381 = vpack.c.b16 %v352, %v351
        %v382 = vpack.c.b16 %v354, %v353
        %v383 = vpack.c.b16 %v356, %v355
        %v384 = vpack.c.b16 %v358, %v357
        %v385 = vpack.c.b16 %v360, %v359
        %v386 = vpack.c.b16 %v362, %v361
        %v387 = vpack.c.b16 %v364, %v363
        %v388 = vpack.c.b16 %v366, %v365
        %v389 = vpack.c.b16 %v368, %v367
        %v390 = vpack.c.b16 %v370, %v369
        %v391 = vpack.c.b16 %v372, %v371
        %v392 = vpack.c.b16 %v374, %v373
        %vm411 = vcmask 261120
        %v413 = vsel %vm411, %v240, 0
        %v416 = vsel %vm411, %v243, 0
        %v419 = vsel %vm411, %v246, 0
        %v422 = vsel %vm411, %v249, 0
        %v425 = vsel %vm411, %v252, 0
        %v428 = vsel %vm411, %v255, 0
        %v431 = vsel %vm411, %v258, 0
        %v434 = vsel %vm411, %v261, 0
        %436 = vmatprep.subr.bf16.mxu0 0
        %437 = vmatpush1.bf16.msra.mxu0 %v382
        %438 = vmatprep.subr.bf16.mxu0 0
        %439 = vmatpush1.bf16.msra.mxu0 %v381
        %440 = vmatprep.subr.bf16.mxu0 0
        %441 = vmatpush1.bf16.msra.mxu0 %v380
        %442 = vmatprep.subr.bf16.mxu0 0
        %443 = vmatpush1.bf16.msra.mxu0 %v379
        %444 = vmatprep.subr.bf16.mxu0 0
        %445 = vmatpush1.bf16.msra.mxu0 %v378
        %446 = vmatprep.subr.bf16.mxu0 0
        %447 = vmatpush1.bf16.msra.mxu0 %v377
        %448 = vmatprep.subr.bf16.mxu0 0
        %449 = vmatpush1.bf16.msra.mxu0 %v376
        %450 = vmatprep.subr.bf16.mxu0 0
        %451 = vmatpush1.bf16.msra.mxu0 %v375
        %452 = vmatprep.subr.bf16.mxu0 0
        %453 = vmatpush2.bf16.msra.mxu0 %v390
        %454 = vmatprep.subr.bf16.mxu0 0
        %455 = vmatpush2.bf16.msra.mxu0 %v389
        %456 = vmatprep.subr.bf16.mxu0 0
        %457 = vmatpush2.bf16.msra.mxu0 %v388
        %458 = vmatprep.subr.bf16.mxu0 0
        %459 = vmatpush2.bf16.msra.mxu0 %v387
        %460 = vmatprep.subr.bf16.mxu0 0
        %461 = vmatpush2.bf16.msra.mxu0 %v386
        %462 = vmatprep.subr.bf16.mxu0 0
        %463 = vmatpush2.bf16.msra.mxu0 %v385
        %464 = vmatprep.subr.bf16.mxu0 0
        %465 = vmatpush2.bf16.msra.mxu0 %v384
        %466 = vmatprep.subr.bf16.mxu0 0
        %467 = vmatpush2.bf16.msra.mxu0 %v383
        %468 = vmatprep.mubr.bf16.mxu0 %v239
        %469 = vmatmul.mubr.bf16.gmra.mxu0 %v238
        %v470 = vpop.f32.mrf.mxu0
        %v471 = vadd.f32 %v302, %v470
        %v472 = vpop.f32.mrf.mxu0
        %v473 = vpop.f32.mrf.mxu0
        %v474 = vadd.f32 %v302, %v473
        %v475 = vpop.f32.mrf.mxu0
        %476 = vmatprep.mubr.bf16.mxu0 %v242
        %477 = vmatmul.mubr.bf16.gmra.mxu0 %v241
        %v478 = vpop.f32.mrf.mxu0
        %v479 = vadd.f32 %v302, %v478
        %v480 = vpop.f32.mrf.mxu0
        %v481 = vpop.f32.mrf.mxu0
        %v482 = vadd.f32 %v302, %v481
        %v483 = vpop.f32.mrf.mxu0
        %484 = vmatprep.mubr.bf16.mxu0 %v245
        %485 = vmatmul.mubr.bf16.gmra.mxu0 %v244
        %v486 = vpop.f32.mrf.mxu0
        %v487 = vadd.f32 %v302, %v486
        %v488 = vpop.f32.mrf.mxu0
        %v489 = vpop.f32.mrf.mxu0
        %v490 = vadd.f32 %v302, %v489
        %v491 = vpop.f32.mrf.mxu0
        %492 = vmatprep.mubr.bf16.mxu0 %v248
        %493 = vmatmul.mubr.bf16.gmra.mxu0 %v247
        %v494 = vpop.f32.mrf.mxu0
        %v495 = vadd.f32 %v302, %v494
        %v496 = vpop.f32.mrf.mxu0
        %v497 = vpop.f32.mrf.mxu0
        %v498 = vadd.f32 %v302, %v497
        %v499 = vpop.f32.mrf.mxu0
        %500 = vmatprep.mubr.bf16.mxu0 %v251
        %501 = vmatmul.mubr.bf16.gmra.mxu0 %v250
        %v502 = vpop.f32.mrf.mxu0
        %v503 = vadd.f32 %v302, %v502
        %v504 = vpop.f32.mrf.mxu0
        %v505 = vpop.f32.mrf.mxu0
        %v506 = vadd.f32 %v302, %v505
        %v507 = vpop.f32.mrf.mxu0
        %508 = vmatprep.mubr.bf16.mxu0 %v254
        %509 = vmatmul.mubr.bf16.gmra.mxu0 %v253
        %v510 = vpop.f32.mrf.mxu0
        %v511 = vadd.f32 %v302, %v510
        %v512 = vpop.f32.mrf.mxu0
        %v513 = vpop.f32.mrf.mxu0
        %v514 = vadd.f32 %v302, %v513
        %v515 = vpop.f32.mrf.mxu0
        %516 = vmatprep.mubr.bf16.mxu0 %v257
        %517 = vmatmul.mubr.bf16.gmra.mxu0 %v256
        %v518 = vpop.f32.mrf.mxu0
        %v519 = vadd.f32 %v302, %v518
        %v520 = vpop.f32.mrf.mxu0
        %v521 = vpop.f32.mrf.mxu0
        %v522 = vadd.f32 %v302, %v521
        %v523 = vpop.f32.mrf.mxu0
        %524 = vmatprep.mubr.bf16.mxu0 %v260
        %525 = vmatmul.mubr.bf16.gmra.mxu0 %v259
        %v526 = vpop.f32.mrf.mxu0
        %v527 = vadd.f32 %v302, %v526
        %v528 = vpop.f32.mrf.mxu0
        %v529 = vpop.f32.mrf.mxu0
        %v530 = vadd.f32 %v302, %v529
        %v531 = vpop.f32.mrf.mxu0
        %532 = vdwg.mxu0
        %533 = vmatprep.subr.bf16.mxu0 0
        %534 = vmatpush1.bf16.msra.mxu0 0
        %535 = vmatprep.subr.bf16.mxu0 0
        %536 = vmatpush1.bf16.msra.mxu0 0
        %537 = vmatprep.subr.bf16.mxu0 0
        %538 = vmatpush1.bf16.msra.mxu0 0
        %539 = vmatprep.subr.bf16.mxu0 0
        %540 = vmatpush1.bf16.msra.mxu0 0
        %541 = vmatprep.subr.bf16.mxu0 0
        %542 = vmatpush1.bf16.msra.mxu0 0
        %543 = vmatprep.subr.bf16.mxu0 0
        %544 = vmatpush1.bf16.msra.mxu0 0
        %545 = vmatprep.subr.bf16.mxu0 0
        %546 = vmatpush1.bf16.msra.mxu0 %v392
        %547 = vmatprep.subr.bf16.mxu0 0
        %548 = vmatpush1.bf16.msra.mxu0 %v391
        %549 = vmatprep.subr.bf16.mxu0 0
        %550 = vmatpush2.bf16.msra.mxu0 0
        %551 = vmatprep.subr.bf16.mxu0 0
        %552 = vmatpush2.bf16.msra.mxu0 0
        %553 = vmatprep.subr.bf16.mxu0 0
        %554 = vmatpush2.bf16.msra.mxu0 0
        %555 = vmatprep.subr.bf16.mxu0 0
        %556 = vmatpush2.bf16.msra.mxu0 0
        %557 = vmatprep.subr.bf16.mxu0 0
        %558 = vmatpush2.bf16.msra.mxu0 0
        %559 = vmatprep.subr.bf16.mxu0 0
        %560 = vmatpush2.bf16.msra.mxu0 0
        %561 = vmatprep.subr.bf16.mxu0 0
        %562 = vmatpush2.bf16.msra.mxu0 0
        %563 = vmatprep.subr.bf16.mxu0 0
        %564 = vmatpush2.bf16.msra.mxu0 0
        %565 = vmatprep.mubr.bf16.mxu0 0
        %566 = vmatmul.mubr.bf16.gmra.mxu0 %v413
        %v567 = vpop.f32.mrf.mxu0
        %v568 = vadd.f32 %v471, %v567
        %v569 = vpop.f32.mrf.mxu0
        %v570 = vpop.f32.mrf.mxu0
        %v571 = vadd.f32 %v474, %v570
        %v572 = vpop.f32.mrf.mxu0
        %573 = vmatprep.mubr.bf16.mxu0 0
        %574 = vmatmul.mubr.bf16.gmra.mxu0 %v416
        %v575 = vpop.f32.mrf.mxu0
        %v576 = vadd.f32 %v479, %v575
        %v577 = vpop.f32.mrf.mxu0
        %v578 = vpop.f32.mrf.mxu0
        %v579 = vadd.f32 %v482, %v578
        %v580 = vpop.f32.mrf.mxu0
        %581 = vmatprep.mubr.bf16.mxu0 0
        %582 = vmatmul.mubr.bf16.gmra.mxu0 %v419
        %v583 = vpop.f32.mrf.mxu0
        %v584 = vadd.f32 %v487, %v583
        %v585 = vpop.f32.mrf.mxu0
        %v586 = vpop.f32.mrf.mxu0
        %v587 = vadd.f32 %v490, %v586
        %v588 = vpop.f32.mrf.mxu0
        %589 = vmatprep.mubr.bf16.mxu0 0
        %590 = vmatmul.mubr.bf16.gmra.mxu0 %v422
        %v591 = vpop.f32.mrf.mxu0
        %v592 = vadd.f32 %v495, %v591
        %v593 = vpop.f32.mrf.mxu0
        %v594 = vpop.f32.mrf.mxu0
        %v595 = vadd.f32 %v498, %v594
        %v596 = vpop.f32.mrf.mxu0
        %597 = vmatprep.mubr.bf16.mxu0 0
        %598 = vmatmul.mubr.bf16.gmra.mxu0 %v425
        %v599 = vpop.f32.mrf.mxu0
        %v600 = vadd.f32 %v503, %v599
        %v601 = vpop.f32.mrf.mxu0
        %v602 = vpop.f32.mrf.mxu0
        %v603 = vadd.f32 %v506, %v602
        %v604 = vpop.f32.mrf.mxu0
        %605 = vmatprep.mubr.bf16.mxu0 0
        %606 = vmatmul.mubr.bf16.gmra.mxu0 %v428
        %v607 = vpop.f32.mrf.mxu0
        %v608 = vadd.f32 %v511, %v607
        %v609 = vpop.f32.mrf.mxu0
        %v610 = vpop.f32.mrf.mxu0
        %v611 = vadd.f32 %v514, %v610
        %v612 = vpop.f32.mrf.mxu0
        %613 = vmatprep.mubr.bf16.mxu0 0
        %614 = vmatmul.mubr.bf16.gmra.mxu0 %v431
        %v615 = vpop.f32.mrf.mxu0
        %v616 = vadd.f32 %v519, %v615
        %v617 = vpop.f32.mrf.mxu0
        %v618 = vpop.f32.mrf.mxu0
        %v619 = vadd.f32 %v522, %v618
        %v620 = vpop.f32.mrf.mxu0
        %621 = vmatprep.mubr.bf16.mxu0 0
        %622 = vmatmul.mubr.bf16.gmra.mxu0 %v434
        %v623 = vpop.f32.mrf.mxu0
        %v624 = vadd.f32 %v527, %v623
        %v625 = vpop.f32.mrf.mxu0
        %v626 = vpop.f32.mrf.mxu0
        %v627 = vadd.f32 %v530, %v626
        %v628 = vpop.f32.mrf.mxu0
        %629 = vdwg.mxu0
        %v630 = vmax.f32 %v568, 0.0
        %v631 = vmax.f32 %v571, 0.0
        %v632 = vmax.f32 %v576, 0.0
        %v633 = vmax.f32 %v579, 0.0
        %v634 = vmax.f32 %v584, 0.0
        %v635 = vmax.f32 %v587, 0.0
        %v636 = vmax.f32 %v592, 0.0
        %v637 = vmax.f32 %v595, 0.0
        %v638 = vmax.f32 %v600, 0.0
        %v639 = vmax.f32 %v603, 0.0
        %v640 = vmax.f32 %v608, 0.0
        %v641 = vmax.f32 %v611, 0.0
        %v642 = vmax.f32 %v616, 0.0
        %v643 = vmax.f32 %v619, 0.0
        %v644 = vmax.f32 %v624, 0.0
        %v645 = vmax.f32 %v627, 0.0
        %v646 = vpack.c.bf16 %v631, %v630
        %v647 = vpack.c.bf16 %v633, %v632
        %v648 = vpack.c.bf16 %v635, %v634
        %v649 = vpack.c.bf16 %v637, %v636
        %v650 = vpack.c.bf16 %v639, %v638
        %v651 = vpack.c.bf16 %v641, %v640
        %v652 = vpack.c.bf16 %v643, %v642
        %v653 = vpack.c.bf16 %v645, %v644
        %vm654 = vsmask.f32 256
        %v656 = vshrl.u32 %v650, 16
        %v658 = vrot.slane %v656, 7
        %v659 = vshll.u32 %v650, 16
        %v661 = vor.u32 %v658, %v659
        %v663 = vshrl.u32 %v651, 16
        %v665 = vrot.slane %v663, 7
        %v666 = vshll.u32 %v651, 16
        %v668 = vor.u32 %v665, %v666
        %v669 = vsel %vm654, %v658, %v668
        %v671 = vshrl.u32 %v652, 16
        %v673 = vrot.slane %v671, 7
        %v674 = vshll.u32 %v652, 16
        %v676 = vor.u32 %v673, %v674
        %v677 = vsel %vm654, %v665, %v676
        %v679 = vshrl.u32 %v653, 16
        %v681 = vrot.slane %v679, 7
        %v682 = vshll.u32 %v653, 16
        %v684 = vor.u32 %v681, %v682
        %v685 = vsel %vm654, %v673, %v684
        %vm690 = vcmask 1040384
        %vm691 = vmand %vm690, %vm654
        %v692 = vsel %vm691, 0, %v661
        %v693 = vlaneseq
        %v694 = vshrl.u32 %v693, 7
        %v695 = vadd.s32 %v694, 8
        %v696 = vadd.s32 %v694, 16
        %v697 = vadd.s32 %v694, 24
        %v698 = vadd.s32 %v694, 32
        %v699 = vadd.s32 %v694, 40
        %v700 = vadd.s32 %v694, 48
        %v701 = vadd.s32 %v694, 56
        %v702 = vand.u32 %v694, 7
        %v703 = vand.u32 %v695, 7
        %v704 = vand.u32 %v696, 7
        %v705 = vand.u32 %v697, 7
        %v706 = vand.u32 %v698, 7
        %v707 = vand.u32 %v699, 7
        %v708 = vand.u32 %v700, 7
        %v709 = vand.u32 %v701, 7
        %vm710 = vcmp.ne.s32.totalorder %v702, 0
        %vm711 = vcmp.ne.s32.totalorder %v703, 0
        %vm712 = vcmp.ne.s32.totalorder %v704, 0
        %vm713 = vcmp.ne.s32.totalorder %v705, 0
        %vm714 = vcmp.ne.s32.totalorder %v706, 0
        %vm715 = vcmp.ne.s32.totalorder %v707, 0
        %vm716 = vcmp.ne.s32.totalorder %v708, 0
        %vm717 = vcmp.ne.s32.totalorder %v709, 0
        %v718 = vsel %vm710, 1, 0
        %v719 = vsel %vm711, 1, 0
        %v720 = vsel %vm712, 1, 0
        %v721 = vsel %vm713, 1, 0
        %v722 = vsel %vm714, 1, 0
        %v723 = vsel %vm715, 1, 0
        %v724 = vsel %vm716, 1, 0
        %v725 = vsel %vm717, 1, 0
        %v726 = vcvt.s32.f32 %v718
        %v727 = vcvt.s32.f32 %v719
        %v728 = vcvt.s32.f32 %v720
        %v729 = vcvt.s32.f32 %v721
        %v730 = vcvt.s32.f32 %v722
        %v731 = vcvt.s32.f32 %v723
        %v732 = vcvt.s32.f32 %v724
        %v733 = vcvt.s32.f32 %v725
        %v734 = vpack.c.bf16 %v727, %v726
        %v735 = vpack.c.bf16 %v729, %v728
        %v736 = vpack.c.bf16 %v731, %v730
        %v737 = vpack.c.bf16 %v733, %v732
        %v738 = vmul.bf16 %v692, %v734
        %v739 = vmul.bf16 %v669, %v735
        %v740 = vmul.bf16 %v677, %v736
        %v741 = vmul.bf16 %v685, %v737
        %v742 = vld [vmem:[#allocation2 + $0x90] sm:$0xf]
        %v743 = vld [vmem:[#allocation2 + $0x94] sm:$0xf]
        %v744 = vld [vmem:[#allocation2 + $0x98] sm:$0xf]
        %v745 = vld [vmem:[#allocation2 + $0x9c] sm:$0xf]
        %v746 = vld [vmem:[#allocation2 + $0xa0] sm:$0xf]
        %v747 = vld [vmem:[#allocation2 + $0xa4] sm:$0xf]
        %v748 = vld [vmem:[#allocation2 + $0xa8] sm:$0xf]
        %v749 = vld [vmem:[#allocation2 + $0xac] sm:$0xf]
        %v750 = vld [vmem:[#allocation2 + $0xb0] sm:$0xf]
        %v751 = vld [vmem:[#allocation2 + $0xb4] sm:$0xf]
        %v752 = vld [vmem:[#allocation2 + $0xb8] sm:$0xf]
        %v753 = vld [vmem:[#allocation2 + $0xbc] sm:$0xf]
        %v754 = vld [vmem:[#allocation2 + $0xc0] sm:$0xf]
        %v755 = vld [vmem:[#allocation2 + $0xc4] sm:$0xf]
        %v756 = vld [vmem:[#allocation2 + $0xc8] sm:$0xf]
        %v757 = vld [vmem:[#allocation2 + $0xcc] sm:$0xf]
        %v758 = vld [vmem:[#allocation2 + $0xd0] sm:$0xf]
        %v759 = vld [vmem:[#allocation2 + $0xd4] sm:$0xf]
        %v760 = vld [vmem:[#allocation2 + $0xd8] sm:$0xf]
        %v761 = vld [vmem:[#allocation2 + $0xdc] sm:$0xf]
        %v762 = vld [vmem:[#allocation2 + $0xe0] sm:$0xf]
        %v763 = vld [vmem:[#allocation2 + $0xe4] sm:$0xf]
        %v764 = vld [vmem:[#allocation2 + $0xe8] sm:$0xf]
        %v765 = vld [vmem:[#allocation2 + $0xec] sm:$0xf]
        %v766 = vld [vmem:[#allocation2 + $0xf0] sm:$0xf]
        %v767 = vld [vmem:[#allocation2 + $0xf4] sm:$0xf]
        %v768 = vld [vmem:[#allocation2 + $0xf8] sm:$0xf]
        %v769 = vld [vmem:[#allocation2 + $0xfc] sm:$0xf]
        %v770 = vld [vmem:[#allocation2 + $0x100] sm:$0xf]
        %v771 = vld [vmem:[#allocation2 + $0x104] sm:$0xf]
        %v772 = vld [vmem:[#allocation2 + $0x108] sm:$0xf]
        %v773 = vld [vmem:[#allocation2 + $0x10c] sm:$0xf]
        %v774 = vld [vmem:[#allocation2 + $0x110] sm:$0xf]
        %v775 = vld [vmem:[#allocation2 + $0x114] sm:$0xf]
        %v776 = vld [vmem:[#allocation2 + $0x118] sm:$0xf]
        %v777 = vld [vmem:[#allocation2 + $0x11c] sm:$0xf]
        %v778 = vld [vmem:[#allocation2 + $0x120] sm:$0xf]
        %v779 = vld [vmem:[#allocation2 + $0x124] sm:$0xf]
        %v780 = vld [vmem:[#allocation2 + $0x128] sm:$0xf]
        %v781 = vld [vmem:[#allocation2 + $0x12c] sm:$0xf]
        %v782 = vld [vmem:[#allocation2 + $0x130] sm:$0xf]
        %v783 = vld [vmem:[#allocation2 + $0x134] sm:$0xf]
        %v784 = vld [vmem:[#allocation2 + $0x138] sm:$0xf]
        %v785 = vld [vmem:[#allocation2 + $0x13c] sm:$0xf]
        %v786 = vld [vmem:[#allocation2 + $0x140] sm:$0xf]
        %v787 = vld [vmem:[#allocation2 + $0x144] sm:$0xf]
        %v788 = vld [vmem:[#allocation2 + $0x148] sm:$0xf]
        %v789 = vld [vmem:[#allocation2 + $0x14c] sm:$0xf]
        %v790 = vld [vmem:[%s2 + $0x1] sm:$0x1]
        %v791 = vlaneseq
        %v792 = vshrl.u32 %v791, 7
        %v793 = vsub.s32 0, %v792
        %v794 = vrot.slane %v790, %v793
        %v843 = vunpack.c.l.b16 %v742
        %v844 = vunpack.c.l.b16 %v743
        %v845 = vunpack.c.l.b16 %v744
        %v846 = vunpack.c.l.b16 %v745
        %v847 = vunpack.c.l.b16 %v746
        %v848 = vunpack.c.l.b16 %v747
        %v849 = vunpack.c.l.b16 %v748
        %v850 = vunpack.c.l.b16 %v749
        %v851 = vunpack.c.l.b16 %v750
        %v852 = vunpack.c.l.b16 %v751
        %v853 = vunpack.c.l.b16 %v752
        %v854 = vunpack.c.l.b16 %v753
        %v855 = vunpack.c.l.b16 %v754
        %v856 = vunpack.c.l.b16 %v755
        %v857 = vunpack.c.l.b16 %v756
        %v858 = vunpack.c.l.b16 %v757
        %v859 = vunpack.c.l.b16 %v758
        %v860 = vunpack.c.l.b16 %v759
        %v861 = vunpack.c.l.b16 %v760
        %v862 = vunpack.c.l.b16 %v761
        %v863 = vunpack.c.l.b16 %v762
        %v864 = vunpack.c.l.b16 %v763
        %v865 = vunpack.c.l.b16 %v764
        %v866 = vunpack.c.l.b16 %v765
        %v867 = vunpack.c.l.b16 %v766
        %v868 = vunpack.c.l.b16 %v767
        %v869 = vunpack.c.l.b16 %v768
        %v870 = vunpack.c.l.b16 %v769
        %v871 = vunpack.c.l.b16 %v770
        %v872 = vunpack.c.l.b16 %v771
        %v873 = vunpack.c.l.b16 %v772
        %v874 = vunpack.c.l.b16 %v773
        %v875 = vunpack.c.l.b16 %v774
        %v876 = vunpack.c.l.b16 %v775
        %v877 = vunpack.c.l.b16 %v776
        %v878 = vunpack.c.l.b16 %v777
        %v879 = vunpack.c.l.b16 %v778
        %v880 = vunpack.c.l.b16 %v779
        %v881 = vunpack.c.l.b16 %v780
        %v882 = vunpack.c.l.b16 %v781
        %v883 = vunpack.c.l.b16 %v782
        %v884 = vunpack.c.l.b16 %v783
        %v885 = vunpack.c.l.b16 %v784
        %v886 = vunpack.c.l.b16 %v785
        %v887 = vunpack.c.l.b16 %v786
        %v888 = vunpack.c.l.b16 %v787
        %v889 = vunpack.c.l.b16 %v788
        %v890 = vunpack.c.l.b16 %v789
        %v891 = vpack.c.b16 %v844, %v843
        %v892 = vpack.c.b16 %v846, %v845
        %v893 = vpack.c.b16 %v848, %v847
        %v894 = vpack.c.b16 %v850, %v849
        %v895 = vpack.c.b16 %v852, %v851
        %v896 = vpack.c.b16 %v854, %v853
        %v897 = vpack.c.b16 %v856, %v855
        %v898 = vpack.c.b16 %v858, %v857
        %v899 = vpack.c.b16 %v860, %v859
        %v900 = vpack.c.b16 %v862, %v861
        %v901 = vpack.c.b16 %v864, %v863
        %v902 = vpack.c.b16 %v866, %v865
        %v903 = vpack.c.b16 %v868, %v867
        %v904 = vpack.c.b16 %v870, %v869
        %v905 = vpack.c.b16 %v872, %v871
        %v906 = vpack.c.b16 %v874, %v873
        %v907 = vpack.c.b16 %v876, %v875
        %v908 = vpack.c.b16 %v878, %v877
        %v909 = vpack.c.b16 %v880, %v879
        %v910 = vpack.c.b16 %v882, %v881
        %v911 = vpack.c.b16 %v884, %v883
        %v912 = vpack.c.b16 %v886, %v885
        %v913 = vpack.c.b16 %v888, %v887
        %v914 = vpack.c.b16 %v890, %v889
        %939 = vmatprep.subr.bf16.mxu0 0
        %940 = vmatpush1.bf16.msra.mxu0 %v898
        %941 = vmatprep.subr.bf16.mxu0 0
        %942 = vmatpush1.bf16.msra.mxu0 %v897
        %943 = vmatprep.subr.bf16.mxu0 0
        %944 = vmatpush1.bf16.msra.mxu0 %v896
        %945 = vmatprep.subr.bf16.mxu0 0
        %946 = vmatpush1.bf16.msra.mxu0 %v895
        %947 = vmatprep.subr.bf16.mxu0 0
        %948 = vmatpush1.bf16.msra.mxu0 %v894
        %949 = vmatprep.subr.bf16.mxu0 0
        %950 = vmatpush1.bf16.msra.mxu0 %v893
        %951 = vmatprep.subr.bf16.mxu0 0
        %952 = vmatpush1.bf16.msra.mxu0 %v892
        %953 = vmatprep.subr.bf16.mxu0 0
        %954 = vmatpush1.bf16.msra.mxu0 %v891
        %955 = vmatprep.subr.bf16.mxu0 0
        %956 = vmatpush2.bf16.msra.mxu0 %v906
        %957 = vmatprep.subr.bf16.mxu0 0
        %958 = vmatpush2.bf16.msra.mxu0 %v905
        %959 = vmatprep.subr.bf16.mxu0 0
        %960 = vmatpush2.bf16.msra.mxu0 %v904
        %961 = vmatprep.subr.bf16.mxu0 0
        %962 = vmatpush2.bf16.msra.mxu0 %v903
        %963 = vmatprep.subr.bf16.mxu0 0
        %964 = vmatpush2.bf16.msra.mxu0 %v902
        %965 = vmatprep.subr.bf16.mxu0 0
        %966 = vmatpush2.bf16.msra.mxu0 %v901
        %967 = vmatprep.subr.bf16.mxu0 0
        %968 = vmatpush2.bf16.msra.mxu0 %v900
        %969 = vmatprep.subr.bf16.mxu0 0
        %970 = vmatpush2.bf16.msra.mxu0 %v899
        %971 = vmatprep.mubr.bf16.mxu0 %v646
        %972 = vmatmul.mubr.bf16.gmra.mxu0 %v738
        %v973 = vpop.f32.mrf.mxu0
        %v974 = vadd.f32 %v794, %v973
        %v975 = vpop.f32.mrf.mxu0
        %v976 = vpop.f32.mrf.mxu0
        %v977 = vadd.f32 %v794, %v976
        %v978 = vpop.f32.mrf.mxu0
        %979 = vmatprep.mubr.bf16.mxu0 %v647
        %980 = vmatmul.mubr.bf16.gmra.mxu0 %v739
        %v981 = vpop.f32.mrf.mxu0
        %v982 = vadd.f32 %v794, %v981
        %v983 = vpop.f32.mrf.mxu0
        %v984 = vpop.f32.mrf.mxu0
        %v985 = vadd.f32 %v794, %v984
        %v986 = vpop.f32.mrf.mxu0
        %987 = vmatprep.mubr.bf16.mxu0 %v648
        %988 = vmatmul.mubr.bf16.gmra.mxu0 %v740
        %v989 = vpop.f32.mrf.mxu0
        %v990 = vadd.f32 %v794, %v989
        %v991 = vpop.f32.mrf.mxu0
        %v992 = vpop.f32.mrf.mxu0
        %v993 = vadd.f32 %v794, %v992
        %v994 = vpop.f32.mrf.mxu0
        %995 = vmatprep.mubr.bf16.mxu0 %v649
        %996 = vmatmul.mubr.bf16.gmra.mxu0 %v741
        %v997 = vpop.f32.mrf.mxu0
        %v998 = vadd.f32 %v794, %v997
        %v999 = vpop.f32.mrf.mxu0
        %v1000 = vpop.f32.mrf.mxu0
        %v1001 = vadd.f32 %v794, %v1000
        %v1002 = vpop.f32.mrf.mxu0
        %1003 = vdwg.mxu0
        %1004 = vmatprep.subr.bf16.mxu0 0
        %1005 = vmatpush1.bf16.msra.mxu0 %v914
        %1006 = vmatprep.subr.bf16.mxu0 0
        %1007 = vmatpush1.bf16.msra.mxu0 %v913
        %1008 = vmatprep.subr.bf16.mxu0 0
        %1009 = vmatpush1.bf16.msra.mxu0 %v912
        %1010 = vmatprep.subr.bf16.mxu0 0
        %1011 = vmatpush1.bf16.msra.mxu0 %v911
        %1012 = vmatprep.subr.bf16.mxu0 0
        %1013 = vmatpush1.bf16.msra.mxu0 %v910
        %1014 = vmatprep.subr.bf16.mxu0 0
        %1015 = vmatpush1.bf16.msra.mxu0 %v909
        %1016 = vmatprep.subr.bf16.mxu0 0
        %1017 = vmatpush1.bf16.msra.mxu0 %v908
        %1018 = vmatprep.subr.bf16.mxu0 0
        %1019 = vmatpush1.bf16.msra.mxu0 %v907
        %1020 = vmatprep.subr.bf16.mxu0 0
        %1021 = vmatpush2.bf16.msra.mxu0 0
        %1022 = vmatprep.subr.bf16.mxu0 0
        %1023 = vmatpush2.bf16.msra.mxu0 0
        %1024 = vmatprep.subr.bf16.mxu0 0
        %1025 = vmatpush2.bf16.msra.mxu0 0
        %1026 = vmatprep.subr.bf16.mxu0 0
        %1027 = vmatpush2.bf16.msra.mxu0 0
        %1028 = vmatprep.subr.bf16.mxu0 0
        %1029 = vmatpush2.bf16.msra.mxu0 0
        %1030 = vmatprep.subr.bf16.mxu0 0
        %1031 = vmatpush2.bf16.msra.mxu0 0
        %1032 = vmatprep.subr.bf16.mxu0 0
        %1033 = vmatpush2.bf16.msra.mxu0 0
        %1034 = vmatprep.subr.bf16.mxu0 0
        %1035 = vmatpush2.bf16.msra.mxu0 0
        %1036 = vmatprep.mubr.bf16.mxu0 0
        %1037 = vmatmul.mubr.bf16.gmra.mxu0 %v650
        %v1038 = vpop.f32.mrf.mxu0
        %v1039 = vadd.f32 %v974, %v1038
        %v1040 = vpop.f32.mrf.mxu0
        %v1041 = vpop.f32.mrf.mxu0
        %v1042 = vadd.f32 %v977, %v1041
        %v1043 = vpop.f32.mrf.mxu0
        %1044 = vmatprep.mubr.bf16.mxu0 0
        %1045 = vmatmul.mubr.bf16.gmra.mxu0 %v651
        %v1046 = vpop.f32.mrf.mxu0
        %v1047 = vadd.f32 %v982, %v1046
        %v1048 = vpop.f32.mrf.mxu0
        %v1049 = vpop.f32.mrf.mxu0
        %v1050 = vadd.f32 %v985, %v1049
        %v1051 = vpop.f32.mrf.mxu0
        %1052 = vmatprep.mubr.bf16.mxu0 0
        %1053 = vmatmul.mubr.bf16.gmra.mxu0 %v652
        %v1054 = vpop.f32.mrf.mxu0
        %v1055 = vadd.f32 %v990, %v1054
        %v1056 = vpop.f32.mrf.mxu0
        %v1057 = vpop.f32.mrf.mxu0
        %v1058 = vadd.f32 %v993, %v1057
        %v1059 = vpop.f32.mrf.mxu0
        %1060 = vmatprep.mubr.bf16.mxu0 0
        %1061 = vmatmul.mubr.bf16.gmra.mxu0 %v653
        %v1062 = vpop.f32.mrf.mxu0
        %v1063 = vadd.f32 %v998, %v1062
        %v1064 = vpop.f32.mrf.mxu0
        %v1065 = vpop.f32.mrf.mxu0
        %v1066 = vadd.f32 %v1001, %v1065
        %v1067 = vpop.f32.mrf.mxu0
        %1068 = vdwg.mxu0
        %v1069 = vmax.f32 %v1039, 0.0
        %v1070 = vmax.f32 %v1042, 0.0
        %v1071 = vmax.f32 %v1047, 0.0
        %v1072 = vmax.f32 %v1050, 0.0
        %v1073 = vmax.f32 %v1055, 0.0
        %v1074 = vmax.f32 %v1058, 0.0
        %v1075 = vmax.f32 %v1063, 0.0
        %v1076 = vmax.f32 %v1066, 0.0
        %v1077 = vpack.c.bf16 %v1070, %v1069
        %v1078 = vpack.c.bf16 %v1072, %v1071
        %v1079 = vpack.c.bf16 %v1074, %v1073
        %v1080 = vpack.c.bf16 %v1076, %v1075
        %v1081 = vld [vmem:[#allocation2 + $0x150] sm:$0xf]
        %v1082 = vld [vmem:[#allocation2 + $0x154] sm:$0xf]
        %v1083 = vld [vmem:[#allocation2 + $0x158] sm:$0xf]
        %v1084 = vld [vmem:[#allocation2 + $0x15c] sm:$0xf]
        %v1085 = vld [vmem:[#allocation2 + $0x160] sm:$0xf]
        %v1086 = vld [vmem:[#allocation2 + $0x164] sm:$0xf]
        %v1087 = vld [vmem:[#allocation2 + $0x168] sm:$0xf]
        %v1088 = vld [vmem:[#allocation2 + $0x16c] sm:$0xf]
        %v1089 = vld [vmem:[#allocation2 + $0x170] sm:$0xf]
        %v1090 = vld [vmem:[#allocation2 + $0x174] sm:$0xf]
        %v1091 = vld [vmem:[#allocation2 + $0x178] sm:$0xf]
        %v1092 = vld [vmem:[#allocation2 + $0x17c] sm:$0xf]
        %v1093 = vld [vmem:[#allocation2 + $0x180] sm:$0xf]
        %v1094 = vld [vmem:[#allocation2 + $0x184] sm:$0xf]
        %v1095 = vld [vmem:[#allocation2 + $0x188] sm:$0xf]
        %v1096 = vld [vmem:[#allocation2 + $0x18c] sm:$0xf]
        %v1097 = vld [vmem:[%s2 + $0x2] sm:$0x1]
        %v1098 = vlaneseq
        %v1099 = vshrl.u32 %v1098, 7
        %v1100 = vsub.s32 0, %v1099
        %v1101 = vrot.slane %v1097, %v1100
        %v1118 = vunpack.c.l.b16 %v1081
        %v1119 = vunpack.c.l.b16 %v1082
        %v1120 = vunpack.c.l.b16 %v1083
        %v1121 = vunpack.c.l.b16 %v1084
        %v1122 = vunpack.c.l.b16 %v1085
        %v1123 = vunpack.c.l.b16 %v1086
        %v1124 = vunpack.c.l.b16 %v1087
        %v1125 = vunpack.c.l.b16 %v1088
        %v1126 = vunpack.c.l.b16 %v1089
        %v1127 = vunpack.c.l.b16 %v1090
        %v1128 = vunpack.c.l.b16 %v1091
        %v1129 = vunpack.c.l.b16 %v1092
        %v1130 = vunpack.c.l.b16 %v1093
        %v1131 = vunpack.c.l.b16 %v1094
        %v1132 = vunpack.c.l.b16 %v1095
        %v1133 = vunpack.c.l.b16 %v1096
        %v1134 = vpack.c.b16 %v1119, %v1118
        %v1135 = vpack.c.b16 %v1121, %v1120
        %v1136 = vpack.c.b16 %v1123, %v1122
        %v1137 = vpack.c.b16 %v1125, %v1124
        %v1138 = vpack.c.b16 %v1127, %v1126
        %v1139 = vpack.c.b16 %v1129, %v1128
        %v1140 = vpack.c.b16 %v1131, %v1130
        %v1141 = vpack.c.b16 %v1133, %v1132
        %1150 = vmatprep.subr.bf16.mxu0 0
        %1151 = vmatpush1.bf16.msra.mxu0 %v1141
        %1152 = vmatprep.subr.bf16.mxu0 0
        %1153 = vmatpush1.bf16.msra.mxu0 %v1140
        %1154 = vmatprep.subr.bf16.mxu0 0
        %1155 = vmatpush1.bf16.msra.mxu0 %v1139
        %1156 = vmatprep.subr.bf16.mxu0 0
        %1157 = vmatpush1.bf16.msra.mxu0 %v1138
        %1158 = vmatprep.subr.bf16.mxu0 0
        %1159 = vmatpush1.bf16.msra.mxu0 %v1137
        %1160 = vmatprep.subr.bf16.mxu0 0
        %1161 = vmatpush1.bf16.msra.mxu0 %v1136
        %1162 = vmatprep.subr.bf16.mxu0 0
        %1163 = vmatpush1.bf16.msra.mxu0 %v1135
        %1164 = vmatprep.subr.bf16.mxu0 0
        %1165 = vmatpush1.bf16.msra.mxu0 %v1134
        %1166 = vmatprep.subr.bf16.mxu0 0
        %1167 = vmatpush2.bf16.msra.mxu0 0
        %1168 = vmatprep.subr.bf16.mxu0 0
        %1169 = vmatpush2.bf16.msra.mxu0 0
        %1170 = vmatprep.subr.bf16.mxu0 0
        %1171 = vmatpush2.bf16.msra.mxu0 0
        %1172 = vmatprep.subr.bf16.mxu0 0
        %1173 = vmatpush2.bf16.msra.mxu0 0
        %1174 = vmatprep.subr.bf16.mxu0 0
        %1175 = vmatpush2.bf16.msra.mxu0 0
        %1176 = vmatprep.subr.bf16.mxu0 0
        %1177 = vmatpush2.bf16.msra.mxu0 0
        %1178 = vmatprep.subr.bf16.mxu0 0
        %1179 = vmatpush2.bf16.msra.mxu0 0
        %1180 = vmatprep.subr.bf16.mxu0 0
        %1181 = vmatpush2.bf16.msra.mxu0 0
        %1182 = vmatprep.mubr.bf16.mxu0 0
        %1183 = vmatmul.mubr.bf16.gmra.mxu0 %v646
        %v1184 = vpop.f32.mrf.mxu0
        %v1185 = vadd.f32 %v1101, %v1184
        %v1186 = vpop.f32.mrf.mxu0
        %v1187 = vpop.f32.mrf.mxu0
        %v1188 = vadd.f32 %v1101, %v1187
        %v1189 = vpop.f32.mrf.mxu0
        %1190 = vmatprep.mubr.bf16.mxu0 0
        %1191 = vmatmul.mubr.bf16.gmra.mxu0 %v647
        %v1192 = vpop.f32.mrf.mxu0
        %v1193 = vadd.f32 %v1101, %v1192
        %v1194 = vpop.f32.mrf.mxu0
        %v1195 = vpop.f32.mrf.mxu0
        %v1196 = vadd.f32 %v1101, %v1195
        %v1197 = vpop.f32.mrf.mxu0
        %1198 = vmatprep.mubr.bf16.mxu0 0
        %1199 = vmatmul.mubr.bf16.gmra.mxu0 %v648
        %v1200 = vpop.f32.mrf.mxu0
        %v1201 = vadd.f32 %v1101, %v1200
        %v1202 = vpop.f32.mrf.mxu0
        %v1203 = vpop.f32.mrf.mxu0
        %v1204 = vadd.f32 %v1101, %v1203
        %v1205 = vpop.f32.mrf.mxu0
        %1206 = vmatprep.mubr.bf16.mxu0 0
        %1207 = vmatmul.mubr.bf16.gmra.mxu0 %v649
        %v1208 = vpop.f32.mrf.mxu0
        %v1209 = vadd.f32 %v1101, %v1208
        %v1210 = vpop.f32.mrf.mxu0
        %v1211 = vpop.f32.mrf.mxu0
        %v1212 = vadd.f32 %v1101, %v1211
        %v1213 = vpop.f32.mrf.mxu0
        %1214 = vdwg.mxu0
        %v1216 = vshrl.u32 %v1077, 16
        %v1218 = vrot.slane %v1216, 7
        %v1219 = vshll.u32 %v1077, 16
        %v1221 = vor.u32 %v1218, %v1219
        %v1223 = vshrl.u32 %v1078, 16
        %v1225 = vrot.slane %v1223, 7
        %v1226 = vshll.u32 %v1078, 16
        %v1228 = vor.u32 %v1225, %v1226
        %v1229 = vsel %vm654, %v1218, %v1228
        %v1231 = vshrl.u32 %v1079, 16
        %v1233 = vrot.slane %v1231, 7
        %v1234 = vshll.u32 %v1079, 16
        %v1236 = vor.u32 %v1233, %v1234
        %v1237 = vsel %vm654, %v1225, %v1236
        %v1239 = vshrl.u32 %v1080, 16
        %v1241 = vrot.slane %v1239, 7
        %v1242 = vshll.u32 %v1080, 16
        %v1244 = vor.u32 %v1241, %v1242
        %v1245 = vsel %vm654, %v1233, %v1244
        %v1250 = vsel %vm691, 0, %v1221
        %v1251 = vmul.bf16 %v1250, %v734
        %v1252 = vmul.bf16 %v1229, %v735
        %v1253 = vmul.bf16 %v1237, %v736
        %v1254 = vmul.bf16 %v1245, %v737
        %vm1255 = vsmask.f32 7424
        %v1256 = vrot.slane %v1219, 1
        %v1257 = vor.u32 %v1216, %v1256
        %v1258 = vrot.slane %v1226, 1
        %v1259 = vsel %vm1255, %v1257, %v1258
        %v1260 = vor.u32 %v1223, %v1258
        %v1261 = vrot.slane %v1234, 1
        %v1262 = vsel %vm1255, %v1260, %v1261
        %v1263 = vor.u32 %v1231, %v1261
        %v1264 = vrot.slane %v1242, 1
        %v1265 = vsel %vm1255, %v1263, %v1264
        %v1266 = vor.u32 %v1239, %v1264
        %vm1271 = vcmask 1047552
        %vm1272 = vmand %vm1271, %vm1255
        %v1273 = vsel %vm1272, %v1266, 0
        %vm1274 = vcmp.ne.s32.totalorder %v702, 7
        %vm1275 = vcmp.ne.s32.totalorder %v703, 7
        %vm1276 = vcmp.ne.s32.totalorder %v704, 7
        %vm1277 = vcmp.ne.s32.totalorder %v705, 7
        %vm1278 = vcmp.ne.s32.totalorder %v706, 7
        %vm1279 = vcmp.ne.s32.totalorder %v707, 7
        %vm1280 = vcmp.ne.s32.totalorder %v708, 7
        %vm1281 = vcmp.ne.s32.totalorder %v709, 7
        %v1282 = vsel %vm1274, 1, 0
        %v1283 = vsel %vm1275, 1, 0
        %v1284 = vsel %vm1276, 1, 0
        %v1285 = vsel %vm1277, 1, 0
        %v1286 = vsel %vm1278, 1, 0
        %v1287 = vsel %vm1279, 1, 0
        %v1288 = vsel %vm1280, 1, 0
        %v1289 = vsel %vm1281, 1, 0
        %v1290 = vcvt.s32.f32 %v1282
        %v1291 = vcvt.s32.f32 %v1283
        %v1292 = vcvt.s32.f32 %v1284
        %v1293 = vcvt.s32.f32 %v1285
        %v1294 = vcvt.s32.f32 %v1286
        %v1295 = vcvt.s32.f32 %v1287
        %v1296 = vcvt.s32.f32 %v1288
        %v1297 = vcvt.s32.f32 %v1289
        %v1298 = vpack.c.bf16 %v1291, %v1290
        %v1299 = vpack.c.bf16 %v1293, %v1292
        %v1300 = vpack.c.bf16 %v1295, %v1294
        %v1301 = vpack.c.bf16 %v1297, %v1296
        %v1302 = vmul.bf16 %v1259, %v1298
        %v1303 = vmul.bf16 %v1262, %v1299
        %v1304 = vmul.bf16 %v1265, %v1300
        %v1305 = vmul.bf16 %v1273, %v1301
        %v1306 = vld [vmem:[#allocation2 + $0x190] sm:$0xf]
        %v1307 = vld [vmem:[#allocation2 + $0x194] sm:$0xf]
        %v1308 = vld [vmem:[#allocation2 + $0x198] sm:$0xf]
        %v1309 = vld [vmem:[#allocation2 + $0x19c] sm:$0xf]
        %v1310 = vld [vmem:[#allocation2 + $0x1a0] sm:$0xf]
        %v1311 = vld [vmem:[#allocation2 + $0x1a4] sm:$0xf]
        %v1312 = vld [vmem:[#allocation2 + $0x1a8] sm:$0xf]
        %v1313 = vld [vmem:[#allocation2 + $0x1ac] sm:$0xf]
        %v1314 = vld [vmem:[#allocation2 + $0x1b0] sm:$0xf]
        %v1315 = vld [vmem:[#allocation2 + $0x1b4] sm:$0xf]
        %v1316 = vld [vmem:[#allocation2 + $0x1b8] sm:$0xf]
        %v1317 = vld [vmem:[#allocation2 + $0x1bc] sm:$0xf]
        %v1318 = vld [vmem:[#allocation2 + $0x1c0] sm:$0xf]
        %v1319 = vld [vmem:[#allocation2 + $0x1c4] sm:$0xf]
        %v1320 = vld [vmem:[#allocation2 + $0x1c8] sm:$0xf]
        %v1321 = vld [vmem:[#allocation2 + $0x1cc] sm:$0xf]
        %v1322 = vld [vmem:[#allocation2 + $0x1d0] sm:$0xf]
        %v1323 = vld [vmem:[#allocation2 + $0x1d4] sm:$0xf]
        %v1324 = vld [vmem:[#allocation2 + $0x1d8] sm:$0xf]
        %v1325 = vld [vmem:[#allocation2 + $0x1dc] sm:$0xf]
        %v1326 = vld [vmem:[#allocation2 + $0x1e0] sm:$0xf]
        %v1327 = vld [vmem:[#allocation2 + $0x1e4] sm:$0xf]
        %v1328 = vld [vmem:[#allocation2 + $0x1e8] sm:$0xf]
        %v1329 = vld [vmem:[#allocation2 + $0x1ec] sm:$0xf]
        %v1330 = vld [vmem:[#allocation2 + $0x1f0] sm:$0xf]
        %v1331 = vld [vmem:[#allocation2 + $0x1f4] sm:$0xf]
        %v1332 = vld [vmem:[#allocation2 + $0x1f8] sm:$0xf]
        %v1333 = vld [vmem:[#allocation2 + $0x1fc] sm:$0xf]
        %v1334 = vld [vmem:[#allocation2 + $0x200] sm:$0xf]
        %v1335 = vld [vmem:[#allocation2 + $0x204] sm:$0xf]
        %v1336 = vld [vmem:[#allocation2 + $0x208] sm:$0xf]
        %v1337 = vld [vmem:[#allocation2 + $0x20c] sm:$0xf]
        %v1338 = vld [vmem:[#allocation2 + $0x210] sm:$0xf]
        %v1339 = vld [vmem:[#allocation2 + $0x214] sm:$0xf]
        %v1340 = vld [vmem:[#allocation2 + $0x218] sm:$0xf]
        %v1341 = vld [vmem:[#allocation2 + $0x21c] sm:$0xf]
        %v1342 = vld [vmem:[#allocation2 + $0x220] sm:$0xf]
        %v1343 = vld [vmem:[#allocation2 + $0x224] sm:$0xf]
        %v1344 = vld [vmem:[#allocation2 + $0x228] sm:$0xf]
        %v1345 = vld [vmem:[#allocation2 + $0x22c] sm:$0xf]
        %v1346 = vld [vmem:[#allocation2 + $0x230] sm:$0xf]
        %v1347 = vld [vmem:[#allocation2 + $0x234] sm:$0xf]
        %v1348 = vld [vmem:[#allocation2 + $0x238] sm:$0xf]
        %v1349 = vld [vmem:[#allocation2 + $0x23c] sm:$0xf]
        %v1350 = vld [vmem:[#allocation2 + $0x240] sm:$0xf]
        %v1351 = vld [vmem:[#allocation2 + $0x244] sm:$0xf]
        %v1352 = vld [vmem:[#allocation2 + $0x248] sm:$0xf]
        %v1353 = vld [vmem:[#allocation2 + $0x24c] sm:$0xf]
        %v1354 = vld [vmem:[%s2 + $0x3] sm:$0x1]
        %v1355 = vlaneseq
        %v1356 = vshrl.u32 %v1355, 7
        %v1357 = vsub.s32 0, %v1356
        %v1358 = vrot.slane %v1354, %v1357
        %v1407 = vunpack.c.l.b16 %v1306
        %v1408 = vunpack.c.l.b16 %v1307
        %v1409 = vunpack.c.l.b16 %v1308
        %v1410 = vunpack.c.l.b16 %v1309
        %v1411 = vunpack.c.l.b16 %v1310
        %v1412 = vunpack.c.l.b16 %v1311
        %v1413 = vunpack.c.l.b16 %v1312
        %v1414 = vunpack.c.l.b16 %v1313
        %v1415 = vunpack.c.l.b16 %v1314
        %v1416 = vunpack.c.l.b16 %v1315
        %v1417 = vunpack.c.l.b16 %v1316
        %v1418 = vunpack.c.l.b16 %v1317
        %v1419 = vunpack.c.l.b16 %v1318
        %v1420 = vunpack.c.l.b16 %v1319
        %v1421 = vunpack.c.l.b16 %v1320
        %v1422 = vunpack.c.l.b16 %v1321
        %v1423 = vunpack.c.l.b16 %v1322
        %v1424 = vunpack.c.l.b16 %v1323
        %v1425 = vunpack.c.l.b16 %v1324
        %v1426 = vunpack.c.l.b16 %v1325
        %v1427 = vunpack.c.l.b16 %v1326
        %v1428 = vunpack.c.l.b16 %v1327
        %v1429 = vunpack.c.l.b16 %v1328
        %v1430 = vunpack.c.l.b16 %v1329
        %v1431 = vunpack.c.l.b16 %v1330
        %v1432 = vunpack.c.l.b16 %v1331
        %v1433 = vunpack.c.l.b16 %v1332
        %v1434 = vunpack.c.l.b16 %v1333
        %v1435 = vunpack.c.l.b16 %v1334
        %v1436 = vunpack.c.l.b16 %v1335
        %v1437 = vunpack.c.l.b16 %v1336
        %v1438 = vunpack.c.l.b16 %v1337
        %v1439 = vunpack.c.l.b16 %v1338
        %v1440 = vunpack.c.l.b16 %v1339
        %v1441 = vunpack.c.l.b16 %v1340
        %v1442 = vunpack.c.l.b16 %v1341
        %v1443 = vunpack.c.l.b16 %v1342
        %v1444 = vunpack.c.l.b16 %v1343
        %v1445 = vunpack.c.l.b16 %v1344
        %v1446 = vunpack.c.l.b16 %v1345
        %v1447 = vunpack.c.l.b16 %v1346
        %v1448 = vunpack.c.l.b16 %v1347
        %v1449 = vunpack.c.l.b16 %v1348
        %v1450 = vunpack.c.l.b16 %v1349
        %v1451 = vunpack.c.l.b16 %v1350
        %v1452 = vunpack.c.l.b16 %v1351
        %v1453 = vunpack.c.l.b16 %v1352
        %v1454 = vunpack.c.l.b16 %v1353
        %v1455 = vpack.c.b16 %v1408, %v1407
        %v1456 = vpack.c.b16 %v1410, %v1409
        %v1457 = vpack.c.b16 %v1412, %v1411
        %v1458 = vpack.c.b16 %v1414, %v1413
        %v1459 = vpack.c.b16 %v1416, %v1415
        %v1460 = vpack.c.b16 %v1418, %v1417
        %v1461 = vpack.c.b16 %v1420, %v1419
        %v1462 = vpack.c.b16 %v1422, %v1421
        %v1463 = vpack.c.b16 %v1424, %v1423
        %v1464 = vpack.c.b16 %v1426, %v1425
        %v1465 = vpack.c.b16 %v1428, %v1427
        %v1466 = vpack.c.b16 %v1430, %v1429
        %v1467 = vpack.c.b16 %v1432, %v1431
        %v1468 = vpack.c.b16 %v1434, %v1433
        %v1469 = vpack.c.b16 %v1436, %v1435
        %v1470 = vpack.c.b16 %v1438, %v1437
        %v1471 = vpack.c.b16 %v1440, %v1439
        %v1472 = vpack.c.b16 %v1442, %v1441
        %v1473 = vpack.c.b16 %v1444, %v1443
        %v1474 = vpack.c.b16 %v1446, %v1445
        %v1475 = vpack.c.b16 %v1448, %v1447
        %v1476 = vpack.c.b16 %v1450, %v1449
        %v1477 = vpack.c.b16 %v1452, %v1451
        %v1478 = vpack.c.b16 %v1454, %v1453
        %1503 = vmatprep.subr.bf16.mxu0 0
        %1504 = vmatpush1.bf16.msra.mxu0 %v1462
        %1505 = vmatprep.subr.bf16.mxu0 0
        %1506 = vmatpush1.bf16.msra.mxu0 %v1461
        %1507 = vmatprep.subr.bf16.mxu0 0
        %1508 = vmatpush1.bf16.msra.mxu0 %v1460
        %1509 = vmatprep.subr.bf16.mxu0 0
        %1510 = vmatpush1.bf16.msra.mxu0 %v1459
        %1511 = vmatprep.subr.bf16.mxu0 0
        %1512 = vmatpush1.bf16.msra.mxu0 %v1458
        %1513 = vmatprep.subr.bf16.mxu0 0
        %1514 = vmatpush1.bf16.msra.mxu0 %v1457
        %1515 = vmatprep.subr.bf16.mxu0 0
        %1516 = vmatpush1.bf16.msra.mxu0 %v1456
        %1517 = vmatprep.subr.bf16.mxu0 0
        %1518 = vmatpush1.bf16.msra.mxu0 %v1455
        %1519 = vmatprep.subr.bf16.mxu0 0
        %1520 = vmatpush2.bf16.msra.mxu0 %v1470
        %1521 = vmatprep.subr.bf16.mxu0 0
        %1522 = vmatpush2.bf16.msra.mxu0 %v1469
        %1523 = vmatprep.subr.bf16.mxu0 0
        %1524 = vmatpush2.bf16.msra.mxu0 %v1468
        %1525 = vmatprep.subr.bf16.mxu0 0
        %1526 = vmatpush2.bf16.msra.mxu0 %v1467
        %1527 = vmatprep.subr.bf16.mxu0 0
        %1528 = vmatpush2.bf16.msra.mxu0 %v1466
        %1529 = vmatprep.subr.bf16.mxu0 0
        %1530 = vmatpush2.bf16.msra.mxu0 %v1465
        %1531 = vmatprep.subr.bf16.mxu0 0
        %1532 = vmatpush2.bf16.msra.mxu0 %v1464
        %1533 = vmatprep.subr.bf16.mxu0 0
        %1534 = vmatpush2.bf16.msra.mxu0 %v1463
        %1535 = vmatprep.mubr.bf16.mxu0 %v1077
        %1536 = vmatmul.mubr.bf16.gmra.mxu0 %v1251
        %v1537 = vpop.f32.mrf.mxu0
        %v1538 = vadd.f32 %v1358, %v1537
        %v1539 = vpop.f32.mrf.mxu0
        %v1540 = vpop.f32.mrf.mxu0
        %v1541 = vadd.f32 %v1358, %v1540
        %v1542 = vpop.f32.mrf.mxu0
        %1543 = vmatprep.mubr.bf16.mxu0 %v1078
        %1544 = vmatmul.mubr.bf16.gmra.mxu0 %v1252
        %v1545 = vpop.f32.mrf.mxu0
        %v1546 = vadd.f32 %v1358, %v1545
        %v1547 = vpop.f32.mrf.mxu0
        %v1548 = vpop.f32.mrf.mxu0
        %v1549 = vadd.f32 %v1358, %v1548
        %v1550 = vpop.f32.mrf.mxu0
        %1551 = vmatprep.mubr.bf16.mxu0 %v1079
        %1552 = vmatmul.mubr.bf16.gmra.mxu0 %v1253
        %v1553 = vpop.f32.mrf.mxu0
        %v1554 = vadd.f32 %v1358, %v1553
        %v1555 = vpop.f32.mrf.mxu0
        %v1556 = vpop.f32.mrf.mxu0
        %v1557 = vadd.f32 %v1358, %v1556
        %v1558 = vpop.f32.mrf.mxu0
        %1559 = vmatprep.mubr.bf16.mxu0 %v1080
        %1560 = vmatmul.mubr.bf16.gmra.mxu0 %v1254
        %v1561 = vpop.f32.mrf.mxu0
        %v1562 = vadd.f32 %v1358, %v1561
        %v1563 = vpop.f32.mrf.mxu0
        %v1564 = vpop.f32.mrf.mxu0
        %v1565 = vadd.f32 %v1358, %v1564
        %v1566 = vpop.f32.mrf.mxu0
        %1567 = vdwg.mxu0
        %1568 = vmatprep.subr.bf16.mxu0 0
        %1569 = vmatpush1.bf16.msra.mxu0 %v1478
        %1570 = vmatprep.subr.bf16.mxu0 0
        %1571 = vmatpush1.bf16.msra.mxu0 %v1477
        %1572 = vmatprep.subr.bf16.mxu0 0
        %1573 = vmatpush1.bf16.msra.mxu0 %v1476
        %1574 = vmatprep.subr.bf16.mxu0 0
        %1575 = vmatpush1.bf16.msra.mxu0 %v1475
        %1576 = vmatprep.subr.bf16.mxu0 0
        %1577 = vmatpush1.bf16.msra.mxu0 %v1474
        %1578 = vmatprep.subr.bf16.mxu0 0
        %1579 = vmatpush1.bf16.msra.mxu0 %v1473
        %1580 = vmatprep.subr.bf16.mxu0 0
        %1581 = vmatpush1.bf16.msra.mxu0 %v1472
        %1582 = vmatprep.subr.bf16.mxu0 0
        %1583 = vmatpush1.bf16.msra.mxu0 %v1471
        %1584 = vmatprep.subr.bf16.mxu0 0
        %1585 = vmatpush2.bf16.msra.mxu0 0
        %1586 = vmatprep.subr.bf16.mxu0 0
        %1587 = vmatpush2.bf16.msra.mxu0 0
        %1588 = vmatprep.subr.bf16.mxu0 0
        %1589 = vmatpush2.bf16.msra.mxu0 0
        %1590 = vmatprep.subr.bf16.mxu0 0
        %1591 = vmatpush2.bf16.msra.mxu0 0
        %1592 = vmatprep.subr.bf16.mxu0 0
        %1593 = vmatpush2.bf16.msra.mxu0 0
        %1594 = vmatprep.subr.bf16.mxu0 0
        %1595 = vmatpush2.bf16.msra.mxu0 0
        %1596 = vmatprep.subr.bf16.mxu0 0
        %1597 = vmatpush2.bf16.msra.mxu0 0
        %1598 = vmatprep.subr.bf16.mxu0 0
        %1599 = vmatpush2.bf16.msra.mxu0 0
        %1600 = vmatprep.mubr.bf16.mxu0 0
        %1601 = vmatmul.mubr.bf16.gmra.mxu0 %v1302
        %v1602 = vpop.f32.mrf.mxu0
        %v1603 = vadd.f32 %v1538, %v1602
        %v1604 = vpop.f32.mrf.mxu0
        %v1605 = vpop.f32.mrf.mxu0
        %v1606 = vadd.f32 %v1541, %v1605
        %v1607 = vpop.f32.mrf.mxu0
        %1608 = vmatprep.mubr.bf16.mxu0 0
        %1609 = vmatmul.mubr.bf16.gmra.mxu0 %v1303
        %v1610 = vpop.f32.mrf.mxu0
        %v1611 = vadd.f32 %v1546, %v1610
        %v1612 = vpop.f32.mrf.mxu0
        %v1613 = vpop.f32.mrf.mxu0
        %v1614 = vadd.f32 %v1549, %v1613
        %v1615 = vpop.f32.mrf.mxu0
        %1616 = vmatprep.mubr.bf16.mxu0 0
        %1617 = vmatmul.mubr.bf16.gmra.mxu0 %v1304
        %v1618 = vpop.f32.mrf.mxu0
        %v1619 = vadd.f32 %v1554, %v1618
        %v1620 = vpop.f32.mrf.mxu0
        %v1621 = vpop.f32.mrf.mxu0
        %v1622 = vadd.f32 %v1557, %v1621
        %v1623 = vpop.f32.mrf.mxu0
        %1624 = vmatprep.mubr.bf16.mxu0 0
        %1625 = vmatmul.mubr.bf16.gmra.mxu0 %v1305
        %v1626 = vpop.f32.mrf.mxu0
        %v1627 = vadd.f32 %v1562, %v1626
        %v1628 = vpop.f32.mrf.mxu0
        %v1629 = vpop.f32.mrf.mxu0
        %v1630 = vadd.f32 %v1565, %v1629
        %v1631 = vpop.f32.mrf.mxu0
        %1632 = vdwg.mxu0
        %v1633 = vadd.f32 %v1603, %v1185
        %v1634 = vadd.f32 %v1606, %v1188
        %v1635 = vadd.f32 %v1611, %v1193
        %v1636 = vadd.f32 %v1614, %v1196
        %v1637 = vadd.f32 %v1619, %v1201
        %v1638 = vadd.f32 %v1622, %v1204
        %v1639 = vadd.f32 %v1627, %v1209
        %v1640 = vadd.f32 %v1630, %v1212
        %v1641 = vmax.f32 %v1633, 0.0
        %v1642 = vmax.f32 %v1634, 0.0
        %v1643 = vmax.f32 %v1635, 0.0
        %v1644 = vmax.f32 %v1636, 0.0
        %v1645 = vmax.f32 %v1637, 0.0
        %v1646 = vmax.f32 %v1638, 0.0
        %v1647 = vmax.f32 %v1639, 0.0
        %v1648 = vmax.f32 %v1640, 0.0
        %v1649 = vpack.c.bf16 %v1642, %v1641
        %v1650 = vpack.c.bf16 %v1644, %v1643
        %v1651 = vpack.c.bf16 %v1646, %v1645
        %v1652 = vpack.c.bf16 %v1648, %v1647
        %v1654 = vshrl.u32 %v1649, 16
        %v1656 = vrot.slane %v1654, 7
        %v1657 = vshll.u32 %v1649, 16
        %v1659 = vor.u32 %v1656, %v1657
        %v1661 = vshrl.u32 %v1650, 16
        %v1663 = vrot.slane %v1661, 7
        %v1664 = vshll.u32 %v1650, 16
        %v1666 = vor.u32 %v1663, %v1664
        %v1667 = vsel %vm654, %v1656, %v1666
        %v1669 = vshrl.u32 %v1651, 16
        %v1671 = vrot.slane %v1669, 7
        %v1672 = vshll.u32 %v1651, 16
        %v1674 = vor.u32 %v1671, %v1672
        %v1675 = vsel %vm654, %v1663, %v1674
        %v1677 = vshrl.u32 %v1652, 16
        %v1679 = vrot.slane %v1677, 7
        %v1680 = vshll.u32 %v1652, 16
        %v1682 = vor.u32 %v1679, %v1680
        %v1683 = vsel %vm654, %v1671, %v1682
        %v1688 = vsel %vm691, 0, %v1659
        %v1689 = vmul.bf16 %v1688, %v734
        %v1690 = vmul.bf16 %v1667, %v735
        %v1691 = vmul.bf16 %v1675, %v736
        %v1692 = vmul.bf16 %v1683, %v737
        %v1693 = vrot.slane %v1657, 1
        %v1694 = vor.u32 %v1654, %v1693
        %v1695 = vrot.slane %v1664, 1
        %v1696 = vsel %vm1255, %v1694, %v1695
        %v1697 = vor.u32 %v1661, %v1695
        %v1698 = vrot.slane %v1672, 1
        %v1699 = vsel %vm1255, %v1697, %v1698
        %v1700 = vor.u32 %v1669, %v1698
        %v1701 = vrot.slane %v1680, 1
        %v1702 = vsel %vm1255, %v1700, %v1701
        %v1703 = vor.u32 %v1677, %v1701
        %v1708 = vsel %vm1272, %v1703, 0
        %v1709 = vmul.bf16 %v1696, %v1298
        %v1710 = vmul.bf16 %v1699, %v1299
        %v1711 = vmul.bf16 %v1702, %v1300
        %v1712 = vmul.bf16 %v1708, %v1301
        %v1713 = vld [vmem:[#allocation2 + $0x250] sm:$0xf]
        %v1714 = vld [vmem:[#allocation2 + $0x254] sm:$0xf]
        %v1715 = vld [vmem:[#allocation2 + $0x258] sm:$0xf]
        %v1716 = vld [vmem:[#allocation2 + $0x25c] sm:$0xf]
        %v1717 = vld [vmem:[#allocation2 + $0x260] sm:$0xf]
        %v1718 = vld [vmem:[#allocation2 + $0x264] sm:$0xf]
        %v1719 = vld [vmem:[#allocation2 + $0x268] sm:$0xf]
        %v1720 = vld [vmem:[#allocation2 + $0x26c] sm:$0xf]
        %v1721 = vld [vmem:[#allocation2 + $0x270] sm:$0xf]
        %v1722 = vld [vmem:[#allocation2 + $0x274] sm:$0xf]
        %v1723 = vld [vmem:[#allocation2 + $0x278] sm:$0xf]
        %v1724 = vld [vmem:[#allocation2 + $0x27c] sm:$0xf]
        %v1725 = vld [vmem:[#allocation2 + $0x280] sm:$0xf]
        %v1726 = vld [vmem:[#allocation2 + $0x284] sm:$0xf]
        %v1727 = vld [vmem:[#allocation2 + $0x288] sm:$0xf]
        %v1728 = vld [vmem:[#allocation2 + $0x28c] sm:$0xf]
        %v1729 = vld [vmem:[#allocation2 + $0x290] sm:$0xf]
        %v1730 = vld [vmem:[#allocation2 + $0x294] sm:$0xf]
        %v1731 = vld [vmem:[#allocation2 + $0x298] sm:$0xf]
        %v1732 = vld [vmem:[#allocation2 + $0x29c] sm:$0xf]
        %v1733 = vld [vmem:[#allocation2 + $0x2a0] sm:$0xf]
        %v1734 = vld [vmem:[#allocation2 + $0x2a4] sm:$0xf]
        %v1735 = vld [vmem:[#allocation2 + $0x2a8] sm:$0xf]
        %v1736 = vld [vmem:[#allocation2 + $0x2ac] sm:$0xf]
        %v1737 = vld [vmem:[#allocation2 + $0x2b0] sm:$0xf]
        %v1738 = vld [vmem:[#allocation2 + $0x2b4] sm:$0xf]
        %v1739 = vld [vmem:[#allocation2 + $0x2b8] sm:$0xf]
        %v1740 = vld [vmem:[#allocation2 + $0x2bc] sm:$0xf]
        %v1741 = vld [vmem:[#allocation2 + $0x2c0] sm:$0xf]
        %v1742 = vld [vmem:[#allocation2 + $0x2c4] sm:$0xf]
        %v1743 = vld [vmem:[#allocation2 + $0x2c8] sm:$0xf]
        %v1744 = vld [vmem:[#allocation2 + $0x2cc] sm:$0xf]
        %v1745 = vld [vmem:[#allocation2 + $0x2d0] sm:$0xf]
        %v1746 = vld [vmem:[#allocation2 + $0x2d4] sm:$0xf]
        %v1747 = vld [vmem:[#allocation2 + $0x2d8] sm:$0xf]
        %v1748 = vld [vmem:[#allocation2 + $0x2dc] sm:$0xf]
        %v1749 = vld [vmem:[#allocation2 + $0x2e0] sm:$0xf]
        %v1750 = vld [vmem:[#allocation2 + $0x2e4] sm:$0xf]
        %v1751 = vld [vmem:[#allocation2 + $0x2e8] sm:$0xf]
        %v1752 = vld [vmem:[#allocation2 + $0x2ec] sm:$0xf]
        %v1753 = vld [vmem:[#allocation2 + $0x2f0] sm:$0xf]
        %v1754 = vld [vmem:[#allocation2 + $0x2f4] sm:$0xf]
        %v1755 = vld [vmem:[#allocation2 + $0x2f8] sm:$0xf]
        %v1756 = vld [vmem:[#allocation2 + $0x2fc] sm:$0xf]
        %v1757 = vld [vmem:[#allocation2 + $0x300] sm:$0xf]
        %v1758 = vld [vmem:[#allocation2 + $0x304] sm:$0xf]
        %v1759 = vld [vmem:[#allocation2 + $0x308] sm:$0xf]
        %v1760 = vld [vmem:[#allocation2 + $0x30c] sm:$0xf]
        %v1761 = vld [vmem:[%s2 + $0x4] sm:$0x1]
        %v1762 = vlaneseq
        %v1763 = vshrl.u32 %v1762, 7
        %v1764 = vsub.s32 0, %v1763
        %v1765 = vrot.slane %v1761, %v1764
        %v1814 = vunpack.c.l.b16 %v1713
        %v1815 = vunpack.c.l.b16 %v1714
        %v1816 = vunpack.c.l.b16 %v1715
        %v1817 = vunpack.c.l.b16 %v1716
        %v1818 = vunpack.c.l.b16 %v1717
        %v1819 = vunpack.c.l.b16 %v1718
        %v1820 = vunpack.c.l.b16 %v1719
        %v1821 = vunpack.c.l.b16 %v1720
        %v1822 = vunpack.c.l.b16 %v1721
        %v1823 = vunpack.c.l.b16 %v1722
        %v1824 = vunpack.c.l.b16 %v1723
        %v1825 = vunpack.c.l.b16 %v1724
        %v1826 = vunpack.c.l.b16 %v1725
        %v1827 = vunpack.c.l.b16 %v1726
        %v1828 = vunpack.c.l.b16 %v1727
        %v1829 = vunpack.c.l.b16 %v1728
        %v1830 = vunpack.c.l.b16 %v1729
        %v1831 = vunpack.c.l.b16 %v1730
        %v1832 = vunpack.c.l.b16 %v1731
        %v1833 = vunpack.c.l.b16 %v1732
        %v1834 = vunpack.c.l.b16 %v1733
        %v1835 = vunpack.c.l.b16 %v1734
        %v1836 = vunpack.c.l.b16 %v1735
        %v1837 = vunpack.c.l.b16 %v1736
        %v1838 = vunpack.c.l.b16 %v1737
        %v1839 = vunpack.c.l.b16 %v1738
        %v1840 = vunpack.c.l.b16 %v1739
        %v1841 = vunpack.c.l.b16 %v1740
        %v1842 = vunpack.c.l.b16 %v1741
        %v1843 = vunpack.c.l.b16 %v1742
        %v1844 = vunpack.c.l.b16 %v1743
        %v1845 = vunpack.c.l.b16 %v1744
        %v1846 = vunpack.c.l.b16 %v1745
        %v1847 = vunpack.c.l.b16 %v1746
        %v1848 = vunpack.c.l.b16 %v1747
        %v1849 = vunpack.c.l.b16 %v1748
        %v1850 = vunpack.c.l.b16 %v1749
        %v1851 = vunpack.c.l.b16 %v1750
        %v1852 = vunpack.c.l.b16 %v1751
        %v1853 = vunpack.c.l.b16 %v1752
        %v1854 = vunpack.c.l.b16 %v1753
        %v1855 = vunpack.c.l.b16 %v1754
        %v1856 = vunpack.c.l.b16 %v1755
        %v1857 = vunpack.c.l.b16 %v1756
        %v1858 = vunpack.c.l.b16 %v1757
        %v1859 = vunpack.c.l.b16 %v1758
        %v1860 = vunpack.c.l.b16 %v1759
        %v1861 = vunpack.c.l.b16 %v1760
        %v1862 = vpack.c.b16 %v1815, %v1814
        %v1863 = vpack.c.b16 %v1817, %v1816
        %v1864 = vpack.c.b16 %v1819, %v1818
        %v1865 = vpack.c.b16 %v1821, %v1820
        %v1866 = vpack.c.b16 %v1823, %v1822
        %v1867 = vpack.c.b16 %v1825, %v1824
        %v1868 = vpack.c.b16 %v1827, %v1826
        %v1869 = vpack.c.b16 %v1829, %v1828
        %v1870 = vpack.c.b16 %v1831, %v1830
        %v1871 = vpack.c.b16 %v1833, %v1832
        %v1872 = vpack.c.b16 %v1835, %v1834
        %v1873 = vpack.c.b16 %v1837, %v1836
        %v1874 = vpack.c.b16 %v1839, %v1838
        %v1875 = vpack.c.b16 %v1841, %v1840
        %v1876 = vpack.c.b16 %v1843, %v1842
        %v1877 = vpack.c.b16 %v1845, %v1844
        %v1878 = vpack.c.b16 %v1847, %v1846
        %v1879 = vpack.c.b16 %v1849, %v1848
        %v1880 = vpack.c.b16 %v1851, %v1850
        %v1881 = vpack.c.b16 %v1853, %v1852
        %v1882 = vpack.c.b16 %v1855, %v1854
        %v1883 = vpack.c.b16 %v1857, %v1856
        %v1884 = vpack.c.b16 %v1859, %v1858
        %v1885 = vpack.c.b16 %v1861, %v1860
        %1910 = vmatprep.subr.bf16.mxu0 0
        %1911 = vmatpush1.bf16.msra.mxu0 %v1869
        %1912 = vmatprep.subr.bf16.mxu0 0
        %1913 = vmatpush1.bf16.msra.mxu0 %v1868
        %1914 = vmatprep.subr.bf16.mxu0 0
        %1915 = vmatpush1.bf16.msra.mxu0 %v1867
        %1916 = vmatprep.subr.bf16.mxu0 0
        %1917 = vmatpush1.bf16.msra.mxu0 %v1866
        %1918 = vmatprep.subr.bf16.mxu0 0
        %1919 = vmatpush1.bf16.msra.mxu0 %v1865
        %1920 = vmatprep.subr.bf16.mxu0 0
        %1921 = vmatpush1.bf16.msra.mxu0 %v1864
        %1922 = vmatprep.subr.bf16.mxu0 0
        %1923 = vmatpush1.bf16.msra.mxu0 %v1863
        %1924 = vmatprep.subr.bf16.mxu0 0
        %1925 = vmatpush1.bf16.msra.mxu0 %v1862
        %1926 = vmatprep.subr.bf16.mxu0 0
        %1927 = vmatpush2.bf16.msra.mxu0 %v1877
        %1928 = vmatprep.subr.bf16.mxu0 0
        %1929 = vmatpush2.bf16.msra.mxu0 %v1876
        %1930 = vmatprep.subr.bf16.mxu0 0
        %1931 = vmatpush2.bf16.msra.mxu0 %v1875
        %1932 = vmatprep.subr.bf16.mxu0 0
        %1933 = vmatpush2.bf16.msra.mxu0 %v1874
        %1934 = vmatprep.subr.bf16.mxu0 0
        %1935 = vmatpush2.bf16.msra.mxu0 %v1873
        %1936 = vmatprep.subr.bf16.mxu0 0
        %1937 = vmatpush2.bf16.msra.mxu0 %v1872
        %1938 = vmatprep.subr.bf16.mxu0 0
        %1939 = vmatpush2.bf16.msra.mxu0 %v1871
        %1940 = vmatprep.subr.bf16.mxu0 0
        %1941 = vmatpush2.bf16.msra.mxu0 %v1870
        %1942 = vmatprep.mubr.bf16.mxu0 %v1649
        %1943 = vmatmul.mubr.bf16.gmra.mxu0 %v1689
        %v1944 = vpop.f32.mrf.mxu0
        %v1945 = vadd.f32 %v1765, %v1944
        %v1946 = vpop.f32.mrf.mxu0
        %v1947 = vpop.f32.mrf.mxu0
        %v1948 = vadd.f32 %v1765, %v1947
        %v1949 = vpop.f32.mrf.mxu0
        %1950 = vmatprep.mubr.bf16.mxu0 %v1650
        %1951 = vmatmul.mubr.bf16.gmra.mxu0 %v1690
        %v1952 = vpop.f32.mrf.mxu0
        %v1953 = vadd.f32 %v1765, %v1952
        %v1954 = vpop.f32.mrf.mxu0
        %v1955 = vpop.f32.mrf.mxu0
        %v1956 = vadd.f32 %v1765, %v1955
        %v1957 = vpop.f32.mrf.mxu0
        %1958 = vmatprep.mubr.bf16.mxu0 %v1651
        %1959 = vmatmul.mubr.bf16.gmra.mxu0 %v1691
        %v1960 = vpop.f32.mrf.mxu0
        %v1961 = vadd.f32 %v1765, %v1960
        %v1962 = vpop.f32.mrf.mxu0
        %v1963 = vpop.f32.mrf.mxu0
        %v1964 = vadd.f32 %v1765, %v1963
        %v1965 = vpop.f32.mrf.mxu0
        %1966 = vmatprep.mubr.bf16.mxu0 %v1652
        %1967 = vmatmul.mubr.bf16.gmra.mxu0 %v1692
        %v1968 = vpop.f32.mrf.mxu0
        %v1969 = vadd.f32 %v1765, %v1968
        %v1970 = vpop.f32.mrf.mxu0
        %v1971 = vpop.f32.mrf.mxu0
        %v1972 = vadd.f32 %v1765, %v1971
        %v1973 = vpop.f32.mrf.mxu0
        %1974 = vdwg.mxu0
        %1975 = vmatprep.subr.bf16.mxu0 0
        %1976 = vmatpush1.bf16.msra.mxu0 %v1885
        %1977 = vmatprep.subr.bf16.mxu0 0
        %1978 = vmatpush1.bf16.msra.mxu0 %v1884
        %1979 = vmatprep.subr.bf16.mxu0 0
        %1980 = vmatpush1.bf16.msra.mxu0 %v1883
        %1981 = vmatprep.subr.bf16.mxu0 0
        %1982 = vmatpush1.bf16.msra.mxu0 %v1882
        %1983 = vmatprep.subr.bf16.mxu0 0
        %1984 = vmatpush1.bf16.msra.mxu0 %v1881
        %1985 = vmatprep.subr.bf16.mxu0 0
        %1986 = vmatpush1.bf16.msra.mxu0 %v1880
        %1987 = vmatprep.subr.bf16.mxu0 0
        %1988 = vmatpush1.bf16.msra.mxu0 %v1879
        %1989 = vmatprep.subr.bf16.mxu0 0
        %1990 = vmatpush1.bf16.msra.mxu0 %v1878
        %1991 = vmatprep.subr.bf16.mxu0 0
        %1992 = vmatpush2.bf16.msra.mxu0 0
        %1993 = vmatprep.subr.bf16.mxu0 0
        %1994 = vmatpush2.bf16.msra.mxu0 0
        %1995 = vmatprep.subr.bf16.mxu0 0
        %1996 = vmatpush2.bf16.msra.mxu0 0
        %1997 = vmatprep.subr.bf16.mxu0 0
        %1998 = vmatpush2.bf16.msra.mxu0 0
        %1999 = vmatprep.subr.bf16.mxu0 0
        %2000 = vmatpush2.bf16.msra.mxu0 0
        %2001 = vmatprep.subr.bf16.mxu0 0
        %2002 = vmatpush2.bf16.msra.mxu0 0
        %2003 = vmatprep.subr.bf16.mxu0 0
        %2004 = vmatpush2.bf16.msra.mxu0 0
        %2005 = vmatprep.subr.bf16.mxu0 0
        %2006 = vmatpush2.bf16.msra.mxu0 0
        %2007 = vmatprep.mubr.bf16.mxu0 0
        %2008 = vmatmul.mubr.bf16.gmra.mxu0 %v1709
        %v2009 = vpop.f32.mrf.mxu0
        %v2010 = vadd.f32 %v1945, %v2009
        %v2011 = vpop.f32.mrf.mxu0
        %v2012 = vpop.f32.mrf.mxu0
        %v2013 = vadd.f32 %v1948, %v2012
        %v2014 = vpop.f32.mrf.mxu0
        %2015 = vmatprep.mubr.bf16.mxu0 0
        %2016 = vmatmul.mubr.bf16.gmra.mxu0 %v1710
        %v2017 = vpop.f32.mrf.mxu0
        %v2018 = vadd.f32 %v1953, %v2017
        %v2019 = vpop.f32.mrf.mxu0
        %v2020 = vpop.f32.mrf.mxu0
        %v2021 = vadd.f32 %v1956, %v2020
        %v2022 = vpop.f32.mrf.mxu0
        %2023 = vmatprep.mubr.bf16.mxu0 0
        %2024 = vmatmul.mubr.bf16.gmra.mxu0 %v1711
        %v2025 = vpop.f32.mrf.mxu0
        %v2026 = vadd.f32 %v1961, %v2025
        %v2027 = vpop.f32.mrf.mxu0
        %v2028 = vpop.f32.mrf.mxu0
        %v2029 = vadd.f32 %v1964, %v2028
        %v2030 = vpop.f32.mrf.mxu0
        %2031 = vmatprep.mubr.bf16.mxu0 0
        %2032 = vmatmul.mubr.bf16.gmra.mxu0 %v1712
        %v2033 = vpop.f32.mrf.mxu0
        %v2034 = vadd.f32 %v1969, %v2033
        %v2035 = vpop.f32.mrf.mxu0
        %v2036 = vpop.f32.mrf.mxu0
        %v2037 = vadd.f32 %v1972, %v2036
        %v2038 = vpop.f32.mrf.mxu0
        %2039 = vdwg.mxu0
        %v2040 = vmax.f32 %v2010, 0.0
        %v2041 = vmax.f32 %v2013, 0.0
        %v2042 = vmax.f32 %v2018, 0.0
        %v2043 = vmax.f32 %v2021, 0.0
        %v2044 = vmax.f32 %v2026, 0.0
        %v2045 = vmax.f32 %v2029, 0.0
        %v2046 = vmax.f32 %v2034, 0.0
        %v2047 = vmax.f32 %v2037, 0.0
        %v2048 = vpack.c.bf16 %v2041, %v2040
        %v2049 = vpack.c.bf16 %v2043, %v2042
        %v2050 = vpack.c.bf16 %v2045, %v2044
        %v2051 = vpack.c.bf16 %v2047, %v2046
        %v2053 = vshrl.u32 %v2048, 16
        %v2055 = vrot.slane %v2053, 7
        %v2056 = vshll.u32 %v2048, 16
        %v2058 = vor.u32 %v2055, %v2056
        %v2060 = vshrl.u32 %v2049, 16
        %v2062 = vrot.slane %v2060, 7
        %v2063 = vshll.u32 %v2049, 16
        %v2065 = vor.u32 %v2062, %v2063
        %v2066 = vsel %vm654, %v2055, %v2065
        %v2068 = vshrl.u32 %v2050, 16
        %v2070 = vrot.slane %v2068, 7
        %v2071 = vshll.u32 %v2050, 16
        %v2073 = vor.u32 %v2070, %v2071
        %v2074 = vsel %vm654, %v2062, %v2073
        %v2076 = vshrl.u32 %v2051, 16
        %v2078 = vrot.slane %v2076, 7
        %v2079 = vshll.u32 %v2051, 16
        %v2081 = vor.u32 %v2078, %v2079
        %v2082 = vsel %vm654, %v2070, %v2081
        %v2087 = vsel %vm691, 0, %v2058
        %v2088 = vmul.bf16 %v2087, %v734
        %v2089 = vmul.bf16 %v2066, %v735
        %v2090 = vmul.bf16 %v2074, %v736
        %v2091 = vmul.bf16 %v2082, %v737
        %v2092 = vrot.slane %v2056, 1
        %v2093 = vor.u32 %v2053, %v2092
        %v2094 = vrot.slane %v2063, 1
        %v2095 = vsel %vm1255, %v2093, %v2094
        %v2096 = vor.u32 %v2060, %v2094
        %v2097 = vrot.slane %v2071, 1
        %v2098 = vsel %vm1255, %v2096, %v2097
        %v2099 = vor.u32 %v2068, %v2097
        %v2100 = vrot.slane %v2079, 1
        %v2101 = vsel %vm1255, %v2099, %v2100
        %v2102 = vor.u32 %v2076, %v2100
        %v2107 = vsel %vm1272, %v2102, 0
        %v2108 = vmul.bf16 %v2095, %v1298
        %v2109 = vmul.bf16 %v2098, %v1299
        %v2110 = vmul.bf16 %v2101, %v1300
        %v2111 = vmul.bf16 %v2107, %v1301
        %v2112 = vld [vmem:[#allocation2 + $0x310] sm:$0xf]
        %v2113 = vld [vmem:[#allocation2 + $0x314] sm:$0xf]
        %v2114 = vld [vmem:[#allocation2 + $0x318] sm:$0xf]
        %v2115 = vld [vmem:[#allocation2 + $0x31c] sm:$0xf]
        %v2116 = vld [vmem:[#allocation2 + $0x320] sm:$0xf]
        %v2117 = vld [vmem:[#allocation2 + $0x324] sm:$0xf]
        %v2118 = vld [vmem:[#allocation2 + $0x328] sm:$0xf]
        %v2119 = vld [vmem:[#allocation2 + $0x32c] sm:$0xf]
        %v2120 = vld [vmem:[#allocation2 + $0x330] sm:$0xf]
        %v2121 = vld [vmem:[#allocation2 + $0x334] sm:$0xf]
        %v2122 = vld [vmem:[#allocation2 + $0x338] sm:$0xf]
        %v2123 = vld [vmem:[#allocation2 + $0x33c] sm:$0xf]
        %v2124 = vld [vmem:[#allocation2 + $0x340] sm:$0xf]
        %v2125 = vld [vmem:[#allocation2 + $0x344] sm:$0xf]
        %v2126 = vld [vmem:[#allocation2 + $0x348] sm:$0xf]
        %v2127 = vld [vmem:[#allocation2 + $0x34c] sm:$0xf]
        %v2128 = vld [vmem:[#allocation2 + $0x350] sm:$0xf]
        %v2129 = vld [vmem:[#allocation2 + $0x354] sm:$0xf]
        %v2130 = vld [vmem:[#allocation2 + $0x358] sm:$0xf]
        %v2131 = vld [vmem:[#allocation2 + $0x35c] sm:$0xf]
        %v2132 = vld [vmem:[#allocation2 + $0x360] sm:$0xf]
        %v2133 = vld [vmem:[#allocation2 + $0x364] sm:$0xf]
        %v2134 = vld [vmem:[#allocation2 + $0x368] sm:$0xf]
        %v2135 = vld [vmem:[#allocation2 + $0x36c] sm:$0xf]
        %v2136 = vld [vmem:[#allocation2 + $0x370] sm:$0xf]
        %v2137 = vld [vmem:[#allocation2 + $0x374] sm:$0xf]
        %v2138 = vld [vmem:[#allocation2 + $0x378] sm:$0xf]
        %v2139 = vld [vmem:[#allocation2 + $0x37c] sm:$0xf]
        %v2140 = vld [vmem:[#allocation2 + $0x380] sm:$0xf]
        %v2141 = vld [vmem:[#allocation2 + $0x384] sm:$0xf]
        %v2142 = vld [vmem:[#allocation2 + $0x388] sm:$0xf]
        %v2143 = vld [vmem:[#allocation2 + $0x38c] sm:$0xf]
        %v2144 = vld [vmem:[#allocation2 + $0x390] sm:$0xf]
        %v2145 = vld [vmem:[#allocation2 + $0x394] sm:$0xf]
        %v2146 = vld [vmem:[#allocation2 + $0x398] sm:$0xf]
        %v2147 = vld [vmem:[#allocation2 + $0x39c] sm:$0xf]
        %v2148 = vld [vmem:[#allocation2 + $0x3a0] sm:$0xf]
        %v2149 = vld [vmem:[#allocation2 + $0x3a4] sm:$0xf]
        %v2150 = vld [vmem:[#allocation2 + $0x3a8] sm:$0xf]
        %v2151 = vld [vmem:[#allocation2 + $0x3ac] sm:$0xf]
        %v2152 = vld [vmem:[#allocation2 + $0x3b0] sm:$0xf]
        %v2153 = vld [vmem:[#allocation2 + $0x3b4] sm:$0xf]
        %v2154 = vld [vmem:[#allocation2 + $0x3b8] sm:$0xf]
        %v2155 = vld [vmem:[#allocation2 + $0x3bc] sm:$0xf]
        %v2156 = vld [vmem:[#allocation2 + $0x3c0] sm:$0xf]
        %v2157 = vld [vmem:[#allocation2 + $0x3c4] sm:$0xf]
        %v2158 = vld [vmem:[#allocation2 + $0x3c8] sm:$0xf]
        %v2159 = vld [vmem:[#allocation2 + $0x3cc] sm:$0xf]
        %v2160 = vld [vmem:[%s2 + $0x5] sm:$0x1]
        %v2161 = vlaneseq
        %v2162 = vshrl.u32 %v2161, 7
        %v2163 = vsub.s32 0, %v2162
        %v2164 = vrot.slane %v2160, %v2163
        %v2213 = vunpack.c.l.b16 %v2112
        %v2214 = vunpack.c.l.b16 %v2113
        %v2215 = vunpack.c.l.b16 %v2114
        %v2216 = vunpack.c.l.b16 %v2115
        %v2217 = vunpack.c.l.b16 %v2116
        %v2218 = vunpack.c.l.b16 %v2117
        %v2219 = vunpack.c.l.b16 %v2118
        %v2220 = vunpack.c.l.b16 %v2119
        %v2221 = vunpack.c.l.b16 %v2120
        %v2222 = vunpack.c.l.b16 %v2121
        %v2223 = vunpack.c.l.b16 %v2122
        %v2224 = vunpack.c.l.b16 %v2123
        %v2225 = vunpack.c.l.b16 %v2124
        %v2226 = vunpack.c.l.b16 %v2125
        %v2227 = vunpack.c.l.b16 %v2126
        %v2228 = vunpack.c.l.b16 %v2127
        %v2229 = vunpack.c.l.b16 %v2128
        %v2230 = vunpack.c.l.b16 %v2129
        %v2231 = vunpack.c.l.b16 %v2130
        %v2232 = vunpack.c.l.b16 %v2131
        %v2233 = vunpack.c.l.b16 %v2132
        %v2234 = vunpack.c.l.b16 %v2133
        %v2235 = vunpack.c.l.b16 %v2134
        %v2236 = vunpack.c.l.b16 %v2135
        %v2237 = vunpack.c.l.b16 %v2136
        %v2238 = vunpack.c.l.b16 %v2137
        %v2239 = vunpack.c.l.b16 %v2138
        %v2240 = vunpack.c.l.b16 %v2139
        %v2241 = vunpack.c.l.b16 %v2140
        %v2242 = vunpack.c.l.b16 %v2141
        %v2243 = vunpack.c.l.b16 %v2142
        %v2244 = vunpack.c.l.b16 %v2143
        %v2245 = vunpack.c.l.b16 %v2144
        %v2246 = vunpack.c.l.b16 %v2145
        %v2247 = vunpack.c.l.b16 %v2146
        %v2248 = vunpack.c.l.b16 %v2147
        %v2249 = vunpack.c.l.b16 %v2148
        %v2250 = vunpack.c.l.b16 %v2149
        %v2251 = vunpack.c.l.b16 %v2150
        %v2252 = vunpack.c.l.b16 %v2151
        %v2253 = vunpack.c.l.b16 %v2152
        %v2254 = vunpack.c.l.b16 %v2153
        %v2255 = vunpack.c.l.b16 %v2154
        %v2256 = vunpack.c.l.b16 %v2155
        %v2257 = vunpack.c.l.b16 %v2156
        %v2258 = vunpack.c.l.b16 %v2157
        %v2259 = vunpack.c.l.b16 %v2158
        %v2260 = vunpack.c.l.b16 %v2159
        %v2261 = vpack.c.b16 %v2214, %v2213
        %v2262 = vpack.c.b16 %v2216, %v2215
        %v2263 = vpack.c.b16 %v2218, %v2217
        %v2264 = vpack.c.b16 %v2220, %v2219
        %v2265 = vpack.c.b16 %v2222, %v2221
        %v2266 = vpack.c.b16 %v2224, %v2223
        %v2267 = vpack.c.b16 %v2226, %v2225
        %v2268 = vpack.c.b16 %v2228, %v2227
        %v2269 = vpack.c.b16 %v2230, %v2229
        %v2270 = vpack.c.b16 %v2232, %v2231
        %v2271 = vpack.c.b16 %v2234, %v2233
        %v2272 = vpack.c.b16 %v2236, %v2235
        %v2273 = vpack.c.b16 %v2238, %v2237
        %v2274 = vpack.c.b16 %v2240, %v2239
        %v2275 = vpack.c.b16 %v2242, %v2241
        %v2276 = vpack.c.b16 %v2244, %v2243
        %v2277 = vpack.c.b16 %v2246, %v2245
        %v2278 = vpack.c.b16 %v2248, %v2247
        %v2279 = vpack.c.b16 %v2250, %v2249
        %v2280 = vpack.c.b16 %v2252, %v2251
        %v2281 = vpack.c.b16 %v2254, %v2253
        %v2282 = vpack.c.b16 %v2256, %v2255
        %v2283 = vpack.c.b16 %v2258, %v2257
        %v2284 = vpack.c.b16 %v2260, %v2259
        %2309 = vmatprep.subr.bf16.mxu0 0
        %2310 = vmatpush1.bf16.msra.mxu0 %v2268
        %2311 = vmatprep.subr.bf16.mxu0 0
        %2312 = vmatpush1.bf16.msra.mxu0 %v2267
        %2313 = vmatprep.subr.bf16.mxu0 0
        %2314 = vmatpush1.bf16.msra.mxu0 %v2266
        %2315 = vmatprep.subr.bf16.mxu0 0
        %2316 = vmatpush1.bf16.msra.mxu0 %v2265
        %2317 = vmatprep.subr.bf16.mxu0 0
        %2318 = vmatpush1.bf16.msra.mxu0 %v2264
        %2319 = vmatprep.subr.bf16.mxu0 0
        %2320 = vmatpush1.bf16.msra.mxu0 %v2263
        %2321 = vmatprep.subr.bf16.mxu0 0
        %2322 = vmatpush1.bf16.msra.mxu0 %v2262
        %2323 = vmatprep.subr.bf16.mxu0 0
        %2324 = vmatpush1.bf16.msra.mxu0 %v2261
        %2325 = vmatprep.subr.bf16.mxu0 0
        %2326 = vmatpush2.bf16.msra.mxu0 %v2276
        %2327 = vmatprep.subr.bf16.mxu0 0
        %2328 = vmatpush2.bf16.msra.mxu0 %v2275
        %2329 = vmatprep.subr.bf16.mxu0 0
        %2330 = vmatpush2.bf16.msra.mxu0 %v2274
        %2331 = vmatprep.subr.bf16.mxu0 0
        %2332 = vmatpush2.bf16.msra.mxu0 %v2273
        %2333 = vmatprep.subr.bf16.mxu0 0
        %2334 = vmatpush2.bf16.msra.mxu0 %v2272
        %2335 = vmatprep.subr.bf16.mxu0 0
        %2336 = vmatpush2.bf16.msra.mxu0 %v2271
        %2337 = vmatprep.subr.bf16.mxu0 0
        %2338 = vmatpush2.bf16.msra.mxu0 %v2270
        %2339 = vmatprep.subr.bf16.mxu0 0
        %2340 = vmatpush2.bf16.msra.mxu0 %v2269
        %2341 = vmatprep.mubr.bf16.mxu0 %v2048
        %2342 = vmatmul.mubr.bf16.gmra.mxu0 %v2088
        %v2343 = vpop.f32.mrf.mxu0
        %v2344 = vadd.f32 %v2164, %v2343
        %v2345 = vpop.f32.mrf.mxu0
        %v2346 = vpop.f32.mrf.mxu0
        %v2347 = vadd.f32 %v2164, %v2346
        %v2348 = vpop.f32.mrf.mxu0
        %2349 = vmatprep.mubr.bf16.mxu0 %v2049
        %2350 = vmatmul.mubr.bf16.gmra.mxu0 %v2089
        %v2351 = vpop.f32.mrf.mxu0
        %v2352 = vadd.f32 %v2164, %v2351
        %v2353 = vpop.f32.mrf.mxu0
        %v2354 = vpop.f32.mrf.mxu0
        %v2355 = vadd.f32 %v2164, %v2354
        %v2356 = vpop.f32.mrf.mxu0
        %2357 = vmatprep.mubr.bf16.mxu0 %v2050
        %2358 = vmatmul.mubr.bf16.gmra.mxu0 %v2090
        %v2359 = vpop.f32.mrf.mxu0
        %v2360 = vadd.f32 %v2164, %v2359
        %v2361 = vpop.f32.mrf.mxu0
        %v2362 = vpop.f32.mrf.mxu0
        %v2363 = vadd.f32 %v2164, %v2362
        %v2364 = vpop.f32.mrf.mxu0
        %2365 = vmatprep.mubr.bf16.mxu0 %v2051
        %2366 = vmatmul.mubr.bf16.gmra.mxu0 %v2091
        %v2367 = vpop.f32.mrf.mxu0
        %v2368 = vadd.f32 %v2164, %v2367
        %v2369 = vpop.f32.mrf.mxu0
        %v2370 = vpop.f32.mrf.mxu0
        %v2371 = vadd.f32 %v2164, %v2370
        %v2372 = vpop.f32.mrf.mxu0
        %2373 = vdwg.mxu0
        %2374 = vmatprep.subr.bf16.mxu0 0
        %2375 = vmatpush1.bf16.msra.mxu0 %v2284
        %2376 = vmatprep.subr.bf16.mxu0 0
        %2377 = vmatpush1.bf16.msra.mxu0 %v2283
        %2378 = vmatprep.subr.bf16.mxu0 0
        %2379 = vmatpush1.bf16.msra.mxu0 %v2282
        %2380 = vmatprep.subr.bf16.mxu0 0
        %2381 = vmatpush1.bf16.msra.mxu0 %v2281
        %2382 = vmatprep.subr.bf16.mxu0 0
        %2383 = vmatpush1.bf16.msra.mxu0 %v2280
        %2384 = vmatprep.subr.bf16.mxu0 0
        %2385 = vmatpush1.bf16.msra.mxu0 %v2279
        %2386 = vmatprep.subr.bf16.mxu0 0
        %2387 = vmatpush1.bf16.msra.mxu0 %v2278
        %2388 = vmatprep.subr.bf16.mxu0 0
        %2389 = vmatpush1.bf16.msra.mxu0 %v2277
        %2390 = vmatprep.subr.bf16.mxu0 0
        %2391 = vmatpush2.bf16.msra.mxu0 0
        %2392 = vmatprep.subr.bf16.mxu0 0
        %2393 = vmatpush2.bf16.msra.mxu0 0
        %2394 = vmatprep.subr.bf16.mxu0 0
        %2395 = vmatpush2.bf16.msra.mxu0 0
        %2396 = vmatprep.subr.bf16.mxu0 0
        %2397 = vmatpush2.bf16.msra.mxu0 0
        %2398 = vmatprep.subr.bf16.mxu0 0
        %2399 = vmatpush2.bf16.msra.mxu0 0
        %2400 = vmatprep.subr.bf16.mxu0 0
        %2401 = vmatpush2.bf16.msra.mxu0 0
        %2402 = vmatprep.subr.bf16.mxu0 0
        %2403 = vmatpush2.bf16.msra.mxu0 0
        %2404 = vmatprep.subr.bf16.mxu0 0
        %2405 = vmatpush2.bf16.msra.mxu0 0
        %2406 = vmatprep.mubr.bf16.mxu0 0
        %2407 = vmatmul.mubr.bf16.gmra.mxu0 %v2108
        %v2408 = vpop.f32.mrf.mxu0
        %v2409 = vadd.f32 %v2344, %v2408
        %v2410 = vpop.f32.mrf.mxu0
        %v2411 = vpop.f32.mrf.mxu0
        %v2412 = vadd.f32 %v2347, %v2411
        %v2413 = vpop.f32.mrf.mxu0
        %2414 = vmatprep.mubr.bf16.mxu0 0
        %2415 = vmatmul.mubr.bf16.gmra.mxu0 %v2109
        %v2416 = vpop.f32.mrf.mxu0
        %v2417 = vadd.f32 %v2352, %v2416
        %v2418 = vpop.f32.mrf.mxu0
        %v2419 = vpop.f32.mrf.mxu0
        %v2420 = vadd.f32 %v2355, %v2419
        %v2421 = vpop.f32.mrf.mxu0
        %2422 = vmatprep.mubr.bf16.mxu0 0
        %2423 = vmatmul.mubr.bf16.gmra.mxu0 %v2110
        %v2424 = vpop.f32.mrf.mxu0
        %v2425 = vadd.f32 %v2360, %v2424
        %v2426 = vpop.f32.mrf.mxu0
        %v2427 = vpop.f32.mrf.mxu0
        %v2428 = vadd.f32 %v2363, %v2427
        %v2429 = vpop.f32.mrf.mxu0
        %2430 = vmatprep.mubr.bf16.mxu0 0
        %2431 = vmatmul.mubr.bf16.gmra.mxu0 %v2111
        %v2432 = vpop.f32.mrf.mxu0
        %v2433 = vadd.f32 %v2368, %v2432
        %v2434 = vpop.f32.mrf.mxu0
        %v2435 = vpop.f32.mrf.mxu0
        %v2436 = vadd.f32 %v2371, %v2435
        %v2437 = vpop.f32.mrf.mxu0
        %2438 = vdwg.mxu0
        %v2439 = vadd.f32 %v2409, %v1641
        %v2440 = vadd.f32 %v2412, %v1642
        %v2441 = vadd.f32 %v2417, %v1643
        %v2442 = vadd.f32 %v2420, %v1644
        %v2443 = vadd.f32 %v2425, %v1645
        %v2444 = vadd.f32 %v2428, %v1646
        %v2445 = vadd.f32 %v2433, %v1647
        %v2446 = vadd.f32 %v2436, %v1648
        %v2447 = vmax.f32 %v2439, 0.0
        %v2448 = vmax.f32 %v2440, 0.0
        %v2449 = vmax.f32 %v2441, 0.0
        %v2450 = vmax.f32 %v2442, 0.0
        %v2451 = vmax.f32 %v2443, 0.0
        %v2452 = vmax.f32 %v2444, 0.0
        %v2453 = vmax.f32 %v2445, 0.0
        %v2454 = vmax.f32 %v2446, 0.0
        %v2455 = vld [vmem:[#allocation2 + $0x3d0] sm:$0xf]
        %v2456 = vld [vmem:[#allocation2 + $0x3d4] sm:$0xf]
        %v2457 = vld [vmem:[#allocation2 + $0x3d8] sm:$0xf]
        %v2458 = vld [vmem:[#allocation2 + $0x3dc] sm:$0xf]
        %v2459 = vld [vmem:[#allocation2 + $0x3e0] sm:$0xf]
        %v2460 = vld [vmem:[#allocation2 + $0x3e4] sm:$0xf]
        %v2461 = vld [vmem:[#allocation2 + $0x3e8] sm:$0xf]
        %v2462 = vld [vmem:[#allocation2 + $0x3ec] sm:$0xf]
        %v2463 = vpack.c.bf16 %v2448, %v2447
        %v2464 = vpack.c.bf16 %v2450, %v2449
        %v2465 = vpack.c.bf16 %v2452, %v2451
        %v2466 = vpack.c.bf16 %v2454, %v2453
        %v2475 = vunpack.c.l.b16 %v2455
        %v2476 = vunpack.c.l.b16 %v2456
        %v2477 = vunpack.c.l.b16 %v2457
        %v2478 = vunpack.c.l.b16 %v2458
        %v2479 = vunpack.c.l.b16 %v2459
        %v2480 = vunpack.c.l.b16 %v2460
        %v2481 = vunpack.c.l.b16 %v2461
        %v2482 = vunpack.c.l.b16 %v2462
        %v2483 = vpack.c.b16 %v2476, %v2475
        %v2484 = vpack.c.b16 %v2478, %v2477
        %v2485 = vpack.c.b16 %v2480, %v2479
        %v2486 = vpack.c.b16 %v2482, %v2481
        %vm2487 = vcmask 523264
        %v2489 = vsel %vm2487, %v2483, 0
        %v2492 = vsel %vm2487, %v2484, 0
        %v2495 = vsel %vm2487, %v2485, 0
        %v2498 = vsel %vm2487, %v2486, 0
        %2500 = vmatprep.subr.bf16.mxu0 0
        %2501 = vmatpush1.bf16.msra.mxu0 0
        %2502 = vmatprep.subr.bf16.mxu0 0
        %2503 = vmatpush1.bf16.msra.mxu0 0
        %2504 = vmatprep.subr.bf16.mxu0 0
        %2505 = vmatpush1.bf16.msra.mxu0 0
        %2506 = vmatprep.subr.bf16.mxu0 0
        %2507 = vmatpush1.bf16.msra.mxu0 0
        %2508 = vmatprep.subr.bf16.mxu0 0
        %2509 = vmatpush1.bf16.msra.mxu0 %v2466
        %2510 = vmatprep.subr.bf16.mxu0 0
        %2511 = vmatpush1.bf16.msra.mxu0 %v2465
        %2512 = vmatprep.subr.bf16.mxu0 0
        %2513 = vmatpush1.bf16.msra.mxu0 %v2464
        %2514 = vmatprep.subr.bf16.mxu0 0
        %2515 = vmatpush1.bf16.msra.mxu0 %v2463
        %2516 = vmatprep.subr.bf16.mxu0 0
        %2517 = vmatpush2.bf16.msra.mxu0 0
        %2518 = vmatprep.subr.bf16.mxu0 0
        %2519 = vmatpush2.bf16.msra.mxu0 0
        %2520 = vmatprep.subr.bf16.mxu0 0
        %2521 = vmatpush2.bf16.msra.mxu0 0
        %2522 = vmatprep.subr.bf16.mxu0 0
        %2523 = vmatpush2.bf16.msra.mxu0 0
        %2524 = vmatprep.subr.bf16.mxu0 0
        %2525 = vmatpush2.bf16.msra.mxu0 0
        %2526 = vmatprep.subr.bf16.mxu0 0
        %2527 = vmatpush2.bf16.msra.mxu0 0
        %2528 = vmatprep.subr.bf16.mxu0 0
        %2529 = vmatpush2.bf16.msra.mxu0 0
        %2530 = vmatprep.subr.bf16.mxu0 0
        %2531 = vmatpush2.bf16.msra.mxu0 0
        %2532 = vmatprep.mubr.bf16.mxu0 0
        %2533 = vmatmul.mubr.bf16.gmra.mxu0 %v2489
        %v2534 = vpop.f32.mrf.mxu0
        %v2535 = vadd.f32 0.0, %v2534
        %v2536 = vpop.f32.mrf.mxu0
        %v2537 = vpop.f32.mrf.mxu0
        %v2538 = vadd.f32 0.0, %v2537
        %v2539 = vpop.f32.mrf.mxu0
        %2540 = vmatprep.mubr.bf16.mxu0 0
        %2541 = vmatmul.mubr.bf16.gmra.mxu0 %v2492
        %v2542 = vpop.f32.mrf.mxu0
        %v2543 = vadd.f32 0.0, %v2542
        %v2544 = vpop.f32.mrf.mxu0
        %v2545 = vpop.f32.mrf.mxu0
        %v2546 = vadd.f32 0.0, %v2545
        %v2547 = vpop.f32.mrf.mxu0
        %2548 = vmatprep.mubr.bf16.mxu0 0
        %2549 = vmatmul.mubr.bf16.gmra.mxu0 %v2495
        %v2550 = vpop.f32.mrf.mxu0
        %v2551 = vadd.f32 0.0, %v2550
        %v2552 = vpop.f32.mrf.mxu0
        %v2553 = vpop.f32.mrf.mxu0
        %v2554 = vadd.f32 0.0, %v2553
        %v2555 = vpop.f32.mrf.mxu0
        %2556 = vmatprep.mubr.bf16.mxu0 0
        %2557 = vmatmul.mubr.bf16.gmra.mxu0 %v2498
        %v2558 = vpop.f32.mrf.mxu0
        %v2559 = vadd.f32 0.0, %v2558
        %v2560 = vpop.f32.mrf.mxu0
        %v2561 = vpop.f32.mrf.mxu0
        %v2562 = vadd.f32 0.0, %v2561
        %v2563 = vpop.f32.mrf.mxu0
        %2564 = vdwg.mxu0
        %v2565 = vpack.c.bf16 %v2538, %v2535
        %v2566 = vpack.c.bf16 %v2546, %v2543
        %v2567 = vpack.c.bf16 %v2554, %v2551
        %v2568 = vpack.c.bf16 %v2562, %v2559
        %v2570 = vshrl.u32 %v2567, 16
        %v2572 = vrot.slane %v2570, 7
        %v2573 = vshll.u32 %v2567, 16
        %v2575 = vor.u32 %v2572, %v2573
        %v2577 = vshrl.u32 %v2568, 16
        %v2579 = vrot.slane %v2577, 7
        %v2580 = vshll.u32 %v2568, 16
        %v2582 = vor.u32 %v2579, %v2580
        %v2583 = vsel %vm654, %v2572, %v2582
        %v2586 = vsel %vm691, 0, %v2575
        %v2587 = vand.u32 %v694, 3
        %v2588 = vand.u32 %v695, 3
        %v2589 = vand.u32 %v696, 3
        %v2590 = vand.u32 %v697, 3
        %vm2591 = vcmp.ne.s32.totalorder %v2587, 0
        %vm2592 = vcmp.ne.s32.totalorder %v2588, 0
        %vm2593 = vcmp.ne.s32.totalorder %v2589, 0
        %vm2594 = vcmp.ne.s32.totalorder %v2590, 0
        %v2595 = vsel %vm2591, 1, 0
        %v2596 = vsel %vm2592, 1, 0
        %v2597 = vsel %vm2593, 1, 0
        %v2598 = vsel %vm2594, 1, 0
        %v2599 = vcvt.s32.f32 %v2595
        %v2600 = vcvt.s32.f32 %v2596
        %v2601 = vcvt.s32.f32 %v2597
        %v2602 = vcvt.s32.f32 %v2598
        %v2603 = vpack.c.bf16 %v2600, %v2599
        %v2604 = vpack.c.bf16 %v2602, %v2601
        %v2605 = vmul.bf16 %v2586, %v2603
        %v2606 = vmul.bf16 %v2583, %v2604
        %v2607 = vld [vmem:[#allocation2 + $0x3f0] sm:$0xf]
        %v2608 = vld [vmem:[#allocation2 + $0x3f4] sm:$0xf]
        %v2609 = vld [vmem:[#allocation2 + $0x3f8] sm:$0xf]
        %v2610 = vld [vmem:[#allocation2 + $0x3fc] sm:$0xf]
        %v2611 = vld [vmem:[#allocation2 + $0x400] sm:$0xf]
        %v2612 = vld [vmem:[#allocation2 + $0x404] sm:$0xf]
        %v2613 = vld [vmem:[#allocation2 + $0x408] sm:$0xf]
        %v2614 = vld [vmem:[#allocation2 + $0x40c] sm:$0xf]
        %v2615 = vld [vmem:[#allocation2 + $0x410] sm:$0xf]
        %v2616 = vld [vmem:[#allocation2 + $0x414] sm:$0xf]
        %v2617 = vld [vmem:[#allocation2 + $0x418] sm:$0xf]
        %v2618 = vld [vmem:[#allocation2 + $0x41c] sm:$0xf]
        %v2619 = vld [vmem:[#allocation2 + $0x420] sm:$0xf]
        %v2620 = vld [vmem:[#allocation2 + $0x424] sm:$0xf]
        %v2621 = vld [vmem:[#allocation2 + $0x428] sm:$0xf]
        %v2622 = vld [vmem:[#allocation2 + $0x42c] sm:$0xf]
        %v2623 = vld [vmem:[#allocation2 + $0x430] sm:$0xf]
        %v2624 = vld [vmem:[#allocation2 + $0x434] sm:$0xf]
        %v2625 = vld [vmem:[#allocation2 + $0x438] sm:$0xf]
        %v2626 = vld [vmem:[#allocation2 + $0x43c] sm:$0xf]
        %v2627 = vld [vmem:[#allocation2 + $0x440] sm:$0xf]
        %v2628 = vld [vmem:[#allocation2 + $0x444] sm:$0xf]
        %v2629 = vld [vmem:[#allocation2 + $0x448] sm:$0xf]
        %v2630 = vld [vmem:[#allocation2 + $0x44c] sm:$0xf]
        %v2631 = vld [vmem:[#allocation2 + $0x450] sm:$0xf]
        %v2632 = vld [vmem:[#allocation2 + $0x454] sm:$0xf]
        %v2633 = vld [vmem:[#allocation2 + $0x458] sm:$0xf]
        %v2634 = vld [vmem:[#allocation2 + $0x45c] sm:$0xf]
        %v2635 = vld [vmem:[#allocation2 + $0x460] sm:$0xf]
        %v2636 = vld [vmem:[#allocation2 + $0x464] sm:$0xf]
        %v2637 = vld [vmem:[#allocation2 + $0x468] sm:$0xf]
        %v2638 = vld [vmem:[#allocation2 + $0x46c] sm:$0xf]
        %v2639 = vld [vmem:[#allocation2 + $0x470] sm:$0xf]
        %v2640 = vld [vmem:[#allocation2 + $0x474] sm:$0xf]
        %v2641 = vld [vmem:[#allocation2 + $0x478] sm:$0xf]
        %v2642 = vld [vmem:[#allocation2 + $0x47c] sm:$0xf]
        %v2643 = vld [vmem:[#allocation2 + $0x480] sm:$0xf]
        %v2644 = vld [vmem:[#allocation2 + $0x484] sm:$0xf]
        %v2645 = vld [vmem:[#allocation2 + $0x488] sm:$0xf]
        %v2646 = vld [vmem:[#allocation2 + $0x48c] sm:$0xf]
        %v2647 = vld [vmem:[#allocation2 + $0x490] sm:$0xf]
        %v2648 = vld [vmem:[#allocation2 + $0x494] sm:$0xf]
        %v2649 = vld [vmem:[#allocation2 + $0x498] sm:$0xf]
        %v2650 = vld [vmem:[#allocation2 + $0x49c] sm:$0xf]
        %v2651 = vld [vmem:[#allocation2 + $0x4a0] sm:$0xf]
        %v2652 = vld [vmem:[#allocation2 + $0x4a4] sm:$0xf]
        %v2653 = vld [vmem:[#allocation2 + $0x4a8] sm:$0xf]
        %v2654 = vld [vmem:[#allocation2 + $0x4ac] sm:$0xf]
        %v2655 = vld [vmem:[%s2 + $0x6] sm:$0x1]
        %v2656 = vlaneseq
        %v2657 = vshrl.u32 %v2656, 7
        %v2658 = vsub.s32 0, %v2657
        %v2659 = vrot.slane %v2655, %v2658
        %v2708 = vunpack.c.l.b16 %v2607
        %v2709 = vunpack.c.l.b16 %v2608
        %v2710 = vunpack.c.l.b16 %v2609
        %v2711 = vunpack.c.l.b16 %v2610
        %v2712 = vunpack.c.l.b16 %v2611
        %v2713 = vunpack.c.l.b16 %v2612
        %v2714 = vunpack.c.l.b16 %v2613
        %v2715 = vunpack.c.l.b16 %v2614
        %v2716 = vunpack.c.l.b16 %v2615
        %v2717 = vunpack.c.l.b16 %v2616
        %v2718 = vunpack.c.l.b16 %v2617
        %v2719 = vunpack.c.l.b16 %v2618
        %v2720 = vunpack.c.l.b16 %v2619
        %v2721 = vunpack.c.l.b16 %v2620
        %v2722 = vunpack.c.l.b16 %v2621
        %v2723 = vunpack.c.l.b16 %v2622
        %v2724 = vunpack.c.l.b16 %v2623
        %v2725 = vunpack.c.l.b16 %v2624
        %v2726 = vunpack.c.l.b16 %v2625
        %v2727 = vunpack.c.l.b16 %v2626
        %v2728 = vunpack.c.l.b16 %v2627
        %v2729 = vunpack.c.l.b16 %v2628
        %v2730 = vunpack.c.l.b16 %v2629
        %v2731 = vunpack.c.l.b16 %v2630
        %v2732 = vunpack.c.l.b16 %v2631
        %v2733 = vunpack.c.l.b16 %v2632
        %v2734 = vunpack.c.l.b16 %v2633
        %v2735 = vunpack.c.l.b16 %v2634
        %v2736 = vunpack.c.l.b16 %v2635
        %v2737 = vunpack.c.l.b16 %v2636
        %v2738 = vunpack.c.l.b16 %v2637
        %v2739 = vunpack.c.l.b16 %v2638
        %v2740 = vunpack.c.l.b16 %v2639
        %v2741 = vunpack.c.l.b16 %v2640
        %v2742 = vunpack.c.l.b16 %v2641
        %v2743 = vunpack.c.l.b16 %v2642
        %v2744 = vunpack.c.l.b16 %v2643
        %v2745 = vunpack.c.l.b16 %v2644
        %v2746 = vunpack.c.l.b16 %v2645
        %v2747 = vunpack.c.l.b16 %v2646
        %v2748 = vunpack.c.l.b16 %v2647
        %v2749 = vunpack.c.l.b16 %v2648
        %v2750 = vunpack.c.l.b16 %v2649
        %v2751 = vunpack.c.l.b16 %v2650
        %v2752 = vunpack.c.l.b16 %v2651
        %v2753 = vunpack.c.l.b16 %v2652
        %v2754 = vunpack.c.l.b16 %v2653
        %v2755 = vunpack.c.l.b16 %v2654
        %v2756 = vpack.c.b16 %v2709, %v2708
        %v2757 = vpack.c.b16 %v2711, %v2710
        %v2758 = vpack.c.b16 %v2713, %v2712
        %v2759 = vpack.c.b16 %v2715, %v2714
        %v2760 = vpack.c.b16 %v2717, %v2716
        %v2761 = vpack.c.b16 %v2719, %v2718
        %v2762 = vpack.c.b16 %v2721, %v2720
        %v2763 = vpack.c.b16 %v2723, %v2722
        %v2764 = vpack.c.b16 %v2725, %v2724
        %v2765 = vpack.c.b16 %v2727, %v2726
        %v2766 = vpack.c.b16 %v2729, %v2728
        %v2767 = vpack.c.b16 %v2731, %v2730
        %v2768 = vpack.c.b16 %v2733, %v2732
        %v2769 = vpack.c.b16 %v2735, %v2734
        %v2770 = vpack.c.b16 %v2737, %v2736
        %v2771 = vpack.c.b16 %v2739, %v2738
        %v2772 = vpack.c.b16 %v2741, %v2740
        %v2773 = vpack.c.b16 %v2743, %v2742
        %v2774 = vpack.c.b16 %v2745, %v2744
        %v2775 = vpack.c.b16 %v2747, %v2746
        %v2776 = vpack.c.b16 %v2749, %v2748
        %v2777 = vpack.c.b16 %v2751, %v2750
        %v2778 = vpack.c.b16 %v2753, %v2752
        %v2779 = vpack.c.b16 %v2755, %v2754
        %2804 = vmatprep.subr.bf16.mxu0 0
        %2805 = vmatpush1.bf16.msra.mxu0 %v2763
        %2806 = vmatprep.subr.bf16.mxu0 0
        %2807 = vmatpush1.bf16.msra.mxu0 %v2762
        %2808 = vmatprep.subr.bf16.mxu0 0
        %2809 = vmatpush1.bf16.msra.mxu0 %v2761
        %2810 = vmatprep.subr.bf16.mxu0 0
        %2811 = vmatpush1.bf16.msra.mxu0 %v2760
        %2812 = vmatprep.subr.bf16.mxu0 0
        %2813 = vmatpush1.bf16.msra.mxu0 %v2759
        %2814 = vmatprep.subr.bf16.mxu0 0
        %2815 = vmatpush1.bf16.msra.mxu0 %v2758
        %2816 = vmatprep.subr.bf16.mxu0 0
        %2817 = vmatpush1.bf16.msra.mxu0 %v2757
        %2818 = vmatprep.subr.bf16.mxu0 0
        %2819 = vmatpush1.bf16.msra.mxu0 %v2756
        %2820 = vmatprep.subr.bf16.mxu0 0
        %2821 = vmatpush2.bf16.msra.mxu0 %v2771
        %2822 = vmatprep.subr.bf16.mxu0 0
        %2823 = vmatpush2.bf16.msra.mxu0 %v2770
        %2824 = vmatprep.subr.bf16.mxu0 0
        %2825 = vmatpush2.bf16.msra.mxu0 %v2769
        %2826 = vmatprep.subr.bf16.mxu0 0
        %2827 = vmatpush2.bf16.msra.mxu0 %v2768
        %2828 = vmatprep.subr.bf16.mxu0 0
        %2829 = vmatpush2.bf16.msra.mxu0 %v2767
        %2830 = vmatprep.subr.bf16.mxu0 0
        %2831 = vmatpush2.bf16.msra.mxu0 %v2766
        %2832 = vmatprep.subr.bf16.mxu0 0
        %2833 = vmatpush2.bf16.msra.mxu0 %v2765
        %2834 = vmatprep.subr.bf16.mxu0 0
        %2835 = vmatpush2.bf16.msra.mxu0 %v2764
        %2836 = vmatprep.mubr.bf16.mxu0 %v2565
        %2837 = vmatmul.mubr.bf16.gmra.mxu0 %v2605
        %v2838 = vpop.f32.mrf.mxu0
        %v2839 = vadd.f32 %v2659, %v2838
        %v2840 = vpop.f32.mrf.mxu0
        %v2841 = vpop.f32.mrf.mxu0
        %v2842 = vadd.f32 %v2659, %v2841
        %v2843 = vpop.f32.mrf.mxu0
        %2844 = vmatprep.mubr.bf16.mxu0 %v2566
        %2845 = vmatmul.mubr.bf16.gmra.mxu0 %v2606
        %v2846 = vpop.f32.mrf.mxu0
        %v2847 = vadd.f32 %v2659, %v2846
        %v2848 = vpop.f32.mrf.mxu0
        %v2849 = vpop.f32.mrf.mxu0
        %v2850 = vadd.f32 %v2659, %v2849
        %v2851 = vpop.f32.mrf.mxu0
        %2852 = vdwg.mxu0
        %2853 = vmatprep.subr.bf16.mxu0 0
        %2854 = vmatpush1.bf16.msra.mxu0 %v2779
        %2855 = vmatprep.subr.bf16.mxu0 0
        %2856 = vmatpush1.bf16.msra.mxu0 %v2778
        %2857 = vmatprep.subr.bf16.mxu0 0
        %2858 = vmatpush1.bf16.msra.mxu0 %v2777
        %2859 = vmatprep.subr.bf16.mxu0 0
        %2860 = vmatpush1.bf16.msra.mxu0 %v2776
        %2861 = vmatprep.subr.bf16.mxu0 0
        %2862 = vmatpush1.bf16.msra.mxu0 %v2775
        %2863 = vmatprep.subr.bf16.mxu0 0
        %2864 = vmatpush1.bf16.msra.mxu0 %v2774
        %2865 = vmatprep.subr.bf16.mxu0 0
        %2866 = vmatpush1.bf16.msra.mxu0 %v2773
        %2867 = vmatprep.subr.bf16.mxu0 0
        %2868 = vmatpush1.bf16.msra.mxu0 %v2772
        %2869 = vmatprep.subr.bf16.mxu0 0
        %2870 = vmatpush2.bf16.msra.mxu0 0
        %2871 = vmatprep.subr.bf16.mxu0 0
        %2872 = vmatpush2.bf16.msra.mxu0 0
        %2873 = vmatprep.subr.bf16.mxu0 0
        %2874 = vmatpush2.bf16.msra.mxu0 0
        %2875 = vmatprep.subr.bf16.mxu0 0
        %2876 = vmatpush2.bf16.msra.mxu0 0
        %2877 = vmatprep.subr.bf16.mxu0 0
        %2878 = vmatpush2.bf16.msra.mxu0 0
        %2879 = vmatprep.subr.bf16.mxu0 0
        %2880 = vmatpush2.bf16.msra.mxu0 0
        %2881 = vmatprep.subr.bf16.mxu0 0
        %2882 = vmatpush2.bf16.msra.mxu0 0
        %2883 = vmatprep.subr.bf16.mxu0 0
        %2884 = vmatpush2.bf16.msra.mxu0 0
        %2885 = vmatprep.mubr.bf16.mxu0 0
        %2886 = vmatmul.mubr.bf16.gmra.mxu0 %v2567
        %v2887 = vpop.f32.mrf.mxu0
        %v2888 = vadd.f32 %v2839, %v2887
        %v2889 = vpop.f32.mrf.mxu0
        %v2890 = vpop.f32.mrf.mxu0
        %v2891 = vadd.f32 %v2842, %v2890
        %v2892 = vpop.f32.mrf.mxu0
        %2893 = vmatprep.mubr.bf16.mxu0 0
        %2894 = vmatmul.mubr.bf16.gmra.mxu0 %v2568
        %v2895 = vpop.f32.mrf.mxu0
        %v2896 = vadd.f32 %v2847, %v2895
        %v2897 = vpop.f32.mrf.mxu0
        %v2898 = vpop.f32.mrf.mxu0
        %v2899 = vadd.f32 %v2850, %v2898
        %v2900 = vpop.f32.mrf.mxu0
        %2901 = vdwg.mxu0
        %v2902 = vmax.f32 %v2888, 0.0
        %v2903 = vmax.f32 %v2891, 0.0
        %v2904 = vmax.f32 %v2896, 0.0
        %v2905 = vmax.f32 %v2899, 0.0
        %v2906 = vpack.c.bf16 %v2903, %v2902
        %v2907 = vpack.c.bf16 %v2905, %v2904
        %v2908 = vld [vmem:[#allocation2 + $0x4b0] sm:$0xf]
        %v2909 = vld [vmem:[#allocation2 + $0x4b4] sm:$0xf]
        %v2910 = vld [vmem:[#allocation2 + $0x4b8] sm:$0xf]
        %v2911 = vld [vmem:[#allocation2 + $0x4bc] sm:$0xf]
        %v2912 = vld [vmem:[#allocation2 + $0x4c0] sm:$0xf]
        %v2913 = vld [vmem:[#allocation2 + $0x4c4] sm:$0xf]
        %v2914 = vld [vmem:[#allocation2 + $0x4c8] sm:$0xf]
        %v2915 = vld [vmem:[#allocation2 + $0x4cc] sm:$0xf]
        %v2916 = vld [vmem:[#allocation2 + $0x4d0] sm:$0xf]
        %v2917 = vld [vmem:[#allocation2 + $0x4d4] sm:$0xf]
        %v2918 = vld [vmem:[#allocation2 + $0x4d8] sm:$0xf]
        %v2919 = vld [vmem:[#allocation2 + $0x4dc] sm:$0xf]
        %v2920 = vld [vmem:[#allocation2 + $0x4e0] sm:$0xf]
        %v2921 = vld [vmem:[#allocation2 + $0x4e4] sm:$0xf]
        %v2922 = vld [vmem:[#allocation2 + $0x4e8] sm:$0xf]
        %v2923 = vld [vmem:[#allocation2 + $0x4ec] sm:$0xf]
        %v2924 = vld [vmem:[%s2 + $0x7] sm:$0x1]
        %v2925 = vlaneseq
        %v2926 = vshrl.u32 %v2925, 7
        %v2927 = vsub.s32 0, %v2926
        %v2928 = vrot.slane %v2924, %v2927
        %v2945 = vunpack.c.l.b16 %v2908
        %v2946 = vunpack.c.l.b16 %v2909
        %v2947 = vunpack.c.l.b16 %v2910
        %v2948 = vunpack.c.l.b16 %v2911
        %v2949 = vunpack.c.l.b16 %v2912
        %v2950 = vunpack.c.l.b16 %v2913
        %v2951 = vunpack.c.l.b16 %v2914
        %v2952 = vunpack.c.l.b16 %v2915
        %v2953 = vunpack.c.l.b16 %v2916
        %v2954 = vunpack.c.l.b16 %v2917
        %v2955 = vunpack.c.l.b16 %v2918
        %v2956 = vunpack.c.l.b16 %v2919
        %v2957 = vunpack.c.l.b16 %v2920
        %v2958 = vunpack.c.l.b16 %v2921
        %v2959 = vunpack.c.l.b16 %v2922
        %v2960 = vunpack.c.l.b16 %v2923
        %v2961 = vpack.c.b16 %v2946, %v2945
        %v2962 = vpack.c.b16 %v2948, %v2947
        %v2963 = vpack.c.b16 %v2950, %v2949
        %v2964 = vpack.c.b16 %v2952, %v2951
        %v2965 = vpack.c.b16 %v2954, %v2953
        %v2966 = vpack.c.b16 %v2956, %v2955
        %v2967 = vpack.c.b16 %v2958, %v2957
        %v2968 = vpack.c.b16 %v2960, %v2959
        %2977 = vmatprep.subr.bf16.mxu0 0
        %2978 = vmatpush1.bf16.msra.mxu0 %v2968
        %2979 = vmatprep.subr.bf16.mxu0 0
        %2980 = vmatpush1.bf16.msra.mxu0 %v2967
        %2981 = vmatprep.subr.bf16.mxu0 0
        %2982 = vmatpush1.bf16.msra.mxu0 %v2966
        %2983 = vmatprep.subr.bf16.mxu0 0
        %2984 = vmatpush1.bf16.msra.mxu0 %v2965
        %2985 = vmatprep.subr.bf16.mxu0 0
        %2986 = vmatpush1.bf16.msra.mxu0 %v2964
        %2987 = vmatprep.subr.bf16.mxu0 0
        %2988 = vmatpush1.bf16.msra.mxu0 %v2963
        %2989 = vmatprep.subr.bf16.mxu0 0
        %2990 = vmatpush1.bf16.msra.mxu0 %v2962
        %2991 = vmatprep.subr.bf16.mxu0 0
        %2992 = vmatpush1.bf16.msra.mxu0 %v2961
        %2993 = vmatprep.subr.bf16.mxu0 0
        %2994 = vmatpush2.bf16.msra.mxu0 0
        %2995 = vmatprep.subr.bf16.mxu0 0
        %2996 = vmatpush2.bf16.msra.mxu0 0
        %2997 = vmatprep.subr.bf16.mxu0 0
        %2998 = vmatpush2.bf16.msra.mxu0 0
        %2999 = vmatprep.subr.bf16.mxu0 0
        %3000 = vmatpush2.bf16.msra.mxu0 0
        %3001 = vmatprep.subr.bf16.mxu0 0
        %3002 = vmatpush2.bf16.msra.mxu0 0
        %3003 = vmatprep.subr.bf16.mxu0 0
        %3004 = vmatpush2.bf16.msra.mxu0 0
        %3005 = vmatprep.subr.bf16.mxu0 0
        %3006 = vmatpush2.bf16.msra.mxu0 0
        %3007 = vmatprep.subr.bf16.mxu0 0
        %3008 = vmatpush2.bf16.msra.mxu0 0
        %3009 = vmatprep.mubr.bf16.mxu0 0
        %3010 = vmatmul.mubr.bf16.gmra.mxu0 %v2565
        %v3011 = vpop.f32.mrf.mxu0
        %v3012 = vadd.f32 %v2928, %v3011
        %v3013 = vpop.f32.mrf.mxu0
        %v3014 = vpop.f32.mrf.mxu0
        %v3015 = vadd.f32 %v2928, %v3014
        %v3016 = vpop.f32.mrf.mxu0
        %3017 = vmatprep.mubr.bf16.mxu0 0
        %3018 = vmatmul.mubr.bf16.gmra.mxu0 %v2566
        %v3019 = vpop.f32.mrf.mxu0
        %v3020 = vadd.f32 %v2928, %v3019
        %v3021 = vpop.f32.mrf.mxu0
        %v3022 = vpop.f32.mrf.mxu0
        %v3023 = vadd.f32 %v2928, %v3022
        %v3024 = vpop.f32.mrf.mxu0
        %3025 = vdwg.mxu0
        %v3027 = vshrl.u32 %v2906, 16
        %v3029 = vrot.slane %v3027, 7
        %v3030 = vshll.u32 %v2906, 16
        %v3032 = vor.u32 %v3029, %v3030
        %v3034 = vshrl.u32 %v2907, 16
        %v3036 = vrot.slane %v3034, 7
        %v3037 = vshll.u32 %v2907, 16
        %v3039 = vor.u32 %v3036, %v3037
        %v3040 = vsel %vm654, %v3029, %v3039
        %v3043 = vsel %vm691, 0, %v3032
        %v3044 = vmul.bf16 %v3043, %v2603
        %v3045 = vmul.bf16 %v3040, %v2604
        %v3046 = vrot.slane %v3030, 1
        %v3047 = vor.u32 %v3027, %v3046
        %v3048 = vrot.slane %v3037, 1
        %v3049 = vsel %vm1255, %v3047, %v3048
        %v3050 = vor.u32 %v3034, %v3048
        %v3053 = vsel %vm1272, %v3050, 0
        %vm3054 = vcmp.ne.s32.totalorder %v2587, 3
        %vm3055 = vcmp.ne.s32.totalorder %v2588, 3
        %vm3056 = vcmp.ne.s32.totalorder %v2589, 3
        %vm3057 = vcmp.ne.s32.totalorder %v2590, 3
        %v3058 = vsel %vm3054, 1, 0
        %v3059 = vsel %vm3055, 1, 0
        %v3060 = vsel %vm3056, 1, 0
        %v3061 = vsel %vm3057, 1, 0
        %v3062 = vcvt.s32.f32 %v3058
        %v3063 = vcvt.s32.f32 %v3059
        %v3064 = vcvt.s32.f32 %v3060
        %v3065 = vcvt.s32.f32 %v3061
        %v3066 = vpack.c.bf16 %v3063, %v3062
        %v3067 = vpack.c.bf16 %v3065, %v3064
        %v3068 = vmul.bf16 %v3049, %v3066
        %v3069 = vmul.bf16 %v3053, %v3067
        %3072 = vrot.lane.b32.xlu0 %v2906, 64
        %v3073 = vpop.permute.xlu0 %3072
        %3074 = vrot.lane.b32.xlu0 %v2907, 64
        %v3075 = vpop.permute.xlu0 %3074
        %v3078 = vsel %vm2487, %v3044, %v3073
        %v3082 = vsel %vm2487, %v3045, %v3075
        %v3084 = vld [vmem:[#allocation2 + $0x4f0] sm:$0xf]
        %v3085 = vld [vmem:[#allocation2 + $0x4f4] sm:$0xf]
        %v3086 = vld [vmem:[#allocation2 + $0x4f8] sm:$0xf]
        %v3087 = vld [vmem:[#allocation2 + $0x4fc] sm:$0xf]
        %v3088 = vld [vmem:[#allocation2 + $0x500] sm:$0xf]
        %v3089 = vld [vmem:[#allocation2 + $0x504] sm:$0xf]
        %v3090 = vld [vmem:[#allocation2 + $0x508] sm:$0xf]
        %v3091 = vld [vmem:[#allocation2 + $0x50c] sm:$0xf]
        %v3092 = vld [vmem:[#allocation2 + $0x510] sm:$0xf]
        %v3093 = vld [vmem:[#allocation2 + $0x514] sm:$0xf]
        %v3094 = vld [vmem:[#allocation2 + $0x518] sm:$0xf]
        %v3095 = vld [vmem:[#allocation2 + $0x51c] sm:$0xf]
        %v3096 = vld [vmem:[#allocation2 + $0x520] sm:$0xf]
        %v3097 = vld [vmem:[#allocation2 + $0x524] sm:$0xf]
        %v3098 = vld [vmem:[#allocation2 + $0x528] sm:$0xf]
        %v3099 = vld [vmem:[#allocation2 + $0x52c] sm:$0xf]
        %v3100 = vld [vmem:[#allocation2 + $0x530] sm:$0xf]
        %v3101 = vld [vmem:[#allocation2 + $0x534] sm:$0xf]
        %v3102 = vld [vmem:[#allocation2 + $0x538] sm:$0xf]
        %v3103 = vld [vmem:[#allocation2 + $0x53c] sm:$0xf]
        %v3104 = vld [vmem:[#allocation2 + $0x540] sm:$0xf]
        %v3105 = vld [vmem:[#allocation2 + $0x544] sm:$0xf]
        %v3106 = vld [vmem:[#allocation2 + $0x548] sm:$0xf]
        %v3107 = vld [vmem:[#allocation2 + $0x54c] sm:$0xf]
        %v3108 = vld [vmem:[%s2 + $0x8] sm:$0x1]
        %v3109 = vlaneseq
        %v3110 = vshrl.u32 %v3109, 7
        %v3111 = vsub.s32 0, %v3110
        %v3112 = vrot.slane %v3108, %v3111
        %v3137 = vunpack.c.l.b16 %v3084
        %v3138 = vunpack.c.l.b16 %v3085
        %v3139 = vunpack.c.l.b16 %v3086
        %v3140 = vunpack.c.l.b16 %v3087
        %v3141 = vunpack.c.l.b16 %v3088
        %v3142 = vunpack.c.l.b16 %v3089
        %v3143 = vunpack.c.l.b16 %v3090
        %v3144 = vunpack.c.l.b16 %v3091
        %v3145 = vunpack.c.l.b16 %v3092
        %v3146 = vunpack.c.l.b16 %v3093
        %v3147 = vunpack.c.l.b16 %v3094
        %v3148 = vunpack.c.l.b16 %v3095
        %v3149 = vunpack.c.l.b16 %v3096
        %v3150 = vunpack.c.l.b16 %v3097
        %v3151 = vunpack.c.l.b16 %v3098
        %v3152 = vunpack.c.l.b16 %v3099
        %v3153 = vunpack.c.l.b16 %v3100
        %v3154 = vunpack.c.l.b16 %v3101
        %v3155 = vunpack.c.l.b16 %v3102
        %v3156 = vunpack.c.l.b16 %v3103
        %v3157 = vunpack.c.l.b16 %v3104
        %v3158 = vunpack.c.l.b16 %v3105
        %v3159 = vunpack.c.l.b16 %v3106
        %v3160 = vunpack.c.l.b16 %v3107
        %v3161 = vpack.c.b16 %v3138, %v3137
        %v3162 = vpack.c.b16 %v3140, %v3139
        %v3163 = vpack.c.b16 %v3142, %v3141
        %v3164 = vpack.c.b16 %v3144, %v3143
        %v3165 = vpack.c.b16 %v3146, %v3145
        %v3166 = vpack.c.b16 %v3148, %v3147
        %v3167 = vpack.c.b16 %v3150, %v3149
        %v3168 = vpack.c.b16 %v3152, %v3151
        %v3169 = vpack.c.b16 %v3154, %v3153
        %v3170 = vpack.c.b16 %v3156, %v3155
        %v3171 = vpack.c.b16 %v3158, %v3157
        %v3172 = vpack.c.b16 %v3160, %v3159
        %v3186 = vsel %vm2487, %v3068, 0
        %v3189 = vsel %vm2487, %v3069, 0
        %3191 = vmatprep.subr.bf16.mxu0 0
        %3192 = vmatpush1.bf16.msra.mxu0 %v3168
        %3193 = vmatprep.subr.bf16.mxu0 0
        %3194 = vmatpush1.bf16.msra.mxu0 %v3167
        %3195 = vmatprep.subr.bf16.mxu0 0
        %3196 = vmatpush1.bf16.msra.mxu0 %v3166
        %3197 = vmatprep.subr.bf16.mxu0 0
        %3198 = vmatpush1.bf16.msra.mxu0 %v3165
        %3199 = vmatprep.subr.bf16.mxu0 0
        %3200 = vmatpush1.bf16.msra.mxu0 %v3164
        %3201 = vmatprep.subr.bf16.mxu0 0
        %3202 = vmatpush1.bf16.msra.mxu0 %v3163
        %3203 = vmatprep.subr.bf16.mxu0 0
        %3204 = vmatpush1.bf16.msra.mxu0 %v3162
        %3205 = vmatprep.subr.bf16.mxu0 0
        %3206 = vmatpush1.bf16.msra.mxu0 %v3161
        %3207 = vmatprep.subr.bf16.mxu0 0
        %3208 = vmatpush2.bf16.msra.mxu0 0
        %3209 = vmatprep.subr.bf16.mxu0 0
        %3210 = vmatpush2.bf16.msra.mxu0 0
        %3211 = vmatprep.subr.bf16.mxu0 0
        %3212 = vmatpush2.bf16.msra.mxu0 0
        %3213 = vmatprep.subr.bf16.mxu0 0
        %3214 = vmatpush2.bf16.msra.mxu0 0
        %3215 = vmatprep.subr.bf16.mxu0 0
        %3216 = vmatpush2.bf16.msra.mxu0 %v3172
        %3217 = vmatprep.subr.bf16.mxu0 0
        %3218 = vmatpush2.bf16.msra.mxu0 %v3171
        %3219 = vmatprep.subr.bf16.mxu0 0
        %3220 = vmatpush2.bf16.msra.mxu0 %v3170
        %3221 = vmatprep.subr.bf16.mxu0 0
        %3222 = vmatpush2.bf16.msra.mxu0 %v3169
        %3223 = vmatprep.mubr.bf16.mxu0 %v3186
        %3224 = vmatmul.mubr.bf16.gmra.mxu0 %v3078
        %v3225 = vpop.f32.mrf.mxu0
        %v3226 = vadd.f32 %v3112, %v3225
        %v3227 = vpop.f32.mrf.mxu0
        %v3228 = vpop.f32.mrf.mxu0
        %v3229 = vadd.f32 %v3112, %v3228
        %v3230 = vpop.f32.mrf.mxu0
        %3231 = vmatprep.mubr.bf16.mxu0 %v3189
        %3232 = vmatmul.mubr.bf16.gmra.mxu0 %v3082
        %v3233 = vpop.f32.mrf.mxu0
        %v3234 = vadd.f32 %v3112, %v3233
        %v3235 = vpop.f32.mrf.mxu0
        %v3236 = vpop.f32.mrf.mxu0
        %v3237 = vadd.f32 %v3112, %v3236
        %v3238 = vpop.f32.mrf.mxu0
        %3239 = vdwg.mxu0
        %v3240 = vadd.f32 %v3226, %v3012
        %v3241 = vadd.f32 %v3229, %v3015
        %v3242 = vadd.f32 %v3234, %v3020
        %v3243 = vadd.f32 %v3237, %v3023
        %v3244 = vmax.f32 %v3240, 0.0
        %v3245 = vmax.f32 %v3241, 0.0
        %v3246 = vmax.f32 %v3242, 0.0
        %v3247 = vmax.f32 %v3243, 0.0
        %v3248 = vpack.c.bf16 %v3245, %v3244
        %v3249 = vpack.c.bf16 %v3247, %v3246
        %v3251 = vshrl.u32 %v3248, 16
        %v3253 = vrot.slane %v3251, 7
        %v3254 = vshll.u32 %v3248, 16
        %v3256 = vor.u32 %v3253, %v3254
        %v3258 = vshrl.u32 %v3249, 16
        %v3260 = vrot.slane %v3258, 7
        %v3261 = vshll.u32 %v3249, 16
        %v3263 = vor.u32 %v3260, %v3261
        %v3264 = vsel %vm654, %v3253, %v3263
        %v3267 = vsel %vm691, 0, %v3256
        %v3268 = vmul.bf16 %v3267, %v2603
        %v3269 = vmul.bf16 %v3264, %v2604
        %v3270 = vrot.slane %v3254, 1
        %v3271 = vor.u32 %v3251, %v3270
        %v3272 = vrot.slane %v3261, 1
        %v3273 = vsel %vm1255, %v3271, %v3272
        %v3274 = vor.u32 %v3258, %v3272
        %v3277 = vsel %vm1272, %v3274, 0
        %v3278 = vmul.bf16 %v3273, %v3066
        %v3279 = vmul.bf16 %v3277, %v3067
        %3282 = vrot.lane.b32.xlu0 %v3248, 64
        %v3283 = vpop.permute.xlu0 %3282
        %3284 = vrot.lane.b32.xlu0 %v3249, 64
        %v3285 = vpop.permute.xlu0 %3284
        %v3288 = vsel %vm2487, %v3268, %v3283
        %v3292 = vsel %vm2487, %v3269, %v3285
        %v3294 = vld [vmem:[#allocation2 + $0x550] sm:$0xf]
        %v3295 = vld [vmem:[#allocation2 + $0x554] sm:$0xf]
        %v3296 = vld [vmem:[#allocation2 + $0x558] sm:$0xf]
        %v3297 = vld [vmem:[#allocation2 + $0x55c] sm:$0xf]
        %v3298 = vld [vmem:[#allocation2 + $0x560] sm:$0xf]
        %v3299 = vld [vmem:[#allocation2 + $0x564] sm:$0xf]
        %v3300 = vld [vmem:[#allocation2 + $0x568] sm:$0xf]
        %v3301 = vld [vmem:[#allocation2 + $0x56c] sm:$0xf]
        %v3302 = vld [vmem:[#allocation2 + $0x570] sm:$0xf]
        %v3303 = vld [vmem:[#allocation2 + $0x574] sm:$0xf]
        %v3304 = vld [vmem:[#allocation2 + $0x578] sm:$0xf]
        %v3305 = vld [vmem:[#allocation2 + $0x57c] sm:$0xf]
        %v3306 = vld [vmem:[#allocation2 + $0x580] sm:$0xf]
        %v3307 = vld [vmem:[#allocation2 + $0x584] sm:$0xf]
        %v3308 = vld [vmem:[#allocation2 + $0x588] sm:$0xf]
        %v3309 = vld [vmem:[#allocation2 + $0x58c] sm:$0xf]
        %v3310 = vld [vmem:[#allocation2 + $0x590] sm:$0xf]
        %v3311 = vld [vmem:[#allocation2 + $0x594] sm:$0xf]
        %v3312 = vld [vmem:[#allocation2 + $0x598] sm:$0xf]
        %v3313 = vld [vmem:[#allocation2 + $0x59c] sm:$0xf]
        %v3314 = vld [vmem:[#allocation2 + $0x5a0] sm:$0xf]
        %v3315 = vld [vmem:[#allocation2 + $0x5a4] sm:$0xf]
        %v3316 = vld [vmem:[#allocation2 + $0x5a8] sm:$0xf]
        %v3317 = vld [vmem:[#allocation2 + $0x5ac] sm:$0xf]
        %v3318 = vld [vmem:[%s2 + $0x9] sm:$0x1]
        %v3319 = vlaneseq
        %v3320 = vshrl.u32 %v3319, 7
        %v3321 = vsub.s32 0, %v3320
        %v3322 = vrot.slane %v3318, %v3321
        %v3347 = vunpack.c.l.b16 %v3294
        %v3348 = vunpack.c.l.b16 %v3295
        %v3349 = vunpack.c.l.b16 %v3296
        %v3350 = vunpack.c.l.b16 %v3297
        %v3351 = vunpack.c.l.b16 %v3298
        %v3352 = vunpack.c.l.b16 %v3299
        %v3353 = vunpack.c.l.b16 %v3300
        %v3354 = vunpack.c.l.b16 %v3301
        %v3355 = vunpack.c.l.b16 %v3302
        %v3356 = vunpack.c.l.b16 %v3303
        %v3357 = vunpack.c.l.b16 %v3304
        %v3358 = vunpack.c.l.b16 %v3305
        %v3359 = vunpack.c.l.b16 %v3306
        %v3360 = vunpack.c.l.b16 %v3307
        %v3361 = vunpack.c.l.b16 %v3308
        %v3362 = vunpack.c.l.b16 %v3309
        %v3363 = vunpack.c.l.b16 %v3310
        %v3364 = vunpack.c.l.b16 %v3311
        %v3365 = vunpack.c.l.b16 %v3312
        %v3366 = vunpack.c.l.b16 %v3313
        %v3367 = vunpack.c.l.b16 %v3314
        %v3368 = vunpack.c.l.b16 %v3315
        %v3369 = vunpack.c.l.b16 %v3316
        %v3370 = vunpack.c.l.b16 %v3317
        %v3371 = vpack.c.b16 %v3348, %v3347
        %v3372 = vpack.c.b16 %v3350, %v3349
        %v3373 = vpack.c.b16 %v3352, %v3351
        %v3374 = vpack.c.b16 %v3354, %v3353
        %v3375 = vpack.c.b16 %v3356, %v3355
        %v3376 = vpack.c.b16 %v3358, %v3357
        %v3377 = vpack.c.b16 %v3360, %v3359
        %v3378 = vpack.c.b16 %v3362, %v3361
        %v3379 = vpack.c.b16 %v3364, %v3363
        %v3380 = vpack.c.b16 %v3366, %v3365
        %v3381 = vpack.c.b16 %v3368, %v3367
        %v3382 = vpack.c.b16 %v3370, %v3369
        %v3396 = vsel %vm2487, %v3278, 0
        %v3399 = vsel %vm2487, %v3279, 0
        %3401 = vmatprep.subr.bf16.mxu0 0
        %3402 = vmatpush1.bf16.msra.mxu0 %v3378
        %3403 = vmatprep.subr.bf16.mxu0 0
        %3404 = vmatpush1.bf16.msra.mxu0 %v3377
        %3405 = vmatprep.subr.bf16.mxu0 0
        %3406 = vmatpush1.bf16.msra.mxu0 %v3376
        %3407 = vmatprep.subr.bf16.mxu0 0
        %3408 = vmatpush1.bf16.msra.mxu0 %v3375
        %3409 = vmatprep.subr.bf16.mxu0 0
        %3410 = vmatpush1.bf16.msra.mxu0 %v3374
        %3411 = vmatprep.subr.bf16.mxu0 0
        %3412 = vmatpush1.bf16.msra.mxu0 %v3373
        %3413 = vmatprep.subr.bf16.mxu0 0
        %3414 = vmatpush1.bf16.msra.mxu0 %v3372
        %3415 = vmatprep.subr.bf16.mxu0 0
        %3416 = vmatpush1.bf16.msra.mxu0 %v3371
        %3417 = vmatprep.subr.bf16.mxu0 0
        %3418 = vmatpush2.bf16.msra.mxu0 0
        %3419 = vmatprep.subr.bf16.mxu0 0
        %3420 = vmatpush2.bf16.msra.mxu0 0
        %3421 = vmatprep.subr.bf16.mxu0 0
        %3422 = vmatpush2.bf16.msra.mxu0 0
        %3423 = vmatprep.subr.bf16.mxu0 0
        %3424 = vmatpush2.bf16.msra.mxu0 0
        %3425 = vmatprep.subr.bf16.mxu0 0
        %3426 = vmatpush2.bf16.msra.mxu0 %v3382
        %3427 = vmatprep.subr.bf16.mxu0 0
        %3428 = vmatpush2.bf16.msra.mxu0 %v3381
        %3429 = vmatprep.subr.bf16.mxu0 0
        %3430 = vmatpush2.bf16.msra.mxu0 %v3380
        %3431 = vmatprep.subr.bf16.mxu0 0
        %3432 = vmatpush2.bf16.msra.mxu0 %v3379
        %3433 = vmatprep.mubr.bf16.mxu0 %v3396
        %3434 = vmatmul.mubr.bf16.gmra.mxu0 %v3288
        %v3435 = vpop.f32.mrf.mxu0
        %v3436 = vadd.f32 %v3322, %v3435
        %v3437 = vpop.f32.mrf.mxu0
        %v3438 = vpop.f32.mrf.mxu0
        %v3439 = vadd.f32 %v3322, %v3438
        %v3440 = vpop.f32.mrf.mxu0
        %3441 = vmatprep.mubr.bf16.mxu0 %v3399
        %3442 = vmatmul.mubr.bf16.gmra.mxu0 %v3292
        %v3443 = vpop.f32.mrf.mxu0
        %v3444 = vadd.f32 %v3322, %v3443
        %v3445 = vpop.f32.mrf.mxu0
        %v3446 = vpop.f32.mrf.mxu0
        %v3447 = vadd.f32 %v3322, %v3446
        %v3448 = vpop.f32.mrf.mxu0
        %3449 = vdwg.mxu0
        %v3450 = vmax.f32 %v3436, 0.0
        %v3451 = vmax.f32 %v3439, 0.0
        %v3452 = vmax.f32 %v3444, 0.0
        %v3453 = vmax.f32 %v3447, 0.0
        %v3454 = vpack.c.bf16 %v3451, %v3450
        %v3455 = vpack.c.bf16 %v3453, %v3452
        %v3457 = vshrl.u32 %v3454, 16
        %v3459 = vrot.slane %v3457, 7
        %v3460 = vshll.u32 %v3454, 16
        %v3462 = vor.u32 %v3459, %v3460
        %v3464 = vshrl.u32 %v3455, 16
        %v3466 = vrot.slane %v3464, 7
        %v3467 = vshll.u32 %v3455, 16
        %v3469 = vor.u32 %v3466, %v3467
        %v3470 = vsel %vm654, %v3459, %v3469
        %v3473 = vsel %vm691, 0, %v3462
        %v3474 = vmul.bf16 %v3473, %v2603
        %v3475 = vmul.bf16 %v3470, %v2604
        %v3476 = vrot.slane %v3460, 1
        %v3477 = vor.u32 %v3457, %v3476
        %v3478 = vrot.slane %v3467, 1
        %v3479 = vsel %vm1255, %v3477, %v3478
        %v3480 = vor.u32 %v3464, %v3478
        %v3483 = vsel %vm1272, %v3480, 0
        %v3484 = vmul.bf16 %v3479, %v3066
        %v3485 = vmul.bf16 %v3483, %v3067
        %3488 = vrot.lane.b32.xlu0 %v3454, 64
        %v3489 = vpop.permute.xlu0 %3488
        %3490 = vrot.lane.b32.xlu0 %v3455, 64
        %v3491 = vpop.permute.xlu0 %3490
        %v3494 = vsel %vm2487, %v3474, %v3489
        %v3498 = vsel %vm2487, %v3475, %v3491
        %v3500 = vld [vmem:[#allocation2 + $0x5b0] sm:$0xf]
        %v3501 = vld [vmem:[#allocation2 + $0x5b4] sm:$0xf]
        %v3502 = vld [vmem:[#allocation2 + $0x5b8] sm:$0xf]
        %v3503 = vld [vmem:[#allocation2 + $0x5bc] sm:$0xf]
        %v3504 = vld [vmem:[#allocation2 + $0x5c0] sm:$0xf]
        %v3505 = vld [vmem:[#allocation2 + $0x5c4] sm:$0xf]
        %v3506 = vld [vmem:[#allocation2 + $0x5c8] sm:$0xf]
        %v3507 = vld [vmem:[#allocation2 + $0x5cc] sm:$0xf]
        %v3508 = vld [vmem:[#allocation2 + $0x5d0] sm:$0xf]
        %v3509 = vld [vmem:[#allocation2 + $0x5d4] sm:$0xf]
        %v3510 = vld [vmem:[#allocation2 + $0x5d8] sm:$0xf]
        %v3511 = vld [vmem:[#allocation2 + $0x5dc] sm:$0xf]
        %v3512 = vld [vmem:[#allocation2 + $0x5e0] sm:$0xf]
        %v3513 = vld [vmem:[#allocation2 + $0x5e4] sm:$0xf]
        %v3514 = vld [vmem:[#allocation2 + $0x5e8] sm:$0xf]
        %v3515 = vld [vmem:[#allocation2 + $0x5ec] sm:$0xf]
        %v3516 = vld [vmem:[#allocation2 + $0x5f0] sm:$0xf]
        %v3517 = vld [vmem:[#allocation2 + $0x5f4] sm:$0xf]
        %v3518 = vld [vmem:[#allocation2 + $0x5f8] sm:$0xf]
        %v3519 = vld [vmem:[#allocation2 + $0x5fc] sm:$0xf]
        %v3520 = vld [vmem:[#allocation2 + $0x600] sm:$0xf]
        %v3521 = vld [vmem:[#allocation2 + $0x604] sm:$0xf]
        %v3522 = vld [vmem:[#allocation2 + $0x608] sm:$0xf]
        %v3523 = vld [vmem:[#allocation2 + $0x60c] sm:$0xf]
        %v3524 = vld [vmem:[%s2 + $0xa] sm:$0x1]
        %v3525 = vlaneseq
        %v3526 = vshrl.u32 %v3525, 7
        %v3527 = vsub.s32 0, %v3526
        %v3528 = vrot.slane %v3524, %v3527
        %v3553 = vunpack.c.l.b16 %v3500
        %v3554 = vunpack.c.l.b16 %v3501
        %v3555 = vunpack.c.l.b16 %v3502
        %v3556 = vunpack.c.l.b16 %v3503
        %v3557 = vunpack.c.l.b16 %v3504
        %v3558 = vunpack.c.l.b16 %v3505
        %v3559 = vunpack.c.l.b16 %v3506
        %v3560 = vunpack.c.l.b16 %v3507
        %v3561 = vunpack.c.l.b16 %v3508
        %v3562 = vunpack.c.l.b16 %v3509
        %v3563 = vunpack.c.l.b16 %v3510
        %v3564 = vunpack.c.l.b16 %v3511
        %v3565 = vunpack.c.l.b16 %v3512
        %v3566 = vunpack.c.l.b16 %v3513
        %v3567 = vunpack.c.l.b16 %v3514
        %v3568 = vunpack.c.l.b16 %v3515
        %v3569 = vunpack.c.l.b16 %v3516
        %v3570 = vunpack.c.l.b16 %v3517
        %v3571 = vunpack.c.l.b16 %v3518
        %v3572 = vunpack.c.l.b16 %v3519
        %v3573 = vunpack.c.l.b16 %v3520
        %v3574 = vunpack.c.l.b16 %v3521
        %v3575 = vunpack.c.l.b16 %v3522
        %v3576 = vunpack.c.l.b16 %v3523
        %v3577 = vpack.c.b16 %v3554, %v3553
        %v3578 = vpack.c.b16 %v3556, %v3555
        %v3579 = vpack.c.b16 %v3558, %v3557
        %v3580 = vpack.c.b16 %v3560, %v3559
        %v3581 = vpack.c.b16 %v3562, %v3561
        %v3582 = vpack.c.b16 %v3564, %v3563
        %v3583 = vpack.c.b16 %v3566, %v3565
        %v3584 = vpack.c.b16 %v3568, %v3567
        %v3585 = vpack.c.b16 %v3570, %v3569
        %v3586 = vpack.c.b16 %v3572, %v3571
        %v3587 = vpack.c.b16 %v3574, %v3573
        %v3588 = vpack.c.b16 %v3576, %v3575
        %v3602 = vsel %vm2487, %v3484, 0
        %v3605 = vsel %vm2487, %v3485, 0
        %3607 = vmatprep.subr.bf16.mxu0 0
        %3608 = vmatpush1.bf16.msra.mxu0 %v3584
        %3609 = vmatprep.subr.bf16.mxu0 0
        %3610 = vmatpush1.bf16.msra.mxu0 %v3583
        %3611 = vmatprep.subr.bf16.mxu0 0
        %3612 = vmatpush1.bf16.msra.mxu0 %v3582
        %3613 = vmatprep.subr.bf16.mxu0 0
        %3614 = vmatpush1.bf16.msra.mxu0 %v3581
        %3615 = vmatprep.subr.bf16.mxu0 0
        %3616 = vmatpush1.bf16.msra.mxu0 %v3580
        %3617 = vmatprep.subr.bf16.mxu0 0
        %3618 = vmatpush1.bf16.msra.mxu0 %v3579
        %3619 = vmatprep.subr.bf16.mxu0 0
        %3620 = vmatpush1.bf16.msra.mxu0 %v3578
        %3621 = vmatprep.subr.bf16.mxu0 0
        %3622 = vmatpush1.bf16.msra.mxu0 %v3577
        %3623 = vmatprep.subr.bf16.mxu0 0
        %3624 = vmatpush2.bf16.msra.mxu0 0
        %3625 = vmatprep.subr.bf16.mxu0 0
        %3626 = vmatpush2.bf16.msra.mxu0 0
        %3627 = vmatprep.subr.bf16.mxu0 0
        %3628 = vmatpush2.bf16.msra.mxu0 0
        %3629 = vmatprep.subr.bf16.mxu0 0
        %3630 = vmatpush2.bf16.msra.mxu0 0
        %3631 = vmatprep.subr.bf16.mxu0 0
        %3632 = vmatpush2.bf16.msra.mxu0 %v3588
        %3633 = vmatprep.subr.bf16.mxu0 0
        %3634 = vmatpush2.bf16.msra.mxu0 %v3587
        %3635 = vmatprep.subr.bf16.mxu0 0
        %3636 = vmatpush2.bf16.msra.mxu0 %v3586
        %3637 = vmatprep.subr.bf16.mxu0 0
        %3638 = vmatpush2.bf16.msra.mxu0 %v3585
        %3639 = vmatprep.mubr.bf16.mxu0 %v3602
        %3640 = vmatmul.mubr.bf16.gmra.mxu0 %v3494
        %v3641 = vpop.f32.mrf.mxu0
        %v3642 = vadd.f32 %v3528, %v3641
        %v3643 = vpop.f32.mrf.mxu0
        %v3644 = vpop.f32.mrf.mxu0
        %v3645 = vadd.f32 %v3528, %v3644
        %v3646 = vpop.f32.mrf.mxu0
        %3647 = vmatprep.mubr.bf16.mxu0 %v3605
        %3648 = vmatmul.mubr.bf16.gmra.mxu0 %v3498
        %v3649 = vpop.f32.mrf.mxu0
        %v3650 = vadd.f32 %v3528, %v3649
        %v3651 = vpop.f32.mrf.mxu0
        %v3652 = vpop.f32.mrf.mxu0
        %v3653 = vadd.f32 %v3528, %v3652
        %v3654 = vpop.f32.mrf.mxu0
        %3655 = vdwg.mxu0
        %v3656 = vadd.f32 %v3642, %v3244
        %v3657 = vadd.f32 %v3645, %v3245
        %v3658 = vadd.f32 %v3650, %v3246
        %v3659 = vadd.f32 %v3653, %v3247
        %v3660 = vmax.f32 %v3656, 0.0
        %v3661 = vmax.f32 %v3657, 0.0
        %v3662 = vmax.f32 %v3658, 0.0
        %v3663 = vmax.f32 %v3659, 0.0
        %v3664 = vpack.c.bf16 %v3661, %v3660
        %v3665 = vpack.c.bf16 %v3663, %v3662
        %v3666 = vld [vmem:[#allocation2 + $0x610] sm:$0xf]
        %v3668 = vsel %vm411, %v3666, 0
        %3670 = vmatprep.subr.bf16.mxu0 0
        %3671 = vmatpush1.bf16.msra.mxu0 0
        %3672 = vmatprep.subr.bf16.mxu0 0
        %3673 = vmatpush1.bf16.msra.mxu0 0
        %3674 = vmatprep.subr.bf16.mxu0 0
        %3675 = vmatpush1.bf16.msra.mxu0 0
        %3676 = vmatprep.subr.bf16.mxu0 0
        %3677 = vmatpush1.bf16.msra.mxu0 0
        %3678 = vmatprep.subr.bf16.mxu0 0
        %3679 = vmatpush1.bf16.msra.mxu0 0
        %3680 = vmatprep.subr.bf16.mxu0 0
        %3681 = vmatpush1.bf16.msra.mxu0 0
        %3682 = vmatprep.subr.bf16.mxu0 0
        %3683 = vmatpush1.bf16.msra.mxu0 %v3665
        %3684 = vmatprep.subr.bf16.mxu0 0
        %3685 = vmatpush1.bf16.msra.mxu0 %v3664
        %3686 = vmatprep.subr.bf16.mxu0 0
        %3687 = vmatpush2.bf16.msra.mxu0 0
        %3688 = vmatprep.subr.bf16.mxu0 0
        %3689 = vmatpush2.bf16.msra.mxu0 0
        %3690 = vmatprep.subr.bf16.mxu0 0
        %3691 = vmatpush2.bf16.msra.mxu0 0
        %3692 = vmatprep.subr.bf16.mxu0 0
        %3693 = vmatpush2.bf16.msra.mxu0 0
        %3694 = vmatprep.subr.bf16.mxu0 0
        %3695 = vmatpush2.bf16.msra.mxu0 0
        %3696 = vmatprep.subr.bf16.mxu0 0
        %3697 = vmatpush2.bf16.msra.mxu0 0
        %3698 = vmatprep.subr.bf16.mxu0 0
        %3699 = vmatpush2.bf16.msra.mxu0 0
        %3700 = vmatprep.subr.bf16.mxu0 0
        %3701 = vmatpush2.bf16.msra.mxu0 0
        %3702 = vmatprep.mubr.bf16.mxu0 0
        %3703 = vmatmul.mubr.bf16.gmra.mxu0 %v3668
        %v3704 = vpop.f32.mrf.mxu0
        %v3705 = vadd.f32 0.0, %v3704
        %v3706 = vpop.f32.mrf.mxu0
        %v3707 = vpop.f32.mrf.mxu0
        %v3708 = vpop.f32.mrf.mxu0
        %3709 = vdwg.mxu0
        %v3710 = vpack.c.bf16 %v3705, %v3705
        %v3711 = vld [vmem:[#allocation2 + $0x614] sm:$0xf]
        %v3712 = vld [vmem:[#allocation2 + $0x618] sm:$0xf]
        %v3713 = vld [vmem:[#allocation2 + $0x61c] sm:$0xf]
        %v3714 = vld [vmem:[#allocation2 + $0x620] sm:$0xf]
        %v3715 = vld [vmem:[#allocation2 + $0x624] sm:$0xf]
        %v3716 = vld [vmem:[#allocation2 + $0x628] sm:$0xf]
        %v3717 = vld [vmem:[#allocation2 + $0x62c] sm:$0xf]
        %v3718 = vld [vmem:[#allocation2 + $0x630] sm:$0xf]
        %v3719 = vld [vmem:[%s2 + $0xb] sm:$0x1]
        %v3720 = vlaneseq
        %v3721 = vshrl.u32 %v3720, 7
        %v3722 = vsub.s32 0, %v3721
        %v3723 = vrot.slane %v3719, %v3722
        %v3732 = vunpack.c.l.b16 %v3711
        %v3733 = vunpack.c.l.b16 %v3712
        %v3734 = vunpack.c.l.b16 %v3713
        %v3735 = vunpack.c.l.b16 %v3714
        %v3736 = vunpack.c.l.b16 %v3715
        %v3737 = vunpack.c.l.b16 %v3716
        %v3738 = vunpack.c.l.b16 %v3717
        %v3739 = vunpack.c.l.b16 %v3718
        %v3740 = vpack.c.b16 %v3733, %v3732
        %v3741 = vpack.c.b16 %v3735, %v3734
        %v3742 = vpack.c.b16 %v3737, %v3736
        %v3743 = vpack.c.b16 %v3739, %v3738
        %v3749 = vsel %vm2487, %v3710, 0
        %3751 = vmatprep.subr.bf16.mxu0 0
        %3752 = vmatpush1.bf16.msra.mxu0 0
        %3753 = vmatprep.subr.bf16.mxu0 0
        %3754 = vmatpush1.bf16.msra.mxu0 0
        %3755 = vmatprep.subr.bf16.mxu0 0
        %3756 = vmatpush1.bf16.msra.mxu0 0
        %3757 = vmatprep.subr.bf16.mxu0 0
        %3758 = vmatpush1.bf16.msra.mxu0 0
        %3759 = vmatprep.subr.bf16.mxu0 0
        %3760 = vmatpush1.bf16.msra.mxu0 %v3743
        %3761 = vmatprep.subr.bf16.mxu0 0
        %3762 = vmatpush1.bf16.msra.mxu0 %v3742
        %3763 = vmatprep.subr.bf16.mxu0 0
        %3764 = vmatpush1.bf16.msra.mxu0 %v3741
        %3765 = vmatprep.subr.bf16.mxu0 0
        %3766 = vmatpush1.bf16.msra.mxu0 %v3740
        %3767 = vmatprep.subr.bf16.mxu0 0
        %3768 = vmatpush2.bf16.msra.mxu0 0
        %3769 = vmatprep.subr.bf16.mxu0 0
        %3770 = vmatpush2.bf16.msra.mxu0 0
        %3771 = vmatprep.subr.bf16.mxu0 0
        %3772 = vmatpush2.bf16.msra.mxu0 0
        %3773 = vmatprep.subr.bf16.mxu0 0
        %3774 = vmatpush2.bf16.msra.mxu0 0
        %3775 = vmatprep.subr.bf16.mxu0 0
        %3776 = vmatpush2.bf16.msra.mxu0 0
        %3777 = vmatprep.subr.bf16.mxu0 0
        %3778 = vmatpush2.bf16.msra.mxu0 0
        %3779 = vmatprep.subr.bf16.mxu0 0
        %3780 = vmatpush2.bf16.msra.mxu0 0
        %3781 = vmatprep.subr.bf16.mxu0 0
        %3782 = vmatpush2.bf16.msra.mxu0 0
        %3783 = vmatprep.mubr.bf16.mxu0 0
        %3784 = vmatmul.mubr.bf16.gmra.mxu0 %v3749
        %v3785 = vpop.f32.mrf.mxu0
        %v3786 = vadd.f32 %v3723, %v3785
        %v3787 = vpop.f32.mrf.mxu0
        %v3788 = vpop.f32.mrf.mxu0
        %v3789 = vpop.f32.mrf.mxu0
        %3790 = vdwg.mxu0
        %3791 = vst [vmem:[%s181] sm:$0xff] %v3786
        %s3792 = sand.u32 %s94, 1
        %s3793 = scalar_lea.sflag [#allocation4], %s3792
        %s3794 = sand.u32 %s94, 1
        %s3795 = smul.addr %s3794, 8
        %s3796 = scalar_lea.vmem [#allocation5], %s3795
        // Predicated region
        $region37: #{tpu_custom_call.1} parent=31 // pred_check
          %p3797 = pneg %p104
        $region38: #{tpu_custom_call.1} parent=31 // pred_check_branch
          %3799 = sbr.rel (%p3797) target = $region40
        $region39: #{tpu_custom_call.1} parent=31 // pred_region
          %s3801 = ssub.s32 128, 128
          %3802 = vsyncadd %s3793, %s3801
          %s3803 = smul.addr %s18, 128
          %s3804 = scalar_lea.hbm %s3, %s3803
          %s3806 = sshll.u32 %s3796, 4
          %s3807 = int_to_ptr.vmem [resolvable:$true] %s3806
          %3809 = dma.vmem_to_hbm [thread:$0]  %s3807, 128, %s3804, %s3793
        $region40: #{tpu_custom_call.1} parent=31 // pred_fallthru
          _
      $region32: #{tpu_custom_call.1} parent=5 // pred_fallthru
        _
      %p3810 = scmp.le.s32.totalorder 2, %s13
      // Predicated region
      $region41: #{tpu_custom_call.1} parent=5 // pred_check
        %p3811 = pneg %p3810
      $region42: #{tpu_custom_call.1} parent=5 // pred_check_branch
        %3813 = sbr.rel (%p3811) target = $region44
      $region43: #{tpu_custom_call.1} parent=5 // pred_region
        %s3814 = ssub.s32 %s13, 2
        // Predicated region
        $region45: #{tpu_custom_call.1} parent=43 // pred_check
          %p3815 = pneg %p110
        $region46: #{tpu_custom_call.1} parent=43 // pred_check_branch
          %3817 = sbr.rel (%p3815) target = $region48
        $region47: #{tpu_custom_call.1} parent=43 // pred_region
          %s3818 = sand.u32 %s95, 1
          %s3819 = scalar_lea.sflag [#allocation4], %s3818
          %s3820 = sand.u32 %s95, 1
          %s3821 = smul.addr %s3820, 8
          %s3822 = scalar_lea.vmem [#allocation5], %s3821
          %3823 = dma.done %s3819, 128
        $region48: #{tpu_custom_call.1} parent=43 // pred_fallthru
          _
      $region44: #{tpu_custom_call.1} parent=5 // pred_fallthru
        _
    $region6: #{tpu_custom_call.1} parent=1 // loop_footer
      %s17 = sadd.s32 1, %s13
    $region7: #{tpu_custom_call.1} parent=1 // loop_footer_branch
      %12 = sbr.rel target = $region3
    $region8: #{tpu_custom_call.1} parent=1 // loop_exit
      _
    %3824 = vsyncpa [#allocation3], 1
    %s3825 = scalar_lea.sflag [#allocation3], 1
    %3826 = vsyncpa %s3825, 1
    %3827 = vsyncpa [#allocation4], 1
    %s3828 = scalar_lea.sflag [#allocation4], 1
    %3829 = vsyncpa %s3828, 1

</llo_original>
